<compile_context>
chip_gen: v7x
topology: tpu7x:2x2x1
jax: 0.10.0
libtpu: 0.0.40
codegen_flags: <defaults>
</compile_context>

<pallas_src>
import functools

import jax
import jax.numpy as jnp
from jax.experimental import pallas as pl
from jax.experimental.pallas import tpu as pltpu

_BN_EPS = 1e-5
_LANES = 128


def _round_up(x, m):
    return ((x + m - 1) // m) * m


def _fold_bn(gamma, beta, mean, var):
    scale = gamma / jnp.sqrt(var + _BN_EPS)
    bias = beta - mean * scale
    return scale, bias


def _pad_to(v, n):
    return jnp.pad(v, (0, n - v.shape[0]))


# ----------------------------------------------------------------------------
# Fused Block kernel
# ----------------------------------------------------------------------------

def _block_kernel(x_ref, w1_ref, b1_ref, w2_ref, b2_ref, w3_ref, b3_ref,
                  *rest, W, Wo, TH, TH_in, stride, Cin, Pp, Cp,
                  has_residual, bottom_pad_last):
    """One grid step = one batch element x one tile of TH output rows.

    x_ref   : (1, H, W, Cin)      whole input image (revisited across row tiles)
    w1_ref  : (Cin, Pp)           1x1 expand weight (BN1 scale folded in)
    b1_ref  : (1, Pp)  f32        folded BN1 bias
    w2_ref  : (3, 3, Pp) f32      depthwise weight (BN2 scale folded in)
    b2_ref  : (1, Pp)  f32        folded BN2 bias
    w3_ref  : (Pp, Cp)            1x1 project weight (BN3 scale folded in)
    b3_ref  : (1, Cp)  f32        folded BN3 bias
    ws/bs   : shortcut 1x1 weight + folded bias (only when stride == 1)
    o_ref   : (1, TH, Wo, Cp)
    e_ref   : (TH_in, W + 2, Pp) f32 VMEM scratch holding the expanded, padded
              row window (the halo'd intermediate of stage 1).
    """
    if has_residual:
        ws_ref, bs_ref, o_ref, e_ref = rest
    else:
        o_ref, e_ref = rest

    f32 = jnp.float32
    t = pl.program_id(1)
    nt = pl.num_programs(1)
    r0 = t * TH                      # first output row of this tile
    in0 = r0 * stride - 1            # global input row mapped to E row 0

    # ---------------- stage 1: 1x1 expand + BN1 + ReLU into VMEM scratch ----
    w1v = w1_ref[...]
    b1 = b1_ref[...]                                              # (1, Pp)

    def expand_rows(g_start, n_rows, dst_row):
        xw = x_ref[0, pl.ds(g_start, n_rows), :, :]               # (n_rows, W, Cin)
        xw = xw.reshape(n_rows * W, Cin)
        y = jnp.dot(xw, w1v, preferred_element_type=f32) + b1     # (n_rows*W, Pp)
        y = jnp.maximum(y, 0.0)
        e_ref[pl.ds(dst_row, n_rows), pl.ds(1, W), :] = y.reshape(n_rows, W, Pp)

    # zero padding columns (conv padding=1 along W), produced in-kernel
    zcol = jnp.zeros((TH_in, 1, Pp), f32)
    e_ref[:, 0:1, :] = zcol
    e_ref[:, W + 1:W + 2, :] = zcol

    # core rows of the window are always in bounds
    expand_rows(r0 * stride, TH_in - 2, 1)

    zrow = jnp.zeros((1, W + 2, Pp), f32)

    # top halo row (zero pad only on the very first row tile)
    @pl.when(t == 0)
    def _():
        e_ref[0:1, :, :] = zrow

    @pl.when(t > 0)
    def _():
        expand_rows(in0, 1, 0)

    # bottom halo row
    if bottom_pad_last:
        @pl.when(t == nt - 1)
        def _():
            e_ref[TH_in - 1:TH_in, :, :] = zrow

        @pl.when(t < nt - 1)
        def _():
            expand_rows(in0 + TH_in - 1, 1, TH_in - 1)
    else:
        expand_rows(in0 + TH_in - 1, 1, TH_in - 1)

    # ---------------- stage 2: 3x3 depthwise (stride folded) + BN2 + ReLU ---
    w2v = w2_ref[...].astype(f32)                                 # (3, 3, Pp)
    b2 = b2_ref[...]                                              # (1, Pp)

    def _ds(start, size):
        return pl.ds(start, size) if stride == 1 else pl.ds(start, size, stride)

    def tap(kh, kw):
        # strided read: only the Ho x Wo outputs of this tile are computed
        return e_ref[_ds(kh, TH), _ds(kw, Wo), :]                 # (TH, Wo, Pp)

    acc = tap(0, 0) * w2v[0, 0]                                   # first tap inits acc
    for kh in range(3):
        for kw in range(3):
            if kh == 0 and kw == 0:
                continue
            acc = acc + tap(kh, kw) * w2v[kh, kw]
    d = jnp.maximum(acc + b2, 0.0)                                # (TH, Wo, Pp) f32

    # ---------------- stage 3: 1x1 project + BN3 (+ residual) ---------------
    w3v = w3_ref[...]
    b3 = b3_ref[...]                                              # (1, Cp)
    d2 = d.reshape(TH * Wo, Pp).astype(w3v.dtype)                 # bf16 for MXU rate
    y = jnp.dot(d2, w3v, preferred_element_type=f32) + b3         # (TH*Wo, Cp)

    if has_residual:
        # stride == 1 here, so Wo == W and output rows == input rows r0..r0+TH-1
        ws_v = ws_ref[...]
        bsv = bs_ref[...]                                         # (1, Cp)
        xs = x_ref[0, pl.ds(r0, TH), :, :].reshape(TH * W, Cin).astype(ws_v.dtype)
        y = y + jnp.dot(xs, ws_v, preferred_element_type=f32) + bsv

    o_ref[0] = y.reshape(TH, Wo, Cp).astype(o_ref.dtype)


# ----------------------------------------------------------------------------
# Wrappers
# ----------------------------------------------------------------------------

def _pick_tile_rows(Ho, W, Pp, stride, max_rows=16, budget_bytes=6 << 20):
    """Largest divisor of Ho (<= max_rows) whose scratch fits the VMEM budget."""
    best = 1
    for th in range(1, min(Ho, max_rows) + 1):
        if Ho % th:
            continue
        th_in = (th - 1) * stride + 3
        if th_in * (W + 2) * Pp * 4 <= budget_bytes:
            best = th
    return best


def block_forward_nhwc(params, x_nhwc, *, in_planes, out_planes, expansion,
                       stride, compute_dtype=jnp.float32, tile_rows=None):
    """Fused Block forward on NHWC input. Returns (N, Ho, Wo, out_planes)."""
    N, H, W, Cin = x_nhwc.shape
    assert Cin == in_planes and stride >= 1
    planes = expansion * in_planes
    Pp = _round_up(planes, _LANES)        # lane-dense internal width
    Cp = _round_up(out_planes, _LANES)    # lane-dense output width
    Ho = (H - 1) // stride + 1
    Wo = (W - 1) // stride + 1
    has_residual = (stride == 1)

    # Fold BN (inference mode): scale goes into the conv weight columns, only the
    # bias enters the kernel.  Padded channel entries are zero so padded channels
    # stay exactly zero through relu / depthwise / residual.
    s1, b1 = _fold_bn(*params["bn1"])
    s2, b2 = _fold_bn(*params["bn2"])
    s3, b3 = _fold_bn(*params["bn3"])

    w1 = jnp.pad(params["w1"] * s1[None, :],
                 ((0, 0), (0, Pp - planes))).astype(compute_dtype)
    w2 = jnp.pad(params["w2"] * s2[None, None, :],
                 ((0, 0), (0, 0), (0, Pp - planes))).astype(jnp.float32)
    w3 = jnp.pad(params["w3"] * s3[None, :],
                 ((0, Pp - planes), (0, Cp - out_planes))).astype(compute_dtype)
    b1p = _pad_to(b1, Pp).reshape(1, Pp).astype(jnp.float32)
    b2p = _pad_to(b2, Pp).reshape(1, Pp).astype(jnp.float32)
    b3p = _pad_to(b3, Cp).reshape(1, Cp).astype(jnp.float32)

    args = [x_nhwc.astype(compute_dtype), w1, b1p, w2, b2p, w3, b3p]
    if has_residual:
        if in_planes != out_planes:
            ss, bs = _fold_bn(*params["bns"])
            ws_raw = params["ws"] * ss[None, :]
        else:
            # identity shortcut expressed as a 1x1 conv with an identity matrix
            # (handles the padded output channels uniformly)
            ws_raw = jnp.eye(in_planes, dtype=jnp.float32)
            bs = jnp.zeros((out_planes,), jnp.float32)
        ws = jnp.pad(ws_raw, ((0, 0), (0, Cp - out_planes))).astype(compute_dtype)
        bsp = _pad_to(bs, Cp).reshape(1, Cp).astype(jnp.float32)
        args += [ws, bsp]

    TH = tile_rows if tile_rows is not None else _pick_tile_rows(Ho, W, Pp, stride)
    assert Ho % TH == 0, "tile_rows must divide the output height"
    TH_in = (TH - 1) * stride + 3
    num_tiles = Ho // TH
    bottom_pad_last = ((Ho - 1) * stride + 1) >= H

    kernel = functools.partial(
        _block_kernel, W=W, Wo=Wo, TH=TH, TH_in=TH_in, stride=stride,
        Cin=Cin, Pp=Pp, Cp=Cp, has_residual=has_residual,
        bottom_pad_last=bottom_pad_last)

    in_specs = [
        # whole image per batch element; block index is constant across the row
        # tiles so Pallas re-uses the already-resident VMEM copy.
        pl.BlockSpec((1, H, W, Cin), lambda n, t: (n, 0, 0, 0)),
        pl.BlockSpec((Cin, Pp), lambda n, t: (0, 0)),
        pl.BlockSpec((1, Pp), lambda n, t: (0, 0)),
        pl.BlockSpec((3, 3, Pp), lambda n, t: (0, 0, 0)),
        pl.BlockSpec((1, Pp), lambda n, t: (0, 0)),
        pl.BlockSpec((Pp, Cp), lambda n, t: (0, 0)),
        pl.BlockSpec((1, Cp), lambda n, t: (0, 0)),
    ]
    if has_residual:
        in_specs += [pl.BlockSpec((Cin, Cp), lambda n, t: (0, 0)),
                     pl.BlockSpec((1, Cp), lambda n, t: (0, 0))]

    out = pl.pallas_call(
        kernel,
        out_shape=jax.ShapeDtypeStruct((N, Ho, Wo, Cp), compute_dtype),
        grid=(N, num_tiles),
        in_specs=in_specs,
        out_specs=pl.BlockSpec((1, TH, Wo, Cp), lambda n, t: (n, t, 0, 0)),
        scratch_shapes=[pltpu.VMEM((TH_in, W + 2, Pp), jnp.float32)],
        compiler_params=pltpu.CompilerParams(
            dimension_semantics=("parallel", "parallel"),
            vmem_limit_bytes=48 * 1024 * 1024),   # fits v7x (64 MiB) with headroom
    )(*args)

    # strip the lane padding (keep the padded layout if you chain blocks yourself)
    return out[..., :out_planes]


def block_forward(params, x_nchw, *, in_planes, out_planes, expansion, stride,
                  compute_dtype=jnp.float32, tile_rows=None):
    """PyTorch-layout (NCHW) entry point.  When chaining many blocks, prefer
    block_forward_nhwc to avoid the per-block layout transposes."""
    x = jnp.transpose(x_nchw, (0, 2, 3, 1))
    out = block_forward_nhwc(params, x, in_planes=in_planes,
                             out_planes=out_planes, expansion=expansion,
                             stride=stride, compute_dtype=compute_dtype,
                             tile_rows=tile_rows)
    return jnp.transpose(out, (0, 3, 1, 2)).astype(jnp.float32)


# ----------------------------------------------------------------------------
# Parameter init (synthetic BN running stats -> eval-mode BN)
# ----------------------------------------------------------------------------
# TODO(synk): training-mode BatchNorm (batch statistics + running-stat updates)
# is not implemented; BN is folded in inference mode like the reference.

def init_block_params(key, in_planes, out_planes, expansion, stride):
    planes = expansion * in_planes
    keys = jax.random.split(key, 8)

    def conv_w(k, shape, fan_in):
        return jax.random.normal(k, shape, jnp.float32) / jnp.sqrt(float(fan_in))

    def bn(k, c):
        k1, k2, k3, k4 = jax.random.split(k, 4)
        gamma = 1.0 + 0.1 * jax.random.normal(k1, (c,), jnp.float32)
        beta = 0.1 * jax.random.normal(k2, (c,), jnp.float32)
        mean = 0.1 * jax.random.normal(k3, (c,), jnp.float32)
        var = jnp.abs(jax.random.normal(k4, (c,), jnp.float32)) + 0.5
        return gamma, beta, mean, var

    p = {
        "w1": conv_w(keys[0], (in_planes, planes), in_planes),   # 1x1 expand (Cin, P)
        "bn1": bn(keys[1], planes),
        "w2": conv_w(keys[2], (3, 3, planes), 9),                # depthwise (kh, kw, P)
        "bn2": bn(keys[3], planes),
        "w3": conv_w(keys[4], (planes, out_planes), planes),     # 1x1 project
        "bn3": bn(keys[5], out_planes),
    }
    if stride == 1 and in_planes != out_planes:
        p["ws"] = conv_w(keys[6], (in_planes, out_planes), in_planes)
        p["bns"] = bn(keys[7], out_planes)
    return p


# ----------------------------------------------------------------------------
# Pure-JAX reference (correctness check)
# ----------------------------------------------------------------------------

def block_forward_ref(params, x_nchw, *, in_planes, out_planes, expansion, stride):
    x = jnp.transpose(x_nchw, (0, 2, 3, 1)).astype(jnp.float32)

    def pw(v, w, bn, relu):
        y = jnp.einsum("nhwc,cd->nhwd", v, w)
        s, b = _fold_bn(*bn)
        y = y * s + b
        return jnp.maximum(y, 0.0) if relu else y

    out = pw(x, params["w1"], params["bn1"], True)
    Cp = out.shape[-1]
    wd = params["w2"].reshape(3, 3, 1, Cp)
    out = jax.lax.conv_general_dilated(
        out, wd, window_strides=(stride, stride), padding=((1, 1), (1, 1)),
        dimension_numbers=("NHWC", "HWIO", "NHWC"), feature_group_count=Cp)
    s2, b2 = _fold_bn(*params["bn2"])
    out = jnp.maximum(out * s2 + b2, 0.0)
    out = pw(out, params["w3"], params["bn3"], False)
    if stride == 1:
        if in_planes != out_planes:
            sc = pw(x, params["ws"], params["bns"], False)
        else:
            sc = x
        out = out + sc
    return jnp.transpose(out, (0, 3, 1, 2))


# ----------------------------------------------------------------------------

if __name__ == "__main__":
    key = jax.random.PRNGKey(0)

    configs = [
        # in, out, exp, stride, H, W, dtype, tile_rows, tol
        dict(in_planes=4, out_planes=8, expansion=2, stride=1, H=16, W=16,
             compute_dtype=jnp.float32, tile_rows=None, tol=2e-3),   # conv shortcut
        dict(in_planes=8, out_planes=8, expansion=2, stride=1, H=24, W=24,
             compute_dtype=jnp.float32, tile_rows=4, tol=2e-3),      # identity shortcut, 6 row tiles
        dict(in_planes=4, out_planes=8, expansion=2, stride=2, H=16, W=16,
             compute_dtype=jnp.bfloat16, tile_rows=None, tol=0.15),  # strided, bf16 storage
    ]

    for i, cfg in enumerate(configs):
        key, kx, kp = jax.random.split(key, 3)
        x = jax.random.normal(kx, (2, cfg["in_planes"], cfg["H"], cfg["W"]),
                              jnp.float32)
        params = init_block_params(kp, cfg["in_planes"], cfg["out_planes"],
                                   cfg["expansion"], cfg["stride"])

        fwd = jax.jit(functools.partial(
            block_forward, in_planes=cfg["in_planes"], out_planes=cfg["out_planes"],
            expansion=cfg["expansion"], stride=cfg["stride"],
            compute_dtype=cfg["compute_dtype"], tile_rows=cfg["tile_rows"]))

        out = jax.block_until_ready(fwd(params, x))
        ref = jax.block_until_ready(block_forward_ref(
            params, x, in_planes=cfg["in_planes"], out_planes=cfg["out_planes"],
            expansion=cfg["expansion"], stride=cfg["stride"]))

        Ho = (cfg["H"] - 1) // cfg["stride"] + 1
        Wo = (cfg["W"] - 1) // cfg["stride"] + 1
        assert out.shape == ref.shape == (2, cfg["out_planes"], Ho, Wo), \
            f"config {i}: bad shape {out.shape} vs {ref.shape}"
        err = float(jnp.max(jnp.abs(out - ref)))
        assert err < cfg["tol"], f"config {i}: max abs err {err} >= {cfg['tol']}"

    print("KERNEL_OK")
</pallas_src>

<mosaic_0001>
module attributes {stable_mosaic.version = 11 : i64} {
  func.func @_block_kernel(%arg0: i32, %arg1: i32, %arg2: memref<1x16x16x4xf32, #tpu.memory_space<vmem>>, %arg3: memref<4x128xf32, #tpu.memory_space<vmem>>, %arg4: memref<1x128xf32, #tpu.memory_space<vmem>>, %arg5: memref<3x3x128xf32, #tpu.memory_space<vmem>>, %arg6: memref<1x128xf32, #tpu.memory_space<vmem>>, %arg7: memref<128x128xf32, #tpu.memory_space<vmem>>, %arg8: memref<1x128xf32, #tpu.memory_space<vmem>>, %arg9: memref<4x128xf32, #tpu.memory_space<vmem>>, %arg10: memref<1x128xf32, #tpu.memory_space<vmem>>, %arg11: memref<1x16x16x128xf32, #tpu.memory_space<vmem>>, %arg12: memref<18x18x128xf32, #tpu.memory_space<vmem>>) attributes {dimension_semantics = [#tpu.dimension_semantics<parallel>, #tpu.dimension_semantics<parallel>], iteration_bounds = array<i64: 2, 1>, scalar_prefetch = 0 : i64, scratch_operands = 1 : i64, tpu.core_type = #tpu.core_type<tc>, window_params = [{transform_indices = @transform_0, window_bounds = array<i64: 1, 16, 16, 4>}, {pipeline_mode = #tpu.pipeline_mode<synchronous>, transform_indices = @transform_1, window_bounds = array<i64: 4, 128>}, {pipeline_mode = #tpu.pipeline_mode<synchronous>, transform_indices = @transform_2, window_bounds = array<i64: 1, 128>}, {pipeline_mode = #tpu.pipeline_mode<synchronous>, transform_indices = @transform_3, window_bounds = array<i64: 3, 3, 128>}, {pipeline_mode = #tpu.pipeline_mode<synchronous>, transform_indices = @transform_4, window_bounds = array<i64: 1, 128>}, {pipeline_mode = #tpu.pipeline_mode<synchronous>, transform_indices = @transform_5, window_bounds = array<i64: 128, 128>}, {pipeline_mode = #tpu.pipeline_mode<synchronous>, transform_indices = @transform_6, window_bounds = array<i64: 1, 128>}, {pipeline_mode = #tpu.pipeline_mode<synchronous>, transform_indices = @transform_7, window_bounds = array<i64: 4, 128>}, {pipeline_mode = #tpu.pipeline_mode<synchronous>, transform_indices = @transform_8, window_bounds = array<i64: 1, 128>}, {transform_indices = @transform_9, window_bounds = array<i64: 1, 16, 16, 128>}]} {
    %c16_i32 = arith.constant 16 : i32
    %0 = arith.muli %arg1, %c16_i32 : i32
    %c1_i32 = arith.constant 1 : i32
    %1 = arith.muli %0, %c1_i32 : i32
    %c1_i32_0 = arith.constant 1 : i32
    %2 = arith.subi %1, %c1_i32_0 : i32
    %c0 = arith.constant 0 : index
    %c0_1 = arith.constant 0 : index
    %3 = vector.load %arg3[%c0, %c0_1] : memref<4x128xf32, #tpu.memory_space<vmem>>, vector<4x128xf32>
    %c0_2 = arith.constant 0 : index
    %c0_3 = arith.constant 0 : index
    %4 = vector.load %arg4[%c0_2, %c0_3] : memref<1x128xf32, #tpu.memory_space<vmem>>, vector<1x128xf32>
    %cst = arith.constant 0.000000e+00 : f32
    %5 = vector.broadcast %cst : f32 to vector<18x1x128xf32>
    %c0_4 = arith.constant 0 : index
    %c0_5 = arith.constant 0 : index
    %c0_6 = arith.constant 0 : index
    %6 = vector.load %arg12[%c0_4, %c0_5, %c0_6] : memref<18x18x128xf32, #tpu.memory_space<vmem>>, vector<18x1x128xf32>
    tpu.vector_store %arg12[%c0_4, %c0_5, %c0_6], %5 {strides = array<i32>} : memref<18x18x128xf32, #tpu.memory_space<vmem>>, vector<18x1x128xf32>,
    %c0_7 = arith.constant 0 : index
    %c17 = arith.constant 17 : index
    %c0_8 = arith.constant 0 : index
    %7 = vector.load %arg12[%c0_7, %c17, %c0_8] : memref<18x18x128xf32, #tpu.memory_space<vmem>>, vector<18x1x128xf32>
    tpu.vector_store %arg12[%c0_7, %c17, %c0_8], %5 {strides = array<i32>} : memref<18x18x128xf32, #tpu.memory_space<vmem>>, vector<18x1x128xf32>,
    %c1_i32_9 = arith.constant 1 : i32
    %8 = arith.muli %0, %c1_i32_9 : i32
    %c0_10 = arith.constant 0 : index
    %9 = arith.index_cast %8 : i32 to index
    %c0_11 = arith.constant 0 : index
    %c0_12 = arith.constant 0 : index
    %10 = vector.load %arg2[%c0_10, %9, %c0_11, %c0_12] : memref<1x16x16x4xf32, #tpu.memory_space<vmem>>, vector<1x16x16x4xf32>
    %11 = vector.shape_cast %10 : vector<1x16x16x4xf32> to vector<16x16x4xf32>
    %12 = vector.shape_cast %11 : vector<16x16x4xf32> to vector<256x4xf32>
    %cst_13 = arith.constant dense<0.000000e+00> : vector<256x128xf32>
    %13 = tpu.matmul %12, %3, %cst_13 {dimension_numbers = #tpu.dot_dimension_numbers<[1], [0], [0], [1], [0, 0, 1, 1], [], []>} : vector<256x4xf32>, vector<4x128xf32>, vector<256x128xf32> -> vector<256x128xf32>
    %14 = vector.broadcast %4 : vector<1x128xf32> to vector<256x128xf32>
    %15 = arith.addf %13, %14 : vector<256x128xf32>
    %cst_14 = arith.constant 0.000000e+00 : f32
    %16 = vector.broadcast %cst_14 : f32 to vector<256x128xf32>
    %17 = arith.maximumf %15, %16 : vector<256x128xf32>
    %18 = vector.shape_cast %17 : vector<256x128xf32> to vector<16x16x128xf32>
    %c1 = arith.constant 1 : index
    %c1_15 = arith.constant 1 : index
    %c0_16 = arith.constant 0 : index
    %19 = vector.load %arg12[%c1, %c1_15, %c0_16] : memref<18x18x128xf32, #tpu.memory_space<vmem>>, vector<16x16x128xf32>
    tpu.vector_store %arg12[%c1, %c1_15, %c0_16], %18 {strides = array<i32>} : memref<18x18x128xf32, #tpu.memory_space<vmem>>, vector<16x16x128xf32>,
    %cst_17 = arith.constant 0.000000e+00 : f32
    %20 = vector.broadcast %cst_17 : f32 to vector<1x18x128xf32>
    %c0_i32 = arith.constant 0 : i32
    %21 = arith.cmpi eq, %arg1, %c0_i32 : i32
    %22 = arith.extui %21 : i1 to i32
    %c0_i32_18 = arith.constant 0 : i32
    %23 = arith.cmpi ne, %22, %c0_i32_18 : i32
    scf.if %23 {
      %c0_74 = arith.constant 0 : index
      %c0_75 = arith.constant 0 : index
      %c0_76 = arith.constant 0 : index
      %122 = vector.load %arg12[%c0_74, %c0_75, %c0_76] : memref<18x18x128xf32, #tpu.memory_space<vmem>>, vector<1x18x128xf32>
      tpu.vector_store %arg12[%c0_74, %c0_75, %c0_76], %20 {strides = array<i32>} : memref<18x18x128xf32, #tpu.memory_space<vmem>>, vector<1x18x128xf32>,
    } else {
    }
    %c0_i32_19 = arith.constant 0 : i32
    %24 = arith.cmpi sgt, %arg1, %c0_i32_19 : i32
    %25 = arith.extui %24 : i1 to i32
    %c0_i32_20 = arith.constant 0 : i32
    %26 = arith.cmpi ne, %25, %c0_i32_20 : i32
    scf.if %26 {
      %c0_74 = arith.constant 0 : index
      %122 = arith.index_cast %2 : i32 to index
      %c0_75 = arith.constant 0 : index
      %c0_76 = arith.constant 0 : index
      %123 = vector.load %arg2[%c0_74, %122, %c0_75, %c0_76] : memref<1x16x16x4xf32, #tpu.memory_space<vmem>>, vector<1x1x16x4xf32>
      %124 = vector.shape_cast %123 : vector<1x1x16x4xf32> to vector<1x16x4xf32>
      %125 = vector.shape_cast %124 : vector<1x16x4xf32> to vector<16x4xf32>
      %cst_77 = arith.constant dense<0.000000e+00> : vector<16x128xf32>
      %126 = tpu.matmul %125, %3, %cst_77 {dimension_numbers = #tpu.dot_dimension_numbers<[1], [0], [0], [1], [0, 0, 1, 1], [], []>} : vector<16x4xf32>, vector<4x128xf32>, vector<16x128xf32> -> vector<16x128xf32>
      %127 = vector.broadcast %4 : vector<1x128xf32> to vector<16x128xf32>
      %128 = arith.addf %126, %127 : vector<16x128xf32>
      %cst_78 = arith.constant 0.000000e+00 : f32
      %129 = vector.broadcast %cst_78 : f32 to vector<16x128xf32>
      %130 = arith.maximumf %128, %129 : vector<16x128xf32>
      %131 = vector.shape_cast %130 : vector<16x128xf32> to vector<1x16x128xf32>
      %c0_79 = arith.constant 0 : index
      %c1_80 = arith.constant 1 : index
      %c0_81 = arith.constant 0 : index
      %132 = vector.load %arg12[%c0_79, %c1_80, %c0_81] : memref<18x18x128xf32, #tpu.memory_space<vmem>>, vector<1x16x128xf32>
      tpu.vector_store %arg12[%c0_79, %c1_80, %c0_81], %131 {strides = array<i32>} : memref<18x18x128xf32, #tpu.memory_space<vmem>>, vector<1x16x128xf32>,
    } else {
    }
    %c0_i32_21 = arith.constant 0 : i32
    %27 = arith.cmpi eq, %arg1, %c0_i32_21 : i32
    %28 = arith.extui %27 : i1 to i32
    %c0_i32_22 = arith.constant 0 : i32
    %29 = arith.cmpi ne, %28, %c0_i32_22 : i32
    scf.if %29 {
      %c17_74 = arith.constant 17 : index
      %c0_75 = arith.constant 0 : index
      %c0_76 = arith.constant 0 : index
      %122 = vector.load %arg12[%c17_74, %c0_75, %c0_76] : memref<18x18x128xf32, #tpu.memory_space<vmem>>, vector<1x18x128xf32>
      tpu.vector_store %arg12[%c17_74, %c0_75, %c0_76], %20 {strides = array<i32>} : memref<18x18x128xf32, #tpu.memory_space<vmem>>, vector<1x18x128xf32>,
    } else {
    }
    %c0_i32_23 = arith.constant 0 : i32
    %30 = arith.cmpi slt, %arg1, %c0_i32_23 : i32
    %31 = arith.extui %30 : i1 to i32
    %c0_i32_24 = arith.constant 0 : i32
    %32 = arith.cmpi ne, %31, %c0_i32_24 : i32
    scf.if %32 {
      %c18_i32 = arith.constant 18 : i32
      %122 = arith.addi %2, %c18_i32 : i32
      %c1_i32_74 = arith.constant 1 : i32
      %123 = arith.subi %122, %c1_i32_74 : i32
      %c0_75 = arith.constant 0 : index
      %124 = arith.index_cast %123 : i32 to index
      %c0_76 = arith.constant 0 : index
      %c0_77 = arith.constant 0 : index
      %125 = vector.load %arg2[%c0_75, %124, %c0_76, %c0_77] : memref<1x16x16x4xf32, #tpu.memory_space<vmem>>, vector<1x1x16x4xf32>
      %126 = vector.shape_cast %125 : vector<1x1x16x4xf32> to vector<1x16x4xf32>
      %127 = vector.shape_cast %126 : vector<1x16x4xf32> to vector<16x4xf32>
      %cst_78 = arith.constant dense<0.000000e+00> : vector<16x128xf32>
      %128 = tpu.matmul %127, %3, %cst_78 {dimension_numbers = #tpu.dot_dimension_numbers<[1], [0], [0], [1], [0, 0, 1, 1], [], []>} : vector<16x4xf32>, vector<4x128xf32>, vector<16x128xf32> -> vector<16x128xf32>
      %129 = vector.broadcast %4 : vector<1x128xf32> to vector<16x128xf32>
      %130 = arith.addf %128, %129 : vector<16x128xf32>
      %cst_79 = arith.constant 0.000000e+00 : f32
      %131 = vector.broadcast %cst_79 : f32 to vector<16x128xf32>
      %132 = arith.maximumf %130, %131 : vector<16x128xf32>
      %133 = vector.shape_cast %132 : vector<16x128xf32> to vector<1x16x128xf32>
      %c17_80 = arith.constant 17 : index
      %c1_81 = arith.constant 1 : index
      %c0_82 = arith.constant 0 : index
      %134 = vector.load %arg12[%c17_80, %c1_81, %c0_82] : memref<18x18x128xf32, #tpu.memory_space<vmem>>, vector<1x16x128xf32>
      tpu.vector_store %arg12[%c17_80, %c1_81, %c0_82], %133 {strides = array<i32>} : memref<18x18x128xf32, #tpu.memory_space<vmem>>, vector<1x16x128xf32>,
    } else {
    }
    %c0_25 = arith.constant 0 : index
    %c0_26 = arith.constant 0 : index
    %c0_27 = arith.constant 0 : index
    %33 = vector.load %arg5[%c0_25, %c0_26, %c0_27] : memref<3x3x128xf32, #tpu.memory_space<vmem>>, vector<3x3x128xf32>
    %c0_28 = arith.constant 0 : index
    %c0_29 = arith.constant 0 : index
    %34 = vector.load %arg6[%c0_28, %c0_29] : memref<1x128xf32, #tpu.memory_space<vmem>>, vector<1x128xf32>
    %c0_30 = arith.constant 0 : index
    %c0_31 = arith.constant 0 : index
    %c0_32 = arith.constant 0 : index
    %35 = vector.load %arg12[%c0_30, %c0_31, %c0_32] : memref<18x18x128xf32, #tpu.memory_space<vmem>>, vector<16x16x128xf32>
    %36 = vector.extract_strided_slice %33 {offsets = [0, 0, 0], sizes = [1, 1, 128], strides = [1, 1, 1]} : vector<3x3x128xf32> to vector<1x1x128xf32>
    %37 = vector.shape_cast %36 : vector<1x1x128xf32> to vector<128xf32>
    %38 = vector.shape_cast %37 : vector<128xf32> to vector<1x1x128xf32>
    %39 = vector.broadcast %38 : vector<1x1x128xf32> to vector<16x16x128xf32>
    %40 = arith.mulf %35, %39 : vector<16x16x128xf32>
    %c0_33 = arith.constant 0 : index
    %c1_34 = arith.constant 1 : index
    %c0_35 = arith.constant 0 : index
    %41 = vector.load %arg12[%c0_33, %c1_34, %c0_35] : memref<18x18x128xf32, #tpu.memory_space<vmem>>, vector<16x16x128xf32>
    %42 = vector.extract_strided_slice %33 {offsets = [0, 1, 0], sizes = [1, 1, 128], strides = [1, 1, 1]} : vector<3x3x128xf32> to vector<1x1x128xf32>
    %43 = vector.shape_cast %42 : vector<1x1x128xf32> to vector<128xf32>
    %44 = vector.shape_cast %43 : vector<128xf32> to vector<1x1x128xf32>
    %45 = vector.broadcast %44 : vector<1x1x128xf32> to vector<16x16x128xf32>
    %46 = arith.mulf %41, %45 : vector<16x16x128xf32>
    %47 = arith.addf %40, %46 : vector<16x16x128xf32>
    %c0_36 = arith.constant 0 : index
    %c2 = arith.constant 2 : index
    %c0_37 = arith.constant 0 : index
    %48 = vector.load %arg12[%c0_36, %c2, %c0_37] : memref<18x18x128xf32, #tpu.memory_space<vmem>>, vector<16x16x128xf32>
    %49 = vector.extract_strided_slice %33 {offsets = [0, 2, 0], sizes = [1, 1, 128], strides = [1, 1, 1]} : vector<3x3x128xf32> to vector<1x1x128xf32>
    %50 = vector.shape_cast %49 : vector<1x1x128xf32> to vector<128xf32>
    %51 = vector.shape_cast %50 : vector<128xf32> to vector<1x1x128xf32>
    %52 = vector.broadcast %51 : vector<1x1x128xf32> to vector<16x16x128xf32>
    %53 = arith.mulf %48, %52 : vector<16x16x128xf32>
    %54 = arith.addf %47, %53 : vector<16x16x128xf32>
    %c1_38 = arith.constant 1 : index
    %c0_39 = arith.constant 0 : index
    %c0_40 = arith.constant 0 : index
    %55 = vector.load %arg12[%c1_38, %c0_39, %c0_40] : memref<18x18x128xf32, #tpu.memory_space<vmem>>, vector<16x16x128xf32>
    %56 = vector.extract_strided_slice %33 {offsets = [1, 0, 0], sizes = [1, 1, 128], strides = [1, 1, 1]} : vector<3x3x128xf32> to vector<1x1x128xf32>
    %57 = vector.shape_cast %56 : vector<1x1x128xf32> to vector<128xf32>
    %58 = vector.shape_cast %57 : vector<128xf32> to vector<1x1x128xf32>
    %59 = vector.broadcast %58 : vector<1x1x128xf32> to vector<16x16x128xf32>
    %60 = arith.mulf %55, %59 : vector<16x16x128xf32>
    %61 = arith.addf %54, %60 : vector<16x16x128xf32>
    %c1_41 = arith.constant 1 : index
    %c1_42 = arith.constant 1 : index
    %c0_43 = arith.constant 0 : index
    %62 = vector.load %arg12[%c1_41, %c1_42, %c0_43] : memref<18x18x128xf32, #tpu.memory_space<vmem>>, vector<16x16x128xf32>
    %63 = vector.extract_strided_slice %33 {offsets = [1, 1, 0], sizes = [1, 1, 128], strides = [1, 1, 1]} : vector<3x3x128xf32> to vector<1x1x128xf32>
    %64 = vector.shape_cast %63 : vector<1x1x128xf32> to vector<128xf32>
    %65 = vector.shape_cast %64 : vector<128xf32> to vector<1x1x128xf32>
    %66 = vector.broadcast %65 : vector<1x1x128xf32> to vector<16x16x128xf32>
    %67 = arith.mulf %62, %66 : vector<16x16x128xf32>
    %68 = arith.addf %61, %67 : vector<16x16x128xf32>
    %c1_44 = arith.constant 1 : index
    %c2_45 = arith.constant 2 : index
    %c0_46 = arith.constant 0 : index
    %69 = vector.load %arg12[%c1_44, %c2_45, %c0_46] : memref<18x18x128xf32, #tpu.memory_space<vmem>>, vector<16x16x128xf32>
    %70 = vector.extract_strided_slice %33 {offsets = [1, 2, 0], sizes = [1, 1, 128], strides = [1, 1, 1]} : vector<3x3x128xf32> to vector<1x1x128xf32>
    %71 = vector.shape_cast %70 : vector<1x1x128xf32> to vector<128xf32>
    %72 = vector.shape_cast %71 : vector<128xf32> to vector<1x1x128xf32>
    %73 = vector.broadcast %72 : vector<1x1x128xf32> to vector<16x16x128xf32>
    %74 = arith.mulf %69, %73 : vector<16x16x128xf32>
    %75 = arith.addf %68, %74 : vector<16x16x128xf32>
    %c2_47 = arith.constant 2 : index
    %c0_48 = arith.constant 0 : index
    %c0_49 = arith.constant 0 : index
    %76 = vector.load %arg12[%c2_47, %c0_48, %c0_49] : memref<18x18x128xf32, #tpu.memory_space<vmem>>, vector<16x16x128xf32>
    %77 = vector.extract_strided_slice %33 {offsets = [2, 0, 0], sizes = [1, 1, 128], strides = [1, 1, 1]} : vector<3x3x128xf32> to vector<1x1x128xf32>
    %78 = vector.shape_cast %77 : vector<1x1x128xf32> to vector<128xf32>
    %79 = vector.shape_cast %78 : vector<128xf32> to vector<1x1x128xf32>
    %80 = vector.broadcast %79 : vector<1x1x128xf32> to vector<16x16x128xf32>
    %81 = arith.mulf %76, %80 : vector<16x16x128xf32>
    %82 = arith.addf %75, %81 : vector<16x16x128xf32>
    %c2_50 = arith.constant 2 : index
    %c1_51 = arith.constant 1 : index
    %c0_52 = arith.constant 0 : index
    %83 = vector.load %arg12[%c2_50, %c1_51, %c0_52] : memref<18x18x128xf32, #tpu.memory_space<vmem>>, vector<16x16x128xf32>
    %84 = vector.extract_strided_slice %33 {offsets = [2, 1, 0], sizes = [1, 1, 128], strides = [1, 1, 1]} : vector<3x3x128xf32> to vector<1x1x128xf32>
    %85 = vector.shape_cast %84 : vector<1x1x128xf32> to vector<128xf32>
    %86 = vector.shape_cast %85 : vector<128xf32> to vector<1x1x128xf32>
    %87 = vector.broadcast %86 : vector<1x1x128xf32> to vector<16x16x128xf32>
    %88 = arith.mulf %83, %87 : vector<16x16x128xf32>
    %89 = arith.addf %82, %88 : vector<16x16x128xf32>
    %c2_53 = arith.constant 2 : index
    %c2_54 = arith.constant 2 : index
    %c0_55 = arith.constant 0 : index
    %90 = vector.load %arg12[%c2_53, %c2_54, %c0_55] : memref<18x18x128xf32, #tpu.memory_space<vmem>>, vector<16x16x128xf32>
    %91 = vector.extract_strided_slice %33 {offsets = [2, 2, 0], sizes = [1, 1, 128], strides = [1, 1, 1]} : vector<3x3x128xf32> to vector<1x1x128xf32>
    %92 = vector.shape_cast %91 : vector<1x1x128xf32> to vector<128xf32>
    %93 = vector.shape_cast %92 : vector<128xf32> to vector<1x1x128xf32>
    %94 = vector.broadcast %93 : vector<1x1x128xf32> to vector<16x16x128xf32>
    %95 = arith.mulf %90, %94 : vector<16x16x128xf32>
    %96 = arith.addf %89, %95 : vector<16x16x128xf32>
    %97 = vector.shape_cast %34 : vector<1x128xf32> to vector<1x1x128xf32>
    %98 = vector.broadcast %97 : vector<1x1x128xf32> to vector<16x16x128xf32>
    %99 = arith.addf %96, %98 : vector<16x16x128xf32>
    %cst_56 = arith.constant 0.000000e+00 : f32
    %100 = vector.broadcast %cst_56 : f32 to vector<16x16x128xf32>
    %101 = arith.maximumf %99, %100 : vector<16x16x128xf32>
    %c0_57 = arith.constant 0 : index
    %c0_58 = arith.constant 0 : index
    %102 = vector.load %arg7[%c0_57, %c0_58] : memref<128x128xf32, #tpu.memory_space<vmem>>, vector<128x128xf32>
    %c0_59 = arith.constant 0 : index
    %c0_60 = arith.constant 0 : index
    %103 = vector.load %arg8[%c0_59, %c0_60] : memref<1x128xf32, #tpu.memory_space<vmem>>, vector<1x128xf32>
    %104 = vector.shape_cast %101 : vector<16x16x128xf32> to vector<256x128xf32>
    %cst_61 = arith.constant dense<0.000000e+00> : vector<256x128xf32>
    %105 = tpu.matmul %104, %102, %cst_61 {dimension_numbers = #tpu.dot_dimension_numbers<[1], [0], [0], [1], [0, 0, 1, 1], [], []>} : vector<256x128xf32>, vector<128x128xf32>, vector<256x128xf32> -> vector<256x128xf32>
    %106 = vector.broadcast %103 : vector<1x128xf32> to vector<256x128xf32>
    %107 = arith.addf %105, %106 : vector<256x128xf32>
    %c0_62 = arith.constant 0 : index
    %c0_63 = arith.constant 0 : index
    %108 = vector.load %arg9[%c0_62, %c0_63] : memref<4x128xf32, #tpu.memory_space<vmem>>, vector<4x128xf32>
    %c0_64 = arith.constant 0 : index
    %c0_65 = arith.constant 0 : index
    %109 = vector.load %arg10[%c0_64, %c0_65] : memref<1x128xf32, #tpu.memory_space<vmem>>, vector<1x128xf32>
    %c0_66 = arith.constant 0 : index
    %110 = arith.index_cast %0 : i32 to index
    %c0_67 = arith.constant 0 : index
    %c0_68 = arith.constant 0 : index
    %111 = vector.load %arg2[%c0_66, %110, %c0_67, %c0_68] : memref<1x16x16x4xf32, #tpu.memory_space<vmem>>, vector<1x16x16x4xf32>
    %112 = vector.shape_cast %111 : vector<1x16x16x4xf32> to vector<16x16x4xf32>
    %113 = vector.shape_cast %112 : vector<16x16x4xf32> to vector<256x4xf32>
    %cst_69 = arith.constant dense<0.000000e+00> : vector<256x128xf32>
    %114 = tpu.matmul %113, %108, %cst_69 {dimension_numbers = #tpu.dot_dimension_numbers<[1], [0], [0], [1], [0, 0, 1, 1], [], []>} : vector<256x4xf32>, vector<4x128xf32>, vector<256x128xf32> -> vector<256x128xf32>
    %115 = arith.addf %107, %114 : vector<256x128xf32>
    %116 = vector.broadcast %109 : vector<1x128xf32> to vector<256x128xf32>
    %117 = arith.addf %115, %116 : vector<256x128xf32>
    %118 = vector.shape_cast %117 : vector<256x128xf32> to vector<16x16x128xf32>
    %c0_70 = arith.constant 0 : index
    %c0_71 = arith.constant 0 : index
    %c0_72 = arith.constant 0 : index
    %c0_73 = arith.constant 0 : index
    %119 = vector.load %arg11[%c0_70, %c0_71, %c0_72, %c0_73] : memref<1x16x16x128xf32, #tpu.memory_space<vmem>>, vector<1x16x16x128xf32>
    %120 = vector.shape_cast %119 : vector<1x16x16x128xf32> to vector<16x16x128xf32>
    %121 = vector.shape_cast %118 : vector<16x16x128xf32> to vector<1x16x16x128xf32>
    tpu.vector_store %arg11[%c0_70, %c0_71, %c0_72, %c0_73], %121 {strides = array<i32>} : memref<1x16x16x128xf32, #tpu.memory_space<vmem>>, vector<1x16x16x128xf32>,
    return
  }
  func.func @transform_0(%arg0: i32, %arg1: i32) -> (i32, i32, i32, i32) {
    %c0_i32 = arith.constant 0 : i32
    %c0_i32_0 = arith.constant 0 : i32
    %c0_i32_1 = arith.constant 0 : i32
    %c0_i32_2 = arith.constant 0 : i32
    return %arg0, %c0_i32, %c0_i32_0, %c0_i32_1 : i32, i32, i32, i32
  }
  func.func @transform_1(%arg0: i32, %arg1: i32) -> (i32, i32) {
    %c0_i32 = arith.constant 0 : i32
    %c0_i32_0 = arith.constant 0 : i32
    %c0_i32_1 = arith.constant 0 : i32
    return %c0_i32, %c0_i32_0 : i32, i32
  }
  func.func @transform_2(%arg0: i32, %arg1: i32) -> (i32, i32) {
    %c0_i32 = arith.constant 0 : i32
    %c0_i32_0 = arith.constant 0 : i32
    %c0_i32_1 = arith.constant 0 : i32
    return %c0_i32, %c0_i32_0 : i32, i32
  }
  func.func @transform_3(%arg0: i32, %arg1: i32) -> (i32, i32, i32) {
    %c0_i32 = arith.constant 0 : i32
    %c0_i32_0 = arith.constant 0 : i32
    %c0_i32_1 = arith.constant 0 : i32
    %c0_i32_2 = arith.constant 0 : i32
    return %c0_i32, %c0_i32_0, %c0_i32_1 : i32, i32, i32
  }
  func.func @transform_4(%arg0: i32, %arg1: i32) -> (i32, i32) {
    %c0_i32 = arith.constant 0 : i32
    %c0_i32_0 = arith.constant 0 : i32
    %c0_i32_1 = arith.constant 0 : i32
    return %c0_i32, %c0_i32_0 : i32, i32
  }
  func.func @transform_5(%arg0: i32, %arg1: i32) -> (i32, i32) {
    %c0_i32 = arith.constant 0 : i32
    %c0_i32_0 = arith.constant 0 : i32
    %c0_i32_1 = arith.constant 0 : i32
    return %c0_i32, %c0_i32_0 : i32, i32
  }
  func.func @transform_6(%arg0: i32, %arg1: i32) -> (i32, i32) {
    %c0_i32 = arith.constant 0 : i32
    %c0_i32_0 = arith.constant 0 : i32
    %c0_i32_1 = arith.constant 0 : i32
    return %c0_i32, %c0_i32_0 : i32, i32
  }
  func.func @transform_7(%arg0: i32, %arg1: i32) -> (i32, i32) {
    %c0_i32 = arith.constant 0 : i32
    %c0_i32_0 = arith.constant 0 : i32
    %c0_i32_1 = arith.constant 0 : i32
    return %c0_i32, %c0_i32_0 : i32, i32
  }
  func.func @transform_8(%arg0: i32, %arg1: i32) -> (i32, i32) {
    %c0_i32 = arith.constant 0 : i32
    %c0_i32_0 = arith.constant 0 : i32
    %c0_i32_1 = arith.constant 0 : i32
    return %c0_i32, %c0_i32_0 : i32, i32
  }
  func.func @transform_9(%arg0: i32, %arg1: i32) -> (i32, i32, i32, i32) {
    %c0_i32 = arith.constant 0 : i32
    %c0_i32_0 = arith.constant 0 : i32
    %c0_i32_1 = arith.constant 0 : i32
    return %arg0, %arg1, %c0_i32, %c0_i32_0 : i32, i32, i32, i32
  }
}

</mosaic_0001>

<llo_original>
// kernel: block_forward.1
$region0: #{block_forward.1}
  #allocation0 [shape = 'u32[]', space=smem, size = 0x4, offset = 0x4, fixed_abs, tag = 'smem constant byte address 0x4 - core index']
  #allocation1 [shape = 'u32[144,128]{1,0:T(1,128)}', space=vmem, size = 0x12000, scoped, tag = 'internal scratch']
  #allocation2 [shape = 'f32[18,18,128]{2,1,0:T(8,128)}', space=vmem, size = 0x36000, scoped, tag = 'scratch operand']
  %s0 = inlined_call_operand.vmem [shape: f32[2,16,16,4], index: 0, kind: input, shape index: {}]
  %s1 = inlined_call_operand.vmem [shape: f32[4,128], index: 1, kind: input, shape index: {}]
  %s2 = inlined_call_operand.vmem [shape: f32[1,128], index: 2, kind: input, shape index: {}]
  %s3 = inlined_call_operand.vmem [shape: f32[3,3,128], index: 3, kind: input, shape index: {}]
  %s4 = inlined_call_operand.vmem [shape: f32[1,128], index: 4, kind: input, shape index: {}]
  %s5 = inlined_call_operand.vmem [shape: f32[128,128], index: 5, kind: input, shape index: {}]
  %s6 = inlined_call_operand.vmem [shape: f32[1,128], index: 6, kind: input, shape index: {}]
  %s7 = inlined_call_operand.vmem [shape: f32[4,128], index: 7, kind: input, shape index: {}]
  %s8 = inlined_call_operand.vmem [shape: f32[1,128], index: 8, kind: input, shape index: {}]
  %s9 = inlined_call_operand.vmem [shape: f32[2,16,16,128], index: 9, kind: output, shape index: {}]
  %s10 = sld [smem:[#allocation0]]
  $region85: #{block_forward.1} parent=0
    _
  %s12 = ssub.s32 1, %s10
  %s13 = scalar_select 0, %s12, %s10
  loop: start=0, step=1, limit=4
  $region2: #{block_forward.1} parent=0 // loop_pre_header
    _
  $region3: #{block_forward.1} parent=0 // loop_header
    %s15 = sphi 0, %s19
    %p16 = scmp.ge.s32.totalorder %s15, 4
    %s22 = sphi 0, %s34
    %s23 = sphi 0, %s30
    %s24 = sphi 0, %s22
    %s25 = sphi 0, %s23
    %s26 = sphi 0, %s24
    %s27 = sphi 0, %s25
    %s37 = sphi 0, %s39
    %s40 = sphi 0, %s37
    %s41 = sphi 0, %s40
    %s57 = sphi 0, %s41
    %s61 = sphi 0, %s61
    %s63 = sphi 0, %s61
    %s64 = sphi 0, %s63
    %s78 = sphi 0, %s64
    %s82 = sphi 0, %s82
    %s84 = sphi 0, %s82
    %s85 = sphi 0, %s84
    %s99 = sphi 0, %s85
    %s103 = sphi 0, %s103
    %s105 = sphi 0, %s103
    %s106 = sphi 0, %s105
    %s120 = sphi 0, %s106
    %s124 = sphi 0, %s124
    %s126 = sphi 0, %s124
    %s127 = sphi 0, %s126
    %s141 = sphi 0, %s127
    %s145 = sphi 0, %s145
    %s147 = sphi 0, %s145
    %s148 = sphi 0, %s147
    %s162 = sphi 0, %s148
    %s166 = sphi 0, %s166
    %s168 = sphi 0, %s166
    %s169 = sphi 0, %s168
    %s183 = sphi 0, %s169
    %s187 = sphi 0, %s187
    %s189 = sphi 0, %s187
    %s190 = sphi 0, %s189
    %s204 = sphi 0, %s190
    %s208 = sphi 0, %s208
    %s210 = sphi 0, %s208
    %s211 = sphi 0, %s210
    %s225 = sphi 0, %s211
    %s233 = sphi 0, %s235
    %s236 = sphi 0, %s233
    %s237 = sphi 0, %s236
    %s253 = sphi 0, %s237
  $region4: #{block_forward.1} parent=0 // loop_header_branch
    %18 = sbr.rel (%p16) target = $region8
  $region5: #{block_forward.1} parent=0 // loop_body
    %s20 = ssub.s32 %s15, 1
    %s21 = ssub.s32 %s15, 2
    %s28 = sadd.s32 1, %s23
    %p29 = scmp.ge.s32.totalorder %s28, 1
    %s30 = scalar_select %p29, 0, %s28
    %s31 = sadd.s32 1, %s22
    %s32 = scalar_select %p29, %s31, %s22
    %p33 = scmp.ge.s32.totalorder %s32, 2
    %s34 = scalar_select %p33, 0, %s32
    %s35 = ssub.s32 %s22, %s34
    %p36 = scmp.eq.s32.totalorder %s35, 0
    %s38 = sadd.s32 %s37, 1
    %s39 = scalar_select %p36, %s37, %s38
    %p42 = pneg %p36
    %p43 = scmp.eq.s32.totalorder %s15, 1
    %p44 = por %p42, %p43
    %p45 = scmp.ne.s32.totalorder %s37, %s40
    %p46 = scmp.eq.s32.totalorder %s15, 0
    %p47 = por %p45, %p46
    %p48 = scmp.ne.s32.totalorder %s37, %s40
    %p49 = scmp.eq.s32.totalorder %s20, 1
    %p50 = por %p48, %p49
    %p51 = scmp.ne.s32.totalorder %s40, %s41
    %p52 = scmp.eq.s32.totalorder %s20, 0
    %p53 = por %p51, %p52
    %p54 = scmp.ne.s32.totalorder %s40, %s41
    %p55 = scmp.eq.s32.totalorder %s21, 1
    %p56 = por %p54, %p55
    %p58 = scmp.ne.s32.totalorder %s41, %s57
    %p59 = scmp.eq.s32.totalorder %s21, 0
    %p60 = por %p58, %p59
    %s62 = sadd.s32 %s61, 1
    %p65 = scmp.eq.s32.totalorder %s15, 1
    %p66 = scmp.ne.s32.totalorder %s61, %s63
    %p67 = scmp.eq.s32.totalorder %s15, 0
    %p68 = por %p66, %p67
    %p69 = scmp.ne.s32.totalorder %s61, %s63
    %p70 = scmp.eq.s32.totalorder %s20, 1
    %p71 = por %p69, %p70
    %p72 = scmp.ne.s32.totalorder %s63, %s64
    %p73 = scmp.eq.s32.totalorder %s20, 0
    %p74 = por %p72, %p73
    %p75 = scmp.ne.s32.totalorder %s63, %s64
    %p76 = scmp.eq.s32.totalorder %s21, 1
    %p77 = por %p75, %p76
    %p79 = scmp.ne.s32.totalorder %s64, %s78
    %p80 = scmp.eq.s32.totalorder %s21, 0
    %p81 = por %p79, %p80
    %s83 = sadd.s32 %s82, 1
    %p86 = scmp.eq.s32.totalorder %s15, 1
    %p87 = scmp.ne.s32.totalorder %s82, %s84
    %p88 = scmp.eq.s32.totalorder %s15, 0
    %p89 = por %p87, %p88
    %p90 = scmp.ne.s32.totalorder %s82, %s84
    %p91 = scmp.eq.s32.totalorder %s20, 1
    %p92 = por %p90, %p91
    %p93 = scmp.ne.s32.totalorder %s84, %s85
    %p94 = scmp.eq.s32.totalorder %s20, 0
    %p95 = por %p93, %p94
    %p96 = scmp.ne.s32.totalorder %s84, %s85
    %p97 = scmp.eq.s32.totalorder %s21, 1
    %p98 = por %p96, %p97
    %p100 = scmp.ne.s32.totalorder %s85, %s99
    %p101 = scmp.eq.s32.totalorder %s21, 0
    %p102 = por %p100, %p101
    %s104 = sadd.s32 %s103, 1
    %p107 = scmp.eq.s32.totalorder %s15, 1
    %p108 = scmp.ne.s32.totalorder %s103, %s105
    %p109 = scmp.eq.s32.totalorder %s15, 0
    %p110 = por %p108, %p109
    %p111 = scmp.ne.s32.totalorder %s103, %s105
    %p112 = scmp.eq.s32.totalorder %s20, 1
    %p113 = por %p111, %p112
    %p114 = scmp.ne.s32.totalorder %s105, %s106
    %p115 = scmp.eq.s32.totalorder %s20, 0
    %p116 = por %p114, %p115
    %p117 = scmp.ne.s32.totalorder %s105, %s106
    %p118 = scmp.eq.s32.totalorder %s21, 1
    %p119 = por %p117, %p118
    %p121 = scmp.ne.s32.totalorder %s106, %s120
    %p122 = scmp.eq.s32.totalorder %s21, 0
    %p123 = por %p121, %p122
    %s125 = sadd.s32 %s124, 1
    %p128 = scmp.eq.s32.totalorder %s15, 1
    %p129 = scmp.ne.s32.totalorder %s124, %s126
    %p130 = scmp.eq.s32.totalorder %s15, 0
    %p131 = por %p129, %p130
    %p132 = scmp.ne.s32.totalorder %s124, %s126
    %p133 = scmp.eq.s32.totalorder %s20, 1
    %p134 = por %p132, %p133
    %p135 = scmp.ne.s32.totalorder %s126, %s127
    %p136 = scmp.eq.s32.totalorder %s20, 0
    %p137 = por %p135, %p136
    %p138 = scmp.ne.s32.totalorder %s126, %s127
    %p139 = scmp.eq.s32.totalorder %s21, 1
    %p140 = por %p138, %p139
    %p142 = scmp.ne.s32.totalorder %s127, %s141
    %p143 = scmp.eq.s32.totalorder %s21, 0
    %p144 = por %p142, %p143
    %s146 = sadd.s32 %s145, 1
    %p149 = scmp.eq.s32.totalorder %s15, 1
    %p150 = scmp.ne.s32.totalorder %s145, %s147
    %p151 = scmp.eq.s32.totalorder %s15, 0
    %p152 = por %p150, %p151
    %p153 = scmp.ne.s32.totalorder %s145, %s147
    %p154 = scmp.eq.s32.totalorder %s20, 1
    %p155 = por %p153, %p154
    %p156 = scmp.ne.s32.totalorder %s147, %s148
    %p157 = scmp.eq.s32.totalorder %s20, 0
    %p158 = por %p156, %p157
    %p159 = scmp.ne.s32.totalorder %s147, %s148
    %p160 = scmp.eq.s32.totalorder %s21, 1
    %p161 = por %p159, %p160
    %p163 = scmp.ne.s32.totalorder %s148, %s162
    %p164 = scmp.eq.s32.totalorder %s21, 0
    %p165 = por %p163, %p164
    %s167 = sadd.s32 %s166, 1
    %p170 = scmp.eq.s32.totalorder %s15, 1
    %p171 = scmp.ne.s32.totalorder %s166, %s168
    %p172 = scmp.eq.s32.totalorder %s15, 0
    %p173 = por %p171, %p172
    %p174 = scmp.ne.s32.totalorder %s166, %s168
    %p175 = scmp.eq.s32.totalorder %s20, 1
    %p176 = por %p174, %p175
    %p177 = scmp.ne.s32.totalorder %s168, %s169
    %p178 = scmp.eq.s32.totalorder %s20, 0
    %p179 = por %p177, %p178
    %p180 = scmp.ne.s32.totalorder %s168, %s169
    %p181 = scmp.eq.s32.totalorder %s21, 1
    %p182 = por %p180, %p181
    %p184 = scmp.ne.s32.totalorder %s169, %s183
    %p185 = scmp.eq.s32.totalorder %s21, 0
    %p186 = por %p184, %p185
    %s188 = sadd.s32 %s187, 1
    %p191 = scmp.eq.s32.totalorder %s15, 1
    %p192 = scmp.ne.s32.totalorder %s187, %s189
    %p193 = scmp.eq.s32.totalorder %s15, 0
    %p194 = por %p192, %p193
    %p195 = scmp.ne.s32.totalorder %s187, %s189
    %p196 = scmp.eq.s32.totalorder %s20, 1
    %p197 = por %p195, %p196
    %p198 = scmp.ne.s32.totalorder %s189, %s190
    %p199 = scmp.eq.s32.totalorder %s20, 0
    %p200 = por %p198, %p199
    %p201 = scmp.ne.s32.totalorder %s189, %s190
    %p202 = scmp.eq.s32.totalorder %s21, 1
    %p203 = por %p201, %p202
    %p205 = scmp.ne.s32.totalorder %s190, %s204
    %p206 = scmp.eq.s32.totalorder %s21, 0
    %p207 = por %p205, %p206
    %s209 = sadd.s32 %s208, 1
    %p212 = scmp.eq.s32.totalorder %s15, 1
    %p213 = scmp.ne.s32.totalorder %s208, %s210
    %p214 = scmp.eq.s32.totalorder %s15, 0
    %p215 = por %p213, %p214
    %p216 = scmp.ne.s32.totalorder %s208, %s210
    %p217 = scmp.eq.s32.totalorder %s20, 1
    %p218 = por %p216, %p217
    %p219 = scmp.ne.s32.totalorder %s210, %s211
    %p220 = scmp.eq.s32.totalorder %s20, 0
    %p221 = por %p219, %p220
    %p222 = scmp.ne.s32.totalorder %s210, %s211
    %p223 = scmp.eq.s32.totalorder %s21, 1
    %p224 = por %p222, %p223
    %p226 = scmp.ne.s32.totalorder %s211, %s225
    %p227 = scmp.eq.s32.totalorder %s21, 0
    %p228 = por %p226, %p227
    %s229 = ssub.s32 %s22, %s34
    %s230 = ssub.s32 %s23, %s30
    %s231 = sor.u32 %s229, %s230
    %p232 = scmp.eq.s32.totalorder %s231, 0
    %s234 = sadd.s32 %s233, 1
    %s235 = scalar_select %p232, %s233, %s234
    %p238 = pneg %p232
    %p239 = scmp.eq.s32.totalorder %s15, 1
    %p240 = por %p238, %p239
    %p241 = scmp.ne.s32.totalorder %s233, %s236
    %p242 = scmp.eq.s32.totalorder %s15, 0
    %p243 = por %p241, %p242
    %p244 = scmp.ne.s32.totalorder %s233, %s236
    %p245 = scmp.eq.s32.totalorder %s20, 1
    %p246 = por %p244, %p245
    %p247 = scmp.ne.s32.totalorder %s236, %s237
    %p248 = scmp.eq.s32.totalorder %s20, 0
    %p249 = por %p247, %p248
    %p250 = scmp.ne.s32.totalorder %s236, %s237
    %p251 = scmp.eq.s32.totalorder %s21, 1
    %p252 = por %p250, %p251
    %p254 = scmp.ne.s32.totalorder %s237, %s253
    %p255 = scmp.eq.s32.totalorder %s21, 0
    %p256 = por %p254, %p255
    %p257 = scmp.le.s32.totalorder 1, %s15
    %p258 = scmp.lt.s32.totalorder %s15, 3
    %p259 = pnand %p257, %p258
    %p260 = pneg %p259
    // Predicated region
    $region9: #{block_forward.1} parent=5 // pred_check
      _
    $region10: #{block_forward.1} parent=5 // pred_check_branch
      %262 = sbr.rel (%p259) target = $region12
    $region11: #{block_forward.1} parent=5 // pred_region
      %s263 = ssub.s32 %s15, 1
      // Predicated region
      $region13: #{block_forward.1} parent=11 // pred_check
        %p264 = pneg %p74
      $region14: #{block_forward.1} parent=11 // pred_check_branch
        %266 = sbr.rel (%p264) target = $region16
      $region15: #{block_forward.1} parent=11 // pred_region
        _
      $region16: #{block_forward.1} parent=11 // pred_fallthru
        _
      // Predicated region
      $region17: #{block_forward.1} parent=11 // pred_check
        %p267 = pneg %p95
      $region18: #{block_forward.1} parent=11 // pred_check_branch
        %269 = sbr.rel (%p267) target = $region20
      $region19: #{block_forward.1} parent=11 // pred_region
        _
      $region20: #{block_forward.1} parent=11 // pred_fallthru
        _
      // Predicated region
      $region21: #{block_forward.1} parent=11 // pred_check
        %p270 = pneg %p116
      $region22: #{block_forward.1} parent=11 // pred_check_branch
        %272 = sbr.rel (%p270) target = $region24
      $region23: #{block_forward.1} parent=11 // pred_region
        _
      $region24: #{block_forward.1} parent=11 // pred_fallthru
        _
      // Predicated region
      $region25: #{block_forward.1} parent=11 // pred_check
        %p273 = pneg %p137
      $region26: #{block_forward.1} parent=11 // pred_check_branch
        %275 = sbr.rel (%p273) target = $region28
      $region27: #{block_forward.1} parent=11 // pred_region
        _
      $region28: #{block_forward.1} parent=11 // pred_fallthru
        _
      // Predicated region
      $region29: #{block_forward.1} parent=11 // pred_check
        %p276 = pneg %p158
      $region30: #{block_forward.1} parent=11 // pred_check_branch
        %278 = sbr.rel (%p276) target = $region32
      $region31: #{block_forward.1} parent=11 // pred_region
        _
      $region32: #{block_forward.1} parent=11 // pred_fallthru
        _
      // Predicated region
      $region33: #{block_forward.1} parent=11 // pred_check
        %p279 = pneg %p179
      $region34: #{block_forward.1} parent=11 // pred_check_branch
        %281 = sbr.rel (%p279) target = $region36
      $region35: #{block_forward.1} parent=11 // pred_region
        _
      $region36: #{block_forward.1} parent=11 // pred_fallthru
        _
      // Predicated region
      $region37: #{block_forward.1} parent=11 // pred_check
        %p282 = pneg %p200
      $region38: #{block_forward.1} parent=11 // pred_check_branch
        %284 = sbr.rel (%p282) target = $region40
      $region39: #{block_forward.1} parent=11 // pred_region
        _
      $region40: #{block_forward.1} parent=11 // pred_fallthru
        _
      // Predicated region
      $region41: #{block_forward.1} parent=11 // pred_check
        %p285 = pneg %p221
      $region42: #{block_forward.1} parent=11 // pred_check_branch
        %287 = sbr.rel (%p285) target = $region44
      $region43: #{block_forward.1} parent=11 // pred_region
        _
      $region44: #{block_forward.1} parent=11 // pred_fallthru
        _
    $region12: #{block_forward.1} parent=5 // pred_fallthru
      _
    %p288 = scmp.lt.s32.totalorder %s15, 2
    // Predicated region
    $region45: #{block_forward.1} parent=5 // pred_check
      %p289 = pneg %p288
    $region46: #{block_forward.1} parent=5 // pred_check_branch
      %291 = sbr.rel (%p289) target = $region48
    $region47: #{block_forward.1} parent=5 // pred_region
      // Predicated region
      $region49: #{block_forward.1} parent=47 // pred_check
        %p292 = pneg %p47
      $region50: #{block_forward.1} parent=47 // pred_check_branch
        %294 = sbr.rel (%p292) target = $region52
      $region51: #{block_forward.1} parent=47 // pred_region
        %p295 = scmp.lt.s32.totalorder %s22, 1
        %s296 = scalar_select %p295, %s22, 1
        %s297 = smul.addr %s296, 32
        %s298 = smul.addr %s297, 8
        %s299 = scalar_lea.vmem %s0, %s298
      $region52: #{block_forward.1} parent=47 // pred_fallthru
        _
    $region48: #{block_forward.1} parent=5 // pred_fallthru
      _
    %p300 = scmp.le.s32.totalorder 1, %s15
    %p301 = scmp.lt.s32.totalorder %s15, 3
    %p302 = pnand %p300, %p301
    %p303 = pneg %p302
    // Predicated region
    $region53: #{block_forward.1} parent=5 // pred_check
      _
    $region54: #{block_forward.1} parent=5 // pred_check_branch
      %305 = sbr.rel (%p302) target = $region56
    $region55: #{block_forward.1} parent=5 // pred_region
      %s306 = ssub.s32 %s15, 1
      %p307 = scmp.lt.s32.totalorder %s24, 1
      %s308 = scalar_select %p307, %s24, 1
      %s309 = smul.addr %s308, 32
      %s310 = smul.addr %s309, 8
      %s311 = scalar_lea.vmem %s0, %s310
      %p312 = pneg %p53
      %p313 = pneg %p50
      %p314 = pneg %p74
      %p315 = pneg %p71
      %p316 = pneg %p95
      %p317 = pneg %p92
      %p318 = pneg %p116
      %p319 = pneg %p113
      %p320 = pneg %p137
      %p321 = pneg %p134
      %p322 = pneg %p158
      %p323 = pneg %p155
      %p324 = pneg %p179
      %p325 = pneg %p176
      %p326 = pneg %p200
      %p327 = pneg %p197
      %p328 = pneg %p221
      %p329 = pneg %p218
      %p330 = pneg %p249
      %p331 = pneg %p246
      %s332 = smul.u32 16, %s25
      %p333 = scmp.lt.s32.totalorder %s24, 1
      %s334 = scalar_select %p333, %s24, 1
      %p335 = scmp.lt.s32.totalorder %s332, 15
      %s336 = scalar_select %p335, %s332, 15
      %s337 = smul.addr %s336, 2
      %s338 = smul.addr %s334, 32
      %s339 = sadd.s32 %s337, %s338
      %s340 = smul.addr %s339, 8
      %s341 = scalar_lea.vmem %s9, %s340
      %p342 = scmp.lt.s32.totalorder %s24, 1
      %s343 = scalar_select %p342, %s24, 1
      %s344 = smul.addr %s343, 32
      %s345 = smul.addr %s344, 8
      %s346 = scalar_lea.vmem %s0, %s345
      %s347 = smul.u32 16, %s25
      %p348 = scmp.lt.s32.totalorder %s24, 1
      %s349 = scalar_select %p348, %s24, 1
      %p350 = scmp.lt.s32.totalorder %s347, 15
      %s351 = scalar_select %p350, %s347, 15
      %s352 = smul.addr %s351, 2
      %s353 = smul.addr %s349, 32
      %s354 = sadd.s32 %s352, %s353
      %s355 = smul.addr %s354, 8
      %s356 = scalar_lea.vmem %s9, %s355
      %s357 = smul.u32 16, %s25
      %s358 = smul.u32 %s25, 16
      %s359 = ssub.s32 %s358, 1
      %v360 = vld [vmem:[%s1] sm:$0xf]
      %v361 = vld [vmem:[%s2] sm:$0x1]
      %362 = vst [vmem:[#allocation2] sm:$0x1] 0.0
      %363 = vst [vmem:[#allocation2 + $0x18] sm:$0x1] 0.0
      %364 = vst [vmem:[#allocation2 + $0x30] sm:$0x1] 0.0
      %365 = vst [vmem:[#allocation2 + $0x48] sm:$0x1] 0.0
      %366 = vst [vmem:[#allocation2 + $0x60] sm:$0x1] 0.0
      %367 = vst [vmem:[#allocation2 + $0x78] sm:$0x1] 0.0
      %368 = vst [vmem:[#allocation2 + $0x90] sm:$0x1] 0.0
      %369 = vst [vmem:[#allocation2 + $0xa8] sm:$0x1] 0.0
      %370 = vst [vmem:[#allocation2 + $0xc0] sm:$0x1] 0.0
      %371 = vst [vmem:[#allocation2 + $0xd8] sm:$0x1] 0.0
      %372 = vst [vmem:[#allocation2 + $0xf0] sm:$0x1] 0.0
      %373 = vst [vmem:[#allocation2 + $0x108] sm:$0x1] 0.0
      %374 = vst [vmem:[#allocation2 + $0x120] sm:$0x1] 0.0
      %375 = vst [vmem:[#allocation2 + $0x138] sm:$0x1] 0.0
      %376 = vst [vmem:[#allocation2 + $0x150] sm:$0x1] 0.0
      %377 = vst [vmem:[#allocation2 + $0x168] sm:$0x1] 0.0
      %378 = vst [vmem:[#allocation2 + $0x180] sm:$0x1] 0.0
      %379 = vst [vmem:[#allocation2 + $0x198] sm:$0x1] 0.0
      %380 = vst [vmem:[#allocation2 + $0x11] sm:$0x1] 0.0
      %381 = vst [vmem:[#allocation2 + $0x29] sm:$0x1] 0.0
      %382 = vst [vmem:[#allocation2 + $0x41] sm:$0x1] 0.0
      %383 = vst [vmem:[#allocation2 + $0x59] sm:$0x1] 0.0
      %384 = vst [vmem:[#allocation2 + $0x71] sm:$0x1] 0.0
      %385 = vst [vmem:[#allocation2 + $0x89] sm:$0x1] 0.0
      %386 = vst [vmem:[#allocation2 + $0xa1] sm:$0x1] 0.0
      %387 = vst [vmem:[#allocation2 + $0xb9] sm:$0x1] 0.0
      %388 = vst [vmem:[#allocation2 + $0xd1] sm:$0x1] 0.0
      %389 = vst [vmem:[#allocation2 + $0xe9] sm:$0x1] 0.0
      %390 = vst [vmem:[#allocation2 + $0x101] sm:$0x1] 0.0
      %391 = vst [vmem:[#allocation2 + $0x119] sm:$0x1] 0.0
      %392 = vst [vmem:[#allocation2 + $0x131] sm:$0x1] 0.0
      %393 = vst [vmem:[#allocation2 + $0x149] sm:$0x1] 0.0
      %394 = vst [vmem:[#allocation2 + $0x161] sm:$0x1] 0.0
      %395 = vst [vmem:[#allocation2 + $0x179] sm:$0x1] 0.0
      %396 = vst [vmem:[#allocation2 + $0x191] sm:$0x1] 0.0
      %397 = vst [vmem:[#allocation2 + $0x1a9] sm:$0x1] 0.0
      %s398 = smul.u32 %s358, 16
      %s399 = scalar_lea.vmem %s346, %s398
      %v400 = vld [vmem:[%s399] sm:$0xff]
      %v401 = vld [vmem:[%s399 + $0x8] sm:$0xff]
      %v402 = vld [vmem:[%s399 + $0x10] sm:$0xff]
      %v403 = vld [vmem:[%s399 + $0x18] sm:$0xff]
      %v404 = vld [vmem:[%s399 + $0x20] sm:$0xff]
      %v405 = vld [vmem:[%s399 + $0x28] sm:$0xff]
      %v406 = vld [vmem:[%s399 + $0x30] sm:$0xff]
      %v407 = vld [vmem:[%s399 + $0x38] sm:$0xff]
      %v408 = vld [vmem:[%s399 + $0x40] sm:$0xff]
      %v409 = vld [vmem:[%s399 + $0x48] sm:$0xff]
      %v410 = vld [vmem:[%s399 + $0x50] sm:$0xff]
      %v411 = vld [vmem:[%s399 + $0x58] sm:$0xff]
      %v412 = vld [vmem:[%s399 + $0x60] sm:$0xff]
      %v413 = vld [vmem:[%s399 + $0x68] sm:$0xff]
      %v414 = vld [vmem:[%s399 + $0x70] sm:$0xff]
      %v415 = vld [vmem:[%s399 + $0x78] sm:$0xff]
      %v416 = vld [vmem:[%s399 + $0x80] sm:$0xff]
      %v417 = vld [vmem:[%s399 + $0x88] sm:$0xff]
      %v418 = vld [vmem:[%s399 + $0x90] sm:$0xff]
      %v419 = vld [vmem:[%s399 + $0x98] sm:$0xff]
      %v420 = vld [vmem:[%s399 + $0xa0] sm:$0xff]
      %v421 = vld [vmem:[%s399 + $0xa8] sm:$0xff]
      %v422 = vld [vmem:[%s399 + $0xb0] sm:$0xff]
      %v423 = vld [vmem:[%s399 + $0xb8] sm:$0xff]
      %v424 = vld [vmem:[%s399 + $0xc0] sm:$0xff]
      %v425 = vld [vmem:[%s399 + $0xc8] sm:$0xff]
      %v426 = vld [vmem:[%s399 + $0xd0] sm:$0xff]
      %v427 = vld [vmem:[%s399 + $0xd8] sm:$0xff]
      %v428 = vld [vmem:[%s399 + $0xe0] sm:$0xff]
      %v429 = vld [vmem:[%s399 + $0xe8] sm:$0xff]
      %v430 = vld [vmem:[%s399 + $0xf0] sm:$0xff]
      %v431 = vld [vmem:[%s399 + $0xf8] sm:$0xff]
      %v433 = vlaneseq
      %v434 = vshrl.u32 %v433, 7
      %v435 = vsub.s32 0, %v434
      %v436 = vrot.slane %v361, %v435
      %vm438 = vcmask 31744
      %v440 = vsel %vm438, %v400, 0
      %v443 = vsel %vm438, %v401, 0
      %v446 = vsel %vm438, %v402, 0
      %v449 = vsel %vm438, %v403, 0
      %v452 = vsel %vm438, %v404, 0
      %v455 = vsel %vm438, %v405, 0
      %v458 = vsel %vm438, %v406, 0
      %v461 = vsel %vm438, %v407, 0
      %v464 = vsel %vm438, %v408, 0
      %v467 = vsel %vm438, %v409, 0
      %v470 = vsel %vm438, %v410, 0
      %v473 = vsel %vm438, %v411, 0
      %v476 = vsel %vm438, %v412, 0
      %v479 = vsel %vm438, %v413, 0
      %v482 = vsel %vm438, %v414, 0
      %v485 = vsel %vm438, %v415, 0
      %v488 = vsel %vm438, %v416, 0
      %v491 = vsel %vm438, %v417, 0
      %v494 = vsel %vm438, %v418, 0
      %v497 = vsel %vm438, %v419, 0
      %v500 = vsel %vm438, %v420, 0
      %v503 = vsel %vm438, %v421, 0
      %v506 = vsel %vm438, %v422, 0
      %v509 = vsel %vm438, %v423, 0
      %v512 = vsel %vm438, %v424, 0
      %v515 = vsel %vm438, %v425, 0
      %v518 = vsel %vm438, %v426, 0
      %v521 = vsel %vm438, %v427, 0
      %v524 = vsel %vm438, %v428, 0
      %v527 = vsel %vm438, %v429, 0
      %v530 = vsel %vm438, %v430, 0
      %v533 = vsel %vm438, %v431, 0
      %vm535 = vcmask 1043456
      %v537 = vsel %vm535, %v360, 0
      %539 = vmatprep.subr.mxu0 0.0
      %540 = vmatpush1.msra.mxu0 %v537
      %541 = vmatprep.subr.mxu0 0.0
      %542 = vmatpush1.msra.mxu0 0.0
      %543 = vmatprep.subr.mxu0 0.0
      %544 = vmatpush1.msra.mxu0 0.0
      %545 = vmatprep.subr.mxu0 0.0
      %546 = vmatpush1.msra.mxu0 0.0
      %547 = vmatprep.subr.mxu0 0.0
      %548 = vmatpush1.msra.mxu0 0.0
      %549 = vmatprep.subr.mxu0 0.0
      %550 = vmatpush1.msra.mxu0 0.0
      %551 = vmatprep.subr.mxu0 0.0
      %552 = vmatpush1.msra.mxu0 0.0
      %553 = vmatprep.subr.mxu0 0.0
      %554 = vmatpush1.msra.mxu0 0.0
      %555 = vmatprep.subr.mxu0 0.0
      %556 = vmatpush1.msra.mxu0 0.0
      %557 = vmatprep.subr.mxu0 0.0
      %558 = vmatpush1.msra.mxu0 0.0
      %559 = vmatprep.subr.mxu0 0.0
      %560 = vmatpush1.msra.mxu0 0.0
      %561 = vmatprep.subr.mxu0 0.0
      %562 = vmatpush1.msra.mxu0 0.0
      %563 = vmatprep.subr.mxu0 0.0
      %564 = vmatpush1.msra.mxu0 0.0
      %565 = vmatprep.subr.mxu0 0.0
      %566 = vmatpush1.msra.mxu0 0.0
      %567 = vmatprep.subr.mxu0 0.0
      %568 = vmatpush1.msra.mxu0 0.0
      %569 = vmatprep.subr.mxu0 0.0
      %570 = vmatpush1.msra.mxu0 0.0
      %571 = vmatprep.subr.mxu0 0.0
      %572 = vmatpush1.msra.mxu0 0.0
      %573 = vmatprep.subr.mxu0 0.0
      %574 = vmatpush1.msra.mxu0 0.0
      %575 = vmatprep.subr.mxu0 0.0
      %576 = vmatpush1.msra.mxu0 0.0
      %577 = vmatprep.subr.mxu0 0.0
      %578 = vmatpush1.msra.mxu0 0.0
      %579 = vmatprep.subr.mxu0 0.0
      %580 = vmatpush1.msra.mxu0 0.0
      %581 = vmatprep.subr.mxu0 0.0
      %582 = vmatpush1.msra.mxu0 0.0
      %583 = vmatprep.subr.mxu0 0.0
      %584 = vmatpush1.msra.mxu0 0.0
      %585 = vmatprep.subr.mxu0 0.0
      %586 = vmatpush1.msra.mxu0 0.0
      %587 = vmatprep.subr.mxu0 0.0
      %588 = vmatpush1.msra.mxu0 0.0
      %589 = vmatprep.subr.mxu0 0.0
      %590 = vmatpush1.msra.mxu0 0.0
      %591 = vmatprep.subr.mxu0 0.0
      %592 = vmatpush1.msra.mxu0 0.0
      %593 = vmatprep.subr.mxu0 0.0
      %594 = vmatpush1.msra.mxu0 0.0
      %595 = vmatprep.subr.mxu0 0.0
      %596 = vmatpush1.msra.mxu0 0.0
      %597 = vmatprep.subr.mxu0 0.0
      %598 = vmatpush1.msra.mxu0 0.0
      %599 = vmatprep.subr.mxu0 0.0
      %600 = vmatpush1.msra.mxu0 0.0
      %601 = vmatprep.subr.mxu0 0.0
      %602 = vmatpush1.msra.mxu0 0.0
      %603 = vmatprep.mubr.f32.mxu0 0.0
      %604 = vmatmul.mubr.f32.gmra.mrb[0].mxu0 %v440
      %v605 = vpop.f32.mrb[0].mxu0
      %v606 = vadd.f32 %v436, %v605
      %v607 = vpop.f32.mrb[0].mxu0
      %608 = vmatprep.mubr.f32.mxu0 0.0
      %609 = vmatmul.mubr.f32.gmra.mrb[0].mxu0 %v443
      %v610 = vpop.f32.mrb[0].mxu0
      %v611 = vadd.f32 %v436, %v610
      %v612 = vpop.f32.mrb[0].mxu0
      %613 = vmatprep.mubr.f32.mxu0 0.0
      %614 = vmatmul.mubr.f32.gmra.mrb[0].mxu0 %v446
      %v615 = vpop.f32.mrb[0].mxu0
      %v616 = vadd.f32 %v436, %v615
      %v617 = vpop.f32.mrb[0].mxu0
      %618 = vmatprep.mubr.f32.mxu0 0.0
      %619 = vmatmul.mubr.f32.gmra.mrb[0].mxu0 %v449
      %v620 = vpop.f32.mrb[0].mxu0
      %v621 = vadd.f32 %v436, %v620
      %v622 = vpop.f32.mrb[0].mxu0
      %623 = vmatprep.mubr.f32.mxu0 0.0
      %624 = vmatmul.mubr.f32.gmra.mrb[0].mxu0 %v452
      %v625 = vpop.f32.mrb[0].mxu0
      %v626 = vadd.f32 %v436, %v625
      %v627 = vpop.f32.mrb[0].mxu0
      %628 = vmatprep.mubr.f32.mxu0 0.0
      %629 = vmatmul.mubr.f32.gmra.mrb[0].mxu0 %v455
      %v630 = vpop.f32.mrb[0].mxu0
      %v631 = vadd.f32 %v436, %v630
      %v632 = vpop.f32.mrb[0].mxu0
      %633 = vmatprep.mubr.f32.mxu0 0.0
      %634 = vmatmul.mubr.f32.gmra.mrb[0].mxu0 %v458
      %v635 = vpop.f32.mrb[0].mxu0
      %v636 = vadd.f32 %v436, %v635
      %v637 = vpop.f32.mrb[0].mxu0
      %638 = vmatprep.mubr.f32.mxu0 0.0
      %639 = vmatmul.mubr.f32.gmra.mrb[0].mxu0 %v461
      %v640 = vpop.f32.mrb[0].mxu0
      %v641 = vadd.f32 %v436, %v640
      %v642 = vpop.f32.mrb[0].mxu0
      %643 = vmatprep.mubr.f32.mxu0 0.0
      %644 = vmatmul.mubr.f32.gmra.mrb[0].mxu0 %v464
      %v645 = vpop.f32.mrb[0].mxu0
      %v646 = vadd.f32 %v436, %v645
      %v647 = vpop.f32.mrb[0].mxu0
      %648 = vmatprep.mubr.f32.mxu0 0.0
      %649 = vmatmul.mubr.f32.gmra.mrb[0].mxu0 %v467
      %v650 = vpop.f32.mrb[0].mxu0
      %v651 = vadd.f32 %v436, %v650
      %v652 = vpop.f32.mrb[0].mxu0
      %653 = vmatprep.mubr.f32.mxu0 0.0
      %654 = vmatmul.mubr.f32.gmra.mrb[0].mxu0 %v470
      %v655 = vpop.f32.mrb[0].mxu0
      %v656 = vadd.f32 %v436, %v655
      %v657 = vpop.f32.mrb[0].mxu0
      %658 = vmatprep.mubr.f32.mxu0 0.0
      %659 = vmatmul.mubr.f32.gmra.mrb[0].mxu0 %v473
      %v660 = vpop.f32.mrb[0].mxu0
      %v661 = vadd.f32 %v436, %v660
      %v662 = vpop.f32.mrb[0].mxu0
      %663 = vmatprep.mubr.f32.mxu0 0.0
      %664 = vmatmul.mubr.f32.gmra.mrb[0].mxu0 %v476
      %v665 = vpop.f32.mrb[0].mxu0
      %v666 = vadd.f32 %v436, %v665
      %v667 = vpop.f32.mrb[0].mxu0
      %668 = vmatprep.mubr.f32.mxu0 0.0
      %669 = vmatmul.mubr.f32.gmra.mrb[0].mxu0 %v479
      %v670 = vpop.f32.mrb[0].mxu0
      %v671 = vadd.f32 %v436, %v670
      %v672 = vpop.f32.mrb[0].mxu0
      %673 = vmatprep.mubr.f32.mxu0 0.0
      %674 = vmatmul.mubr.f32.gmra.mrb[0].mxu0 %v482
      %v675 = vpop.f32.mrb[0].mxu0
      %v676 = vadd.f32 %v436, %v675
      %v677 = vpop.f32.mrb[0].mxu0
      %678 = vmatprep.mubr.f32.mxu0 0.0
      %679 = vmatmul.mubr.f32.gmra.mrb[0].mxu0 %v485
      %v680 = vpop.f32.mrb[0].mxu0
      %v681 = vadd.f32 %v436, %v680
      %v682 = vpop.f32.mrb[0].mxu0
      %683 = vmatprep.mubr.f32.mxu0 0.0
      %684 = vmatmul.mubr.f32.gmra.mrb[0].mxu0 %v488
      %v685 = vpop.f32.mrb[0].mxu0
      %v686 = vadd.f32 %v436, %v685
      %v687 = vpop.f32.mrb[0].mxu0
      %688 = vmatprep.mubr.f32.mxu0 0.0
      %689 = vmatmul.mubr.f32.gmra.mrb[0].mxu0 %v491
      %v690 = vpop.f32.mrb[0].mxu0
      %v691 = vadd.f32 %v436, %v690
      %v692 = vpop.f32.mrb[0].mxu0
      %693 = vmatprep.mubr.f32.mxu0 0.0
      %694 = vmatmul.mubr.f32.gmra.mrb[0].mxu0 %v494
      %v695 = vpop.f32.mrb[0].mxu0
      %v696 = vadd.f32 %v436, %v695
      %v697 = vpop.f32.mrb[0].mxu0
      %698 = vmatprep.mubr.f32.mxu0 0.0
      %699 = vmatmul.mubr.f32.gmra.mrb[0].mxu0 %v497
      %v700 = vpop.f32.mrb[0].mxu0
      %v701 = vadd.f32 %v436, %v700
      %v702 = vpop.f32.mrb[0].mxu0
      %703 = vmatprep.mubr.f32.mxu0 0.0
      %704 = vmatmul.mubr.f32.gmra.mrb[0].mxu0 %v500
      %v705 = vpop.f32.mrb[0].mxu0
      %v706 = vadd.f32 %v436, %v705
      %v707 = vpop.f32.mrb[0].mxu0
      %708 = vmatprep.mubr.f32.mxu0 0.0
      %709 = vmatmul.mubr.f32.gmra.mrb[0].mxu0 %v503
      %v710 = vpop.f32.mrb[0].mxu0
      %v711 = vadd.f32 %v436, %v710
      %v712 = vpop.f32.mrb[0].mxu0
      %713 = vmatprep.mubr.f32.mxu0 0.0
      %714 = vmatmul.mubr.f32.gmra.mrb[0].mxu0 %v506
      %v715 = vpop.f32.mrb[0].mxu0
      %v716 = vadd.f32 %v436, %v715
      %v717 = vpop.f32.mrb[0].mxu0
      %718 = vmatprep.mubr.f32.mxu0 0.0
      %719 = vmatmul.mubr.f32.gmra.mrb[0].mxu0 %v509
      %v720 = vpop.f32.mrb[0].mxu0
      %v721 = vadd.f32 %v436, %v720
      %v722 = vpop.f32.mrb[0].mxu0
      %723 = vmatprep.mubr.f32.mxu0 0.0
      %724 = vmatmul.mubr.f32.gmra.mrb[0].mxu0 %v512
      %v725 = vpop.f32.mrb[0].mxu0
      %v726 = vadd.f32 %v436, %v725
      %v727 = vpop.f32.mrb[0].mxu0
      %728 = vmatprep.mubr.f32.mxu0 0.0
      %729 = vmatmul.mubr.f32.gmra.mrb[0].mxu0 %v515
      %v730 = vpop.f32.mrb[0].mxu0
      %v731 = vadd.f32 %v436, %v730
      %v732 = vpop.f32.mrb[0].mxu0
      %733 = vmatprep.mubr.f32.mxu0 0.0
      %734 = vmatmul.mubr.f32.gmra.mrb[0].mxu0 %v518
      %v735 = vpop.f32.mrb[0].mxu0
      %v736 = vadd.f32 %v436, %v735
      %v737 = vpop.f32.mrb[0].mxu0
      %738 = vmatprep.mubr.f32.mxu0 0.0
      %739 = vmatmul.mubr.f32.gmra.mrb[0].mxu0 %v521
      %v740 = vpop.f32.mrb[0].mxu0
      %v741 = vadd.f32 %v436, %v740
      %v742 = vpop.f32.mrb[0].mxu0
      %743 = vmatprep.mubr.f32.mxu0 0.0
      %744 = vmatmul.mubr.f32.gmra.mrb[0].mxu0 %v524
      %v745 = vpop.f32.mrb[0].mxu0
      %v746 = vadd.f32 %v436, %v745
      %v747 = vpop.f32.mrb[0].mxu0
      %748 = vmatprep.mubr.f32.mxu0 0.0
      %749 = vmatmul.mubr.f32.gmra.mrb[0].mxu0 %v527
      %v750 = vpop.f32.mrb[0].mxu0
      %v751 = vadd.f32 %v436, %v750
      %v752 = vpop.f32.mrb[0].mxu0
      %753 = vmatprep.mubr.f32.mxu0 0.0
      %754 = vmatmul.mubr.f32.gmra.mrb[0].mxu0 %v530
      %v755 = vpop.f32.mrb[0].mxu0
      %v756 = vadd.f32 %v436, %v755
      %v757 = vpop.f32.mrb[0].mxu0
      %758 = vmatprep.mubr.f32.mxu0 0.0
      %759 = vmatmul.mubr.f32.gmra.mrb[0].mxu0 %v533
      %v760 = vpop.f32.mrb[0].mxu0
      %v761 = vadd.f32 %v436, %v760
      %v762 = vpop.f32.mrb[0].mxu0
      %763 = vdwg.mxu0
      %v764 = vmax.f32 %v606, 0.0
      %v765 = vmax.f32 %v611, 0.0
      %v766 = vmax.f32 %v616, 0.0
      %v767 = vmax.f32 %v621, 0.0
      %v768 = vmax.f32 %v626, 0.0
      %v769 = vmax.f32 %v631, 0.0
      %v770 = vmax.f32 %v636, 0.0
      %v771 = vmax.f32 %v641, 0.0
      %v772 = vmax.f32 %v646, 0.0
      %v773 = vmax.f32 %v651, 0.0
      %v774 = vmax.f32 %v656, 0.0
      %v775 = vmax.f32 %v661, 0.0
      %v776 = vmax.f32 %v666, 0.0
      %v777 = vmax.f32 %v671, 0.0
      %v778 = vmax.f32 %v676, 0.0
      %v779 = vmax.f32 %v681, 0.0
      %v780 = vmax.f32 %v686, 0.0
      %v781 = vmax.f32 %v691, 0.0
      %v782 = vmax.f32 %v696, 0.0
      %v783 = vmax.f32 %v701, 0.0
      %v784 = vmax.f32 %v706, 0.0
      %v785 = vmax.f32 %v711, 0.0
      %v786 = vmax.f32 %v716, 0.0
      %v787 = vmax.f32 %v721, 0.0
      %v788 = vmax.f32 %v726, 0.0
      %v789 = vmax.f32 %v731, 0.0
      %v790 = vmax.f32 %v736, 0.0
      %v791 = vmax.f32 %v741, 0.0
      %v792 = vmax.f32 %v746, 0.0
      %v793 = vmax.f32 %v751, 0.0
      %v794 = vmax.f32 %v756, 0.0
      %v795 = vmax.f32 %v761, 0.0
      %s796 = scalar_lea.vmem [#allocation2], 24
      %797 = vst [vmem:[%s796 + $0x1] sm:$0xff] %v764
      %798 = vst [vmem:[%s796 + $0x9] sm:$0xff] %v765
      %799 = vst [vmem:[%s796 + $0x19] sm:$0xff] %v766
      %800 = vst [vmem:[%s796 + $0x21] sm:$0xff] %v767
      %801 = vst [vmem:[%s796 + $0x31] sm:$0xff] %v768
      %802 = vst [vmem:[%s796 + $0x39] sm:$0xff] %v769
      %803 = vst [vmem:[%s796 + $0x49] sm:$0xff] %v770
      %804 = vst [vmem:[%s796 + $0x51] sm:$0xff] %v771
      %805 = vst [vmem:[%s796 + $0x61] sm:$0xff] %v772
      %806 = vst [vmem:[%s796 + $0x69] sm:$0xff] %v773
      %807 = vst [vmem:[%s796 + $0x79] sm:$0xff] %v774
      %808 = vst [vmem:[%s796 + $0x81] sm:$0xff] %v775
      %809 = vst [vmem:[%s796 + $0x91] sm:$0xff] %v776
      %810 = vst [vmem:[%s796 + $0x99] sm:$0xff] %v777
      %811 = vst [vmem:[%s796 + $0xa9] sm:$0xff] %v778
      %812 = vst [vmem:[%s796 + $0xb1] sm:$0xff] %v779
      %813 = vst [vmem:[%s796 + $0xc1] sm:$0xff] %v780
      %814 = vst [vmem:[%s796 + $0xc9] sm:$0xff] %v781
      %815 = vst [vmem:[%s796 + $0xd9] sm:$0xff] %v782
      %816 = vst [vmem:[%s796 + $0xe1] sm:$0xff] %v783
      %817 = vst [vmem:[%s796 + $0xf1] sm:$0xff] %v784
      %818 = vst [vmem:[%s796 + $0xf9] sm:$0xff] %v785
      %819 = vst [vmem:[%s796 + $0x109] sm:$0xff] %v786
      %820 = vst [vmem:[%s796 + $0x111] sm:$0xff] %v787
      %821 = vst [vmem:[%s796 + $0x121] sm:$0xff] %v788
      %822 = vst [vmem:[%s796 + $0x129] sm:$0xff] %v789
      %823 = vst [vmem:[%s796 + $0x139] sm:$0xff] %v790
      %824 = vst [vmem:[%s796 + $0x141] sm:$0xff] %v791
      %825 = vst [vmem:[%s796 + $0x151] sm:$0xff] %v792
      %826 = vst [vmem:[%s796 + $0x159] sm:$0xff] %v793
      %827 = vst [vmem:[%s796 + $0x169] sm:$0xff] %v794
      %828 = vst [vmem:[%s796 + $0x171] sm:$0xff] %v795
      %p829 = scmp.eq.s32.totalorder %s25, 0
      // Predicated region
      $region57: #{block_forward.1} parent=55 // pred_check
        %p830 = pneg %p829
      $region58: #{block_forward.1} parent=55 // pred_check_branch
        %832 = sbr.rel (%p830) target = $region60
      $region59: #{block_forward.1} parent=55 // pred_region
        %833 = vst [vmem:[#allocation2] sm:$0xff] 0.0
        %834 = vst [vmem:[#allocation2 + $0x8] sm:$0xff] 0.0
        %835 = vst [vmem:[#allocation2 + $0x10] sm:$0x3] 0.0
      $region60: #{block_forward.1} parent=55 // pred_fallthru
        _
      %p836 = scmp.gt.s32.totalorder %s25, 0
      // Predicated region
      $region61: #{block_forward.1} parent=55 // pred_check
        %p837 = pneg %p836
      $region62: #{block_forward.1} parent=55 // pred_check_branch
        %839 = sbr.rel (%p837) target = $region64
      $region63: #{block_forward.1} parent=55 // pred_region
        %s840 = smul.u32 %s359, 16
        %s841 = scalar_lea.vmem %s346, %s840
        %v842 = vld [vmem:[%s841] sm:$0xff]
        %v843 = vld [vmem:[%s841 + $0x8] sm:$0xff]
        %v845 = vsel %vm438, %v842, 0
        %v848 = vsel %vm438, %v843, 0
        %850 = vmatprep.subr.mxu0 0.0
        %851 = vmatpush1.msra.mxu0 %v537
        %852 = vmatprep.subr.mxu0 0.0
        %853 = vmatpush1.msra.mxu0 0.0
        %854 = vmatprep.subr.mxu0 0.0
        %855 = vmatpush1.msra.mxu0 0.0
        %856 = vmatprep.subr.mxu0 0.0
        %857 = vmatpush1.msra.mxu0 0.0
        %858 = vmatprep.subr.mxu0 0.0
        %859 = vmatpush1.msra.mxu0 0.0
        %860 = vmatprep.subr.mxu0 0.0
        %861 = vmatpush1.msra.mxu0 0.0
        %862 = vmatprep.subr.mxu0 0.0
        %863 = vmatpush1.msra.mxu0 0.0
        %864 = vmatprep.subr.mxu0 0.0
        %865 = vmatpush1.msra.mxu0 0.0
        %866 = vmatprep.subr.mxu0 0.0
        %867 = vmatpush1.msra.mxu0 0.0
        %868 = vmatprep.subr.mxu0 0.0
        %869 = vmatpush1.msra.mxu0 0.0
        %870 = vmatprep.subr.mxu0 0.0
        %871 = vmatpush1.msra.mxu0 0.0
        %872 = vmatprep.subr.mxu0 0.0
        %873 = vmatpush1.msra.mxu0 0.0
        %874 = vmatprep.subr.mxu0 0.0
        %875 = vmatpush1.msra.mxu0 0.0
        %876 = vmatprep.subr.mxu0 0.0
        %877 = vmatpush1.msra.mxu0 0.0
        %878 = vmatprep.subr.mxu0 0.0
        %879 = vmatpush1.msra.mxu0 0.0
        %880 = vmatprep.subr.mxu0 0.0
        %881 = vmatpush1.msra.mxu0 0.0
        %882 = vmatprep.subr.mxu0 0.0
        %883 = vmatpush1.msra.mxu0 0.0
        %884 = vmatprep.subr.mxu0 0.0
        %885 = vmatpush1.msra.mxu0 0.0
        %886 = vmatprep.subr.mxu0 0.0
        %887 = vmatpush1.msra.mxu0 0.0
        %888 = vmatprep.subr.mxu0 0.0
        %889 = vmatpush1.msra.mxu0 0.0
        %890 = vmatprep.subr.mxu0 0.0
        %891 = vmatpush1.msra.mxu0 0.0
        %892 = vmatprep.subr.mxu0 0.0
        %893 = vmatpush1.msra.mxu0 0.0
        %894 = vmatprep.subr.mxu0 0.0
        %895 = vmatpush1.msra.mxu0 0.0
        %896 = vmatprep.subr.mxu0 0.0
        %897 = vmatpush1.msra.mxu0 0.0
        %898 = vmatprep.subr.mxu0 0.0
        %899 = vmatpush1.msra.mxu0 0.0
        %900 = vmatprep.subr.mxu0 0.0
        %901 = vmatpush1.msra.mxu0 0.0
        %902 = vmatprep.subr.mxu0 0.0
        %903 = vmatpush1.msra.mxu0 0.0
        %904 = vmatprep.subr.mxu0 0.0
        %905 = vmatpush1.msra.mxu0 0.0
        %906 = vmatprep.subr.mxu0 0.0
        %907 = vmatpush1.msra.mxu0 0.0
        %908 = vmatprep.subr.mxu0 0.0
        %909 = vmatpush1.msra.mxu0 0.0
        %910 = vmatprep.subr.mxu0 0.0
        %911 = vmatpush1.msra.mxu0 0.0
        %912 = vmatprep.subr.mxu0 0.0
        %913 = vmatpush1.msra.mxu0 0.0
        %914 = vmatprep.mubr.f32.mxu0 0.0
        %915 = vmatmul.mubr.f32.gmra.mrb[0].mxu0 %v845
        %v916 = vpop.f32.mrb[0].mxu0
        %v917 = vadd.f32 %v436, %v916
        %v918 = vpop.f32.mrb[0].mxu0
        %919 = vmatprep.mubr.f32.mxu0 0.0
        %920 = vmatmul.mubr.f32.gmra.mrb[0].mxu0 %v848
        %v921 = vpop.f32.mrb[0].mxu0
        %v922 = vadd.f32 %v436, %v921
        %v923 = vpop.f32.mrb[0].mxu0
        %924 = vdwg.mxu0
        %v925 = vmax.f32 %v917, 0.0
        %v926 = vmax.f32 %v922, 0.0
        %927 = vst [vmem:[#allocation2 + $0x1] sm:$0xff] %v925
        %928 = vst [vmem:[#allocation2 + $0x9] sm:$0xff] %v926
      $region64: #{block_forward.1} parent=55 // pred_fallthru
        _
      // Predicated region
      $region65: #{block_forward.1} parent=55 // pred_check
        %p929 = pneg %p829
      $region66: #{block_forward.1} parent=55 // pred_check_branch
        %931 = sbr.rel (%p929) target = $region68
      $region67: #{block_forward.1} parent=55 // pred_region
        %s932 = scalar_lea.vmem [#allocation2], 408
        %933 = vst [vmem:[%s932] sm:$0xff] 0.0
        %934 = vst [vmem:[%s932 + $0x8] sm:$0xff] 0.0
        %935 = vst [vmem:[%s932 + $0x10] sm:$0x3] 0.0
      $region68: #{block_forward.1} parent=55 // pred_fallthru
        _
      %p936 = scmp.lt.s32.totalorder %s25, 0
      // Predicated region
      $region69: #{block_forward.1} parent=55 // pred_check
        %p937 = pneg %p936
      $region70: #{block_forward.1} parent=55 // pred_check_branch
        %939 = sbr.rel (%p937) target = $region72
      $region71: #{block_forward.1} parent=55 // pred_region
        %s940 = sadd.s32 %s358, 16
        %s941 = smul.u32 %s940, 16
        %s942 = scalar_lea.vmem %s346, %s941
        %v943 = vld [vmem:[%s942] sm:$0xff]
        %v944 = vld [vmem:[%s942 + $0x8] sm:$0xff]
        %v946 = vsel %vm438, %v943, 0
        %v949 = vsel %vm438, %v944, 0
        %951 = vmatprep.subr.mxu0 0.0
        %952 = vmatpush1.msra.mxu0 %v537
        %953 = vmatprep.subr.mxu0 0.0
        %954 = vmatpush1.msra.mxu0 0.0
        %955 = vmatprep.subr.mxu0 0.0
        %956 = vmatpush1.msra.mxu0 0.0
        %957 = vmatprep.subr.mxu0 0.0
        %958 = vmatpush1.msra.mxu0 0.0
        %959 = vmatprep.subr.mxu0 0.0
        %960 = vmatpush1.msra.mxu0 0.0
        %961 = vmatprep.subr.mxu0 0.0
        %962 = vmatpush1.msra.mxu0 0.0
        %963 = vmatprep.subr.mxu0 0.0
        %964 = vmatpush1.msra.mxu0 0.0
        %965 = vmatprep.subr.mxu0 0.0
        %966 = vmatpush1.msra.mxu0 0.0
        %967 = vmatprep.subr.mxu0 0.0
        %968 = vmatpush1.msra.mxu0 0.0
        %969 = vmatprep.subr.mxu0 0.0
        %970 = vmatpush1.msra.mxu0 0.0
        %971 = vmatprep.subr.mxu0 0.0
        %972 = vmatpush1.msra.mxu0 0.0
        %973 = vmatprep.subr.mxu0 0.0
        %974 = vmatpush1.msra.mxu0 0.0
        %975 = vmatprep.subr.mxu0 0.0
        %976 = vmatpush1.msra.mxu0 0.0
        %977 = vmatprep.subr.mxu0 0.0
        %978 = vmatpush1.msra.mxu0 0.0
        %979 = vmatprep.subr.mxu0 0.0
        %980 = vmatpush1.msra.mxu0 0.0
        %981 = vmatprep.subr.mxu0 0.0
        %982 = vmatpush1.msra.mxu0 0.0
        %983 = vmatprep.subr.mxu0 0.0
        %984 = vmatpush1.msra.mxu0 0.0
        %985 = vmatprep.subr.mxu0 0.0
        %986 = vmatpush1.msra.mxu0 0.0
        %987 = vmatprep.subr.mxu0 0.0
        %988 = vmatpush1.msra.mxu0 0.0
        %989 = vmatprep.subr.mxu0 0.0
        %990 = vmatpush1.msra.mxu0 0.0
        %991 = vmatprep.subr.mxu0 0.0
        %992 = vmatpush1.msra.mxu0 0.0
        %993 = vmatprep.subr.mxu0 0.0
        %994 = vmatpush1.msra.mxu0 0.0
        %995 = vmatprep.subr.mxu0 0.0
        %996 = vmatpush1.msra.mxu0 0.0
        %997 = vmatprep.subr.mxu0 0.0
        %998 = vmatpush1.msra.mxu0 0.0
        %999 = vmatprep.subr.mxu0 0.0
        %1000 = vmatpush1.msra.mxu0 0.0
        %1001 = vmatprep.subr.mxu0 0.0
        %1002 = vmatpush1.msra.mxu0 0.0
        %1003 = vmatprep.subr.mxu0 0.0
        %1004 = vmatpush1.msra.mxu0 0.0
        %1005 = vmatprep.subr.mxu0 0.0
        %1006 = vmatpush1.msra.mxu0 0.0
        %1007 = vmatprep.subr.mxu0 0.0
        %1008 = vmatpush1.msra.mxu0 0.0
        %1009 = vmatprep.subr.mxu0 0.0
        %1010 = vmatpush1.msra.mxu0 0.0
        %1011 = vmatprep.subr.mxu0 0.0
        %1012 = vmatpush1.msra.mxu0 0.0
        %1013 = vmatprep.subr.mxu0 0.0
        %1014 = vmatpush1.msra.mxu0 0.0
        %1015 = vmatprep.mubr.f32.mxu0 0.0
        %1016 = vmatmul.mubr.f32.gmra.mrb[0].mxu0 %v946
        %v1017 = vpop.f32.mrb[0].mxu0
        %v1018 = vadd.f32 %v436, %v1017
        %v1019 = vpop.f32.mrb[0].mxu0
        %1020 = vmatprep.mubr.f32.mxu0 0.0
        %1021 = vmatmul.mubr.f32.gmra.mrb[0].mxu0 %v949
        %v1022 = vpop.f32.mrb[0].mxu0
        %v1023 = vadd.f32 %v436, %v1022
        %v1024 = vpop.f32.mrb[0].mxu0
        %1025 = vdwg.mxu0
        %v1026 = vmax.f32 %v1018, 0.0
        %v1027 = vmax.f32 %v1023, 0.0
        %s1028 = scalar_lea.vmem [#allocation2], 408
        %1029 = vst [vmem:[%s1028 + $0x1] sm:$0xff] %v1026
        %1030 = vst [vmem:[%s1028 + $0x9] sm:$0xff] %v1027
      $region72: #{block_forward.1} parent=55 // pred_fallthru
        _
      %v1031 = vld [vmem:[%s3] sm:$0x7]
      %v1032 = vld [vmem:[%s3 + $0x4] sm:$0x7]
      %v1033 = vld [vmem:[%s3 + $0x8] sm:$0x7]
      %v1034 = vld [vmem:[%s4] sm:$0x1]
      %v1035 = vld [vmem:[#allocation2] sm:$0xff]
      %v1036 = vld [vmem:[#allocation2 + $0x8] sm:$0xff]
      %v1037 = vld [vmem:[#allocation2 + $0x18] sm:$0xff]
      %v1038 = vld [vmem:[#allocation2 + $0x20] sm:$0xff]
      %v1039 = vld [vmem:[#allocation2 + $0x30] sm:$0xff]
      %v1040 = vld [vmem:[#allocation2 + $0x38] sm:$0xff]
      %v1041 = vld [vmem:[#allocation2 + $0x48] sm:$0xff]
      %v1042 = vld [vmem:[#allocation2 + $0x50] sm:$0xff]
      %v1043 = vld [vmem:[#allocation2 + $0x60] sm:$0xff]
      %v1044 = vld [vmem:[#allocation2 + $0x68] sm:$0xff]
      %v1045 = vld [vmem:[#allocation2 + $0x78] sm:$0xff]
      %v1046 = vld [vmem:[#allocation2 + $0x80] sm:$0xff]
      %v1047 = vld [vmem:[#allocation2 + $0x90] sm:$0xff]
      %v1048 = vld [vmem:[#allocation2 + $0x98] sm:$0xff]
      %v1049 = vld [vmem:[#allocation2 + $0xa8] sm:$0xff]
      %v1050 = vld [vmem:[#allocation2 + $0xb0] sm:$0xff]
      %v1051 = vld [vmem:[#allocation2 + $0xc0] sm:$0xff]
      %v1052 = vld [vmem:[#allocation2 + $0xc8] sm:$0xff]
      %v1053 = vld [vmem:[#allocation2 + $0xd8] sm:$0xff]
      %v1054 = vld [vmem:[#allocation2 + $0xe0] sm:$0xff]
      %v1055 = vld [vmem:[#allocation2 + $0xf0] sm:$0xff]
      %v1056 = vld [vmem:[#allocation2 + $0xf8] sm:$0xff]
      %v1057 = vld [vmem:[#allocation2 + $0x108] sm:$0xff]
      %v1058 = vld [vmem:[#allocation2 + $0x110] sm:$0xff]
      %v1059 = vld [vmem:[#allocation2 + $0x120] sm:$0xff]
      %v1060 = vld [vmem:[#allocation2 + $0x128] sm:$0xff]
      %v1061 = vld [vmem:[#allocation2 + $0x138] sm:$0xff]
      %v1062 = vld [vmem:[#allocation2 + $0x140] sm:$0xff]
      %v1063 = vld [vmem:[#allocation2 + $0x150] sm:$0xff]
      %v1064 = vld [vmem:[#allocation2 + $0x158] sm:$0xff]
      %v1065 = vld [vmem:[#allocation2 + $0x168] sm:$0xff]
      %v1066 = vld [vmem:[#allocation2 + $0x170] sm:$0xff]
      %v1067 = vlaneseq
      %v1068 = vshrl.u32 %v1067, 7
      %v1069 = vsub.s32 0, %v1068
      %v1070 = vrot.slane %v1031, %v1069
      %v1071 = vmul.f32 %v1035, %v1070
      %v1072 = vmul.f32 %v1036, %v1070
      %v1073 = vmul.f32 %v1037, %v1070
      %v1074 = vmul.f32 %v1038, %v1070
      %v1075 = vmul.f32 %v1039, %v1070
      %v1076 = vmul.f32 %v1040, %v1070
      %v1077 = vmul.f32 %v1041, %v1070
      %v1078 = vmul.f32 %v1042, %v1070
      %v1079 = vmul.f32 %v1043, %v1070
      %v1080 = vmul.f32 %v1044, %v1070
      %v1081 = vmul.f32 %v1045, %v1070
      %v1082 = vmul.f32 %v1046, %v1070
      %v1083 = vmul.f32 %v1047, %v1070
      %v1084 = vmul.f32 %v1048, %v1070
      %v1085 = vmul.f32 %v1049, %v1070
      %v1086 = vmul.f32 %v1050, %v1070
      %v1087 = vmul.f32 %v1051, %v1070
      %v1088 = vmul.f32 %v1052, %v1070
      %v1089 = vmul.f32 %v1053, %v1070
      %v1090 = vmul.f32 %v1054, %v1070
      %v1091 = vmul.f32 %v1055, %v1070
      %v1092 = vmul.f32 %v1056, %v1070
      %v1093 = vmul.f32 %v1057, %v1070
      %v1094 = vmul.f32 %v1058, %v1070
      %v1095 = vmul.f32 %v1059, %v1070
      %v1096 = vmul.f32 %v1060, %v1070
      %v1097 = vmul.f32 %v1061, %v1070
      %v1098 = vmul.f32 %v1062, %v1070
      %v1099 = vmul.f32 %v1063, %v1070
      %v1100 = vmul.f32 %v1064, %v1070
      %v1101 = vmul.f32 %v1065, %v1070
      %v1102 = vmul.f32 %v1066, %v1070
      %v1103 = vld [vmem:[#allocation2 + $0x1] sm:$0xff]
      %v1104 = vld [vmem:[#allocation2 + $0x9] sm:$0xff]
      %v1105 = vld [vmem:[#allocation2 + $0x19] sm:$0xff]
      %v1106 = vld [vmem:[#allocation2 + $0x21] sm:$0xff]
      %v1107 = vld [vmem:[#allocation2 + $0x31] sm:$0xff]
      %v1108 = vld [vmem:[#allocation2 + $0x39] sm:$0xff]
      %v1109 = vld [vmem:[#allocation2 + $0x49] sm:$0xff]
      %v1110 = vld [vmem:[#allocation2 + $0x51] sm:$0xff]
      %v1111 = vld [vmem:[#allocation2 + $0x61] sm:$0xff]
      %v1112 = vld [vmem:[#allocation2 + $0x69] sm:$0xff]
      %v1113 = vld [vmem:[#allocation2 + $0x79] sm:$0xff]
      %v1114 = vld [vmem:[#allocation2 + $0x81] sm:$0xff]
      %v1115 = vld [vmem:[#allocation2 + $0x91] sm:$0xff]
      %v1116 = vld [vmem:[#allocation2 + $0x99] sm:$0xff]
      %v1117 = vld [vmem:[#allocation2 + $0xa9] sm:$0xff]
      %v1118 = vld [vmem:[#allocation2 + $0xb1] sm:$0xff]
      %v1119 = vld [vmem:[#allocation2 + $0xc1] sm:$0xff]
      %v1120 = vld [vmem:[#allocation2 + $0xc9] sm:$0xff]
      %v1121 = vld [vmem:[#allocation2 + $0xd9] sm:$0xff]
      %v1122 = vld [vmem:[#allocation2 + $0xe1] sm:$0xff]
      %v1123 = vld [vmem:[#allocation2 + $0xf1] sm:$0xff]
      %v1124 = vld [vmem:[#allocation2 + $0xf9] sm:$0xff]
      %v1125 = vld [vmem:[#allocation2 + $0x109] sm:$0xff]
      %v1126 = vld [vmem:[#allocation2 + $0x111] sm:$0xff]
      %v1127 = vld [vmem:[#allocation2 + $0x121] sm:$0xff]
      %v1128 = vld [vmem:[#allocation2 + $0x129] sm:$0xff]
      %v1129 = vld [vmem:[#allocation2 + $0x139] sm:$0xff]
      %v1130 = vld [vmem:[#allocation2 + $0x141] sm:$0xff]
      %v1131 = vld [vmem:[#allocation2 + $0x151] sm:$0xff]
      %v1132 = vld [vmem:[#allocation2 + $0x159] sm:$0xff]
      %v1133 = vld [vmem:[#allocation2 + $0x169] sm:$0xff]
      %v1134 = vld [vmem:[#allocation2 + $0x171] sm:$0xff]
      %v1135 = vlaneseq
      %v1136 = vshrl.u32 %v1135, 7
      %v1137 = vsub.s32 1, %v1136
      %v1138 = vrot.slane %v1031, %v1137
      %v1139 = vmul.f32 %v1103, %v1138
      %v1140 = vmul.f32 %v1104, %v1138
      %v1141 = vmul.f32 %v1105, %v1138
      %v1142 = vmul.f32 %v1106, %v1138
      %v1143 = vmul.f32 %v1107, %v1138
      %v1144 = vmul.f32 %v1108, %v1138
      %v1145 = vmul.f32 %v1109, %v1138
      %v1146 = vmul.f32 %v1110, %v1138
      %v1147 = vmul.f32 %v1111, %v1138
      %v1148 = vmul.f32 %v1112, %v1138
      %v1149 = vmul.f32 %v1113, %v1138
      %v1150 = vmul.f32 %v1114, %v1138
      %v1151 = vmul.f32 %v1115, %v1138
      %v1152 = vmul.f32 %v1116, %v1138
      %v1153 = vmul.f32 %v1117, %v1138
      %v1154 = vmul.f32 %v1118, %v1138
      %v1155 = vmul.f32 %v1119, %v1138
      %v1156 = vmul.f32 %v1120, %v1138
      %v1157 = vmul.f32 %v1121, %v1138
      %v1158 = vmul.f32 %v1122, %v1138
      %v1159 = vmul.f32 %v1123, %v1138
      %v1160 = vmul.f32 %v1124, %v1138
      %v1161 = vmul.f32 %v1125, %v1138
      %v1162 = vmul.f32 %v1126, %v1138
      %v1163 = vmul.f32 %v1127, %v1138
      %v1164 = vmul.f32 %v1128, %v1138
      %v1165 = vmul.f32 %v1129, %v1138
      %v1166 = vmul.f32 %v1130, %v1138
      %v1167 = vmul.f32 %v1131, %v1138
      %v1168 = vmul.f32 %v1132, %v1138
      %v1169 = vmul.f32 %v1133, %v1138
      %v1170 = vmul.f32 %v1134, %v1138
      %v1171 = vadd.f32 %v1071, %v1139
      %v1172 = vadd.f32 %v1072, %v1140
      %v1173 = vadd.f32 %v1073, %v1141
      %v1174 = vadd.f32 %v1074, %v1142
      %v1175 = vadd.f32 %v1075, %v1143
      %v1176 = vadd.f32 %v1076, %v1144
      %v1177 = vadd.f32 %v1077, %v1145
      %v1178 = vadd.f32 %v1078, %v1146
      %v1179 = vadd.f32 %v1079, %v1147
      %v1180 = vadd.f32 %v1080, %v1148
      %v1181 = vadd.f32 %v1081, %v1149
      %v1182 = vadd.f32 %v1082, %v1150
      %v1183 = vadd.f32 %v1083, %v1151
      %v1184 = vadd.f32 %v1084, %v1152
      %v1185 = vadd.f32 %v1085, %v1153
      %v1186 = vadd.f32 %v1086, %v1154
      %v1187 = vadd.f32 %v1087, %v1155
      %v1188 = vadd.f32 %v1088, %v1156
      %v1189 = vadd.f32 %v1089, %v1157
      %v1190 = vadd.f32 %v1090, %v1158
      %v1191 = vadd.f32 %v1091, %v1159
      %v1192 = vadd.f32 %v1092, %v1160
      %v1193 = vadd.f32 %v1093, %v1161
      %v1194 = vadd.f32 %v1094, %v1162
      %v1195 = vadd.f32 %v1095, %v1163
      %v1196 = vadd.f32 %v1096, %v1164
      %v1197 = vadd.f32 %v1097, %v1165
      %v1198 = vadd.f32 %v1098, %v1166
      %v1199 = vadd.f32 %v1099, %v1167
      %v1200 = vadd.f32 %v1100, %v1168
      %v1201 = vadd.f32 %v1101, %v1169
      %v1202 = vadd.f32 %v1102, %v1170
      %v1203 = vld [vmem:[#allocation2 + $0x2] sm:$0xff]
      %v1204 = vld [vmem:[#allocation2 + $0xa] sm:$0xff]
      %v1205 = vld [vmem:[#allocation2 + $0x1a] sm:$0xff]
      %v1206 = vld [vmem:[#allocation2 + $0x22] sm:$0xff]
      %v1207 = vld [vmem:[#allocation2 + $0x32] sm:$0xff]
      %v1208 = vld [vmem:[#allocation2 + $0x3a] sm:$0xff]
      %v1209 = vld [vmem:[#allocation2 + $0x4a] sm:$0xff]
      %v1210 = vld [vmem:[#allocation2 + $0x52] sm:$0xff]
      %v1211 = vld [vmem:[#allocation2 + $0x62] sm:$0xff]
      %v1212 = vld [vmem:[#allocation2 + $0x6a] sm:$0xff]
      %v1213 = vld [vmem:[#allocation2 + $0x7a] sm:$0xff]
      %v1214 = vld [vmem:[#allocation2 + $0x82] sm:$0xff]
      %v1215 = vld [vmem:[#allocation2 + $0x92] sm:$0xff]
      %v1216 = vld [vmem:[#allocation2 + $0x9a] sm:$0xff]
      %v1217 = vld [vmem:[#allocation2 + $0xaa] sm:$0xff]
      %v1218 = vld [vmem:[#allocation2 + $0xb2] sm:$0xff]
      %v1219 = vld [vmem:[#allocation2 + $0xc2] sm:$0xff]
      %v1220 = vld [vmem:[#allocation2 + $0xca] sm:$0xff]
      %v1221 = vld [vmem:[#allocation2 + $0xda] sm:$0xff]
      %v1222 = vld [vmem:[#allocation2 + $0xe2] sm:$0xff]
      %v1223 = vld [vmem:[#allocation2 + $0xf2] sm:$0xff]
      %v1224 = vld [vmem:[#allocation2 + $0xfa] sm:$0xff]
      %v1225 = vld [vmem:[#allocation2 + $0x10a] sm:$0xff]
      %v1226 = vld [vmem:[#allocation2 + $0x112] sm:$0xff]
      %v1227 = vld [vmem:[#allocation2 + $0x122] sm:$0xff]
      %v1228 = vld [vmem:[#allocation2 + $0x12a] sm:$0xff]
      %v1229 = vld [vmem:[#allocation2 + $0x13a] sm:$0xff]
      %v1230 = vld [vmem:[#allocation2 + $0x142] sm:$0xff]
      %v1231 = vld [vmem:[#allocation2 + $0x152] sm:$0xff]
      %v1232 = vld [vmem:[#allocation2 + $0x15a] sm:$0xff]
      %v1233 = vld [vmem:[#allocation2 + $0x16a] sm:$0xff]
      %v1234 = vld [vmem:[#allocation2 + $0x172] sm:$0xff]
      %v1235 = vlaneseq
      %v1236 = vshrl.u32 %v1235, 7
      %v1237 = vsub.s32 2, %v1236
      %v1238 = vrot.slane %v1031, %v1237
      %v1239 = vmul.f32 %v1203, %v1238
      %v1240 = vmul.f32 %v1204, %v1238
      %v1241 = vmul.f32 %v1205, %v1238
      %v1242 = vmul.f32 %v1206, %v1238
      %v1243 = vmul.f32 %v1207, %v1238
      %v1244 = vmul.f32 %v1208, %v1238
      %v1245 = vmul.f32 %v1209, %v1238
      %v1246 = vmul.f32 %v1210, %v1238
      %v1247 = vmul.f32 %v1211, %v1238
      %v1248 = vmul.f32 %v1212, %v1238
      %v1249 = vmul.f32 %v1213, %v1238
      %v1250 = vmul.f32 %v1214, %v1238
      %v1251 = vmul.f32 %v1215, %v1238
      %v1252 = vmul.f32 %v1216, %v1238
      %v1253 = vmul.f32 %v1217, %v1238
      %v1254 = vmul.f32 %v1218, %v1238
      %v1255 = vmul.f32 %v1219, %v1238
      %v1256 = vmul.f32 %v1220, %v1238
      %v1257 = vmul.f32 %v1221, %v1238
      %v1258 = vmul.f32 %v1222, %v1238
      %v1259 = vmul.f32 %v1223, %v1238
      %v1260 = vmul.f32 %v1224, %v1238
      %v1261 = vmul.f32 %v1225, %v1238
      %v1262 = vmul.f32 %v1226, %v1238
      %v1263 = vmul.f32 %v1227, %v1238
      %v1264 = vmul.f32 %v1228, %v1238
      %v1265 = vmul.f32 %v1229, %v1238
      %v1266 = vmul.f32 %v1230, %v1238
      %v1267 = vmul.f32 %v1231, %v1238
      %v1268 = vmul.f32 %v1232, %v1238
      %v1269 = vmul.f32 %v1233, %v1238
      %v1270 = vmul.f32 %v1234, %v1238
      %v1271 = vadd.f32 %v1171, %v1239
      %v1272 = vadd.f32 %v1172, %v1240
      %v1273 = vadd.f32 %v1173, %v1241
      %v1274 = vadd.f32 %v1174, %v1242
      %v1275 = vadd.f32 %v1175, %v1243
      %v1276 = vadd.f32 %v1176, %v1244
      %v1277 = vadd.f32 %v1177, %v1245
      %v1278 = vadd.f32 %v1178, %v1246
      %v1279 = vadd.f32 %v1179, %v1247
      %v1280 = vadd.f32 %v1180, %v1248
      %v1281 = vadd.f32 %v1181, %v1249
      %v1282 = vadd.f32 %v1182, %v1250
      %v1283 = vadd.f32 %v1183, %v1251
      %v1284 = vadd.f32 %v1184, %v1252
      %v1285 = vadd.f32 %v1185, %v1253
      %v1286 = vadd.f32 %v1186, %v1254
      %v1287 = vadd.f32 %v1187, %v1255
      %v1288 = vadd.f32 %v1188, %v1256
      %v1289 = vadd.f32 %v1189, %v1257
      %v1290 = vadd.f32 %v1190, %v1258
      %v1291 = vadd.f32 %v1191, %v1259
      %v1292 = vadd.f32 %v1192, %v1260
      %v1293 = vadd.f32 %v1193, %v1261
      %v1294 = vadd.f32 %v1194, %v1262
      %v1295 = vadd.f32 %v1195, %v1263
      %v1296 = vadd.f32 %v1196, %v1264
      %v1297 = vadd.f32 %v1197, %v1265
      %v1298 = vadd.f32 %v1198, %v1266
      %v1299 = vadd.f32 %v1199, %v1267
      %v1300 = vadd.f32 %v1200, %v1268
      %v1301 = vadd.f32 %v1201, %v1269
      %v1302 = vadd.f32 %v1202, %v1270
      %v1303 = vld [vmem:[%s796] sm:$0xff]
      %v1304 = vld [vmem:[%s796 + $0x8] sm:$0xff]
      %v1305 = vld [vmem:[%s796 + $0x18] sm:$0xff]
      %v1306 = vld [vmem:[%s796 + $0x20] sm:$0xff]
      %v1307 = vld [vmem:[%s796 + $0x30] sm:$0xff]
      %v1308 = vld [vmem:[%s796 + $0x38] sm:$0xff]
      %v1309 = vld [vmem:[%s796 + $0x48] sm:$0xff]
      %v1310 = vld [vmem:[%s796 + $0x50] sm:$0xff]
      %v1311 = vld [vmem:[%s796 + $0x60] sm:$0xff]
      %v1312 = vld [vmem:[%s796 + $0x68] sm:$0xff]
      %v1313 = vld [vmem:[%s796 + $0x78] sm:$0xff]
      %v1314 = vld [vmem:[%s796 + $0x80] sm:$0xff]
      %v1315 = vld [vmem:[%s796 + $0x90] sm:$0xff]
      %v1316 = vld [vmem:[%s796 + $0x98] sm:$0xff]
      %v1317 = vld [vmem:[%s796 + $0xa8] sm:$0xff]
      %v1318 = vld [vmem:[%s796 + $0xb0] sm:$0xff]
      %v1319 = vld [vmem:[%s796 + $0xc0] sm:$0xff]
      %v1320 = vld [vmem:[%s796 + $0xc8] sm:$0xff]
      %v1321 = vld [vmem:[%s796 + $0xd8] sm:$0xff]
      %v1322 = vld [vmem:[%s796 + $0xe0] sm:$0xff]
      %v1323 = vld [vmem:[%s796 + $0xf0] sm:$0xff]
      %v1324 = vld [vmem:[%s796 + $0xf8] sm:$0xff]
      %v1325 = vld [vmem:[%s796 + $0x108] sm:$0xff]
      %v1326 = vld [vmem:[%s796 + $0x110] sm:$0xff]
      %v1327 = vld [vmem:[%s796 + $0x120] sm:$0xff]
      %v1328 = vld [vmem:[%s796 + $0x128] sm:$0xff]
      %v1329 = vld [vmem:[%s796 + $0x138] sm:$0xff]
      %v1330 = vld [vmem:[%s796 + $0x140] sm:$0xff]
      %v1331 = vld [vmem:[%s796 + $0x150] sm:$0xff]
      %v1332 = vld [vmem:[%s796 + $0x158] sm:$0xff]
      %v1333 = vld [vmem:[%s796 + $0x168] sm:$0xff]
      %v1334 = vld [vmem:[%s796 + $0x170] sm:$0xff]
      %v1335 = vlaneseq
      %v1336 = vshrl.u32 %v1335, 7
      %v1337 = vsub.s32 0, %v1336
      %v1338 = vrot.slane %v1032, %v1337
      %v1339 = vmul.f32 %v1303, %v1338
      %v1340 = vmul.f32 %v1304, %v1338
      %v1341 = vmul.f32 %v1305, %v1338
      %v1342 = vmul.f32 %v1306, %v1338
      %v1343 = vmul.f32 %v1307, %v1338
      %v1344 = vmul.f32 %v1308, %v1338
      %v1345 = vmul.f32 %v1309, %v1338
      %v1346 = vmul.f32 %v1310, %v1338
      %v1347 = vmul.f32 %v1311, %v1338
      %v1348 = vmul.f32 %v1312, %v1338
      %v1349 = vmul.f32 %v1313, %v1338
      %v1350 = vmul.f32 %v1314, %v1338
      %v1351 = vmul.f32 %v1315, %v1338
      %v1352 = vmul.f32 %v1316, %v1338
      %v1353 = vmul.f32 %v1317, %v1338
      %v1354 = vmul.f32 %v1318, %v1338
      %v1355 = vmul.f32 %v1319, %v1338
      %v1356 = vmul.f32 %v1320, %v1338
      %v1357 = vmul.f32 %v1321, %v1338
      %v1358 = vmul.f32 %v1322, %v1338
      %v1359 = vmul.f32 %v1323, %v1338
      %v1360 = vmul.f32 %v1324, %v1338
      %v1361 = vmul.f32 %v1325, %v1338
      %v1362 = vmul.f32 %v1326, %v1338
      %v1363 = vmul.f32 %v1327, %v1338
      %v1364 = vmul.f32 %v1328, %v1338
      %v1365 = vmul.f32 %v1329, %v1338
      %v1366 = vmul.f32 %v1330, %v1338
      %v1367 = vmul.f32 %v1331, %v1338
      %v1368 = vmul.f32 %v1332, %v1338
      %v1369 = vmul.f32 %v1333, %v1338
      %v1370 = vmul.f32 %v1334, %v1338
      %v1371 = vadd.f32 %v1271, %v1339
      %v1372 = vadd.f32 %v1272, %v1340
      %v1373 = vadd.f32 %v1273, %v1341
      %v1374 = vadd.f32 %v1274, %v1342
      %v1375 = vadd.f32 %v1275, %v1343
      %v1376 = vadd.f32 %v1276, %v1344
      %v1377 = vadd.f32 %v1277, %v1345
      %v1378 = vadd.f32 %v1278, %v1346
      %v1379 = vadd.f32 %v1279, %v1347
      %v1380 = vadd.f32 %v1280, %v1348
      %v1381 = vadd.f32 %v1281, %v1349
      %v1382 = vadd.f32 %v1282, %v1350
      %v1383 = vadd.f32 %v1283, %v1351
      %v1384 = vadd.f32 %v1284, %v1352
      %v1385 = vadd.f32 %v1285, %v1353
      %v1386 = vadd.f32 %v1286, %v1354
      %v1387 = vadd.f32 %v1287, %v1355
      %v1388 = vadd.f32 %v1288, %v1356
      %v1389 = vadd.f32 %v1289, %v1357
      %v1390 = vadd.f32 %v1290, %v1358
      %v1391 = vadd.f32 %v1291, %v1359
      %v1392 = vadd.f32 %v1292, %v1360
      %v1393 = vadd.f32 %v1293, %v1361
      %v1394 = vadd.f32 %v1294, %v1362
      %v1395 = vadd.f32 %v1295, %v1363
      %v1396 = vadd.f32 %v1296, %v1364
      %v1397 = vadd.f32 %v1297, %v1365
      %v1398 = vadd.f32 %v1298, %v1366
      %v1399 = vadd.f32 %v1299, %v1367
      %v1400 = vadd.f32 %v1300, %v1368
      %v1401 = vadd.f32 %v1301, %v1369
      %v1402 = vadd.f32 %v1302, %v1370
      %v1403 = vld [vmem:[%s796 + $0x1] sm:$0xff]
      %v1404 = vld [vmem:[%s796 + $0x9] sm:$0xff]
      %v1405 = vld [vmem:[%s796 + $0x19] sm:$0xff]
      %v1406 = vld [vmem:[%s796 + $0x21] sm:$0xff]
      %v1407 = vld [vmem:[%s796 + $0x31] sm:$0xff]
      %v1408 = vld [vmem:[%s796 + $0x39] sm:$0xff]
      %v1409 = vld [vmem:[%s796 + $0x49] sm:$0xff]
      %v1410 = vld [vmem:[%s796 + $0x51] sm:$0xff]
      %v1411 = vld [vmem:[%s796 + $0x61] sm:$0xff]
      %v1412 = vld [vmem:[%s796 + $0x69] sm:$0xff]
      %v1413 = vld [vmem:[%s796 + $0x79] sm:$0xff]
      %v1414 = vld [vmem:[%s796 + $0x81] sm:$0xff]
      %v1415 = vld [vmem:[%s796 + $0x91] sm:$0xff]
      %v1416 = vld [vmem:[%s796 + $0x99] sm:$0xff]
      %v1417 = vld [vmem:[%s796 + $0xa9] sm:$0xff]
      %v1418 = vld [vmem:[%s796 + $0xb1] sm:$0xff]
      %v1419 = vld [vmem:[%s796 + $0xc1] sm:$0xff]
      %v1420 = vld [vmem:[%s796 + $0xc9] sm:$0xff]
      %v1421 = vld [vmem:[%s796 + $0xd9] sm:$0xff]
      %v1422 = vld [vmem:[%s796 + $0xe1] sm:$0xff]
      %v1423 = vld [vmem:[%s796 + $0xf1] sm:$0xff]
      %v1424 = vld [vmem:[%s796 + $0xf9] sm:$0xff]
      %v1425 = vld [vmem:[%s796 + $0x109] sm:$0xff]
      %v1426 = vld [vmem:[%s796 + $0x111] sm:$0xff]
      %v1427 = vld [vmem:[%s796 + $0x121] sm:$0xff]
      %v1428 = vld [vmem:[%s796 + $0x129] sm:$0xff]
      %v1429 = vld [vmem:[%s796 + $0x139] sm:$0xff]
      %v1430 = vld [vmem:[%s796 + $0x141] sm:$0xff]
      %v1431 = vld [vmem:[%s796 + $0x151] sm:$0xff]
      %v1432 = vld [vmem:[%s796 + $0x159] sm:$0xff]
      %v1433 = vld [vmem:[%s796 + $0x169] sm:$0xff]
      %v1434 = vld [vmem:[%s796 + $0x171] sm:$0xff]
      %v1435 = vlaneseq
      %v1436 = vshrl.u32 %v1435, 7
      %v1437 = vsub.s32 1, %v1436
      %v1438 = vrot.slane %v1032, %v1437
      %v1439 = vmul.f32 %v1403, %v1438
      %v1440 = vmul.f32 %v1404, %v1438
      %v1441 = vmul.f32 %v1405, %v1438
      %v1442 = vmul.f32 %v1406, %v1438
      %v1443 = vmul.f32 %v1407, %v1438
      %v1444 = vmul.f32 %v1408, %v1438
      %v1445 = vmul.f32 %v1409, %v1438
      %v1446 = vmul.f32 %v1410, %v1438
      %v1447 = vmul.f32 %v1411, %v1438
      %v1448 = vmul.f32 %v1412, %v1438
      %v1449 = vmul.f32 %v1413, %v1438
      %v1450 = vmul.f32 %v1414, %v1438
      %v1451 = vmul.f32 %v1415, %v1438
      %v1452 = vmul.f32 %v1416, %v1438
      %v1453 = vmul.f32 %v1417, %v1438
      %v1454 = vmul.f32 %v1418, %v1438
      %v1455 = vmul.f32 %v1419, %v1438
      %v1456 = vmul.f32 %v1420, %v1438
      %v1457 = vmul.f32 %v1421, %v1438
      %v1458 = vmul.f32 %v1422, %v1438
      %v1459 = vmul.f32 %v1423, %v1438
      %v1460 = vmul.f32 %v1424, %v1438
      %v1461 = vmul.f32 %v1425, %v1438
      %v1462 = vmul.f32 %v1426, %v1438
      %v1463 = vmul.f32 %v1427, %v1438
      %v1464 = vmul.f32 %v1428, %v1438
      %v1465 = vmul.f32 %v1429, %v1438
      %v1466 = vmul.f32 %v1430, %v1438
      %v1467 = vmul.f32 %v1431, %v1438
      %v1468 = vmul.f32 %v1432, %v1438
      %v1469 = vmul.f32 %v1433, %v1438
      %v1470 = vmul.f32 %v1434, %v1438
      %v1471 = vadd.f32 %v1371, %v1439
      %v1472 = vadd.f32 %v1372, %v1440
      %v1473 = vadd.f32 %v1373, %v1441
      %v1474 = vadd.f32 %v1374, %v1442
      %v1475 = vadd.f32 %v1375, %v1443
      %v1476 = vadd.f32 %v1376, %v1444
      %v1477 = vadd.f32 %v1377, %v1445
      %v1478 = vadd.f32 %v1378, %v1446
      %v1479 = vadd.f32 %v1379, %v1447
      %v1480 = vadd.f32 %v1380, %v1448
      %v1481 = vadd.f32 %v1381, %v1449
      %v1482 = vadd.f32 %v1382, %v1450
      %v1483 = vadd.f32 %v1383, %v1451
      %v1484 = vadd.f32 %v1384, %v1452
      %v1485 = vadd.f32 %v1385, %v1453
      %v1486 = vadd.f32 %v1386, %v1454
      %v1487 = vadd.f32 %v1387, %v1455
      %v1488 = vadd.f32 %v1388, %v1456
      %v1489 = vadd.f32 %v1389, %v1457
      %v1490 = vadd.f32 %v1390, %v1458
      %v1491 = vadd.f32 %v1391, %v1459
      %v1492 = vadd.f32 %v1392, %v1460
      %v1493 = vadd.f32 %v1393, %v1461
      %v1494 = vadd.f32 %v1394, %v1462
      %v1495 = vadd.f32 %v1395, %v1463
      %v1496 = vadd.f32 %v1396, %v1464
      %v1497 = vadd.f32 %v1397, %v1465
      %v1498 = vadd.f32 %v1398, %v1466
      %v1499 = vadd.f32 %v1399, %v1467
      %v1500 = vadd.f32 %v1400, %v1468
      %v1501 = vadd.f32 %v1401, %v1469
      %v1502 = vadd.f32 %v1402, %v1470
      %v1503 = vld [vmem:[%s796 + $0x2] sm:$0xff]
      %v1504 = vld [vmem:[%s796 + $0xa] sm:$0xff]
      %v1505 = vld [vmem:[%s796 + $0x1a] sm:$0xff]
      %v1506 = vld [vmem:[%s796 + $0x22] sm:$0xff]
      %v1507 = vld [vmem:[%s796 + $0x32] sm:$0xff]
      %v1508 = vld [vmem:[%s796 + $0x3a] sm:$0xff]
      %v1509 = vld [vmem:[%s796 + $0x4a] sm:$0xff]
      %v1510 = vld [vmem:[%s796 + $0x52] sm:$0xff]
      %v1511 = vld [vmem:[%s796 + $0x62] sm:$0xff]
      %v1512 = vld [vmem:[%s796 + $0x6a] sm:$0xff]
      %v1513 = vld [vmem:[%s796 + $0x7a] sm:$0xff]
      %v1514 = vld [vmem:[%s796 + $0x82] sm:$0xff]
      %v1515 = vld [vmem:[%s796 + $0x92] sm:$0xff]
      %v1516 = vld [vmem:[%s796 + $0x9a] sm:$0xff]
      %v1517 = vld [vmem:[%s796 + $0xaa] sm:$0xff]
      %v1518 = vld [vmem:[%s796 + $0xb2] sm:$0xff]
      %v1519 = vld [vmem:[%s796 + $0xc2] sm:$0xff]
      %v1520 = vld [vmem:[%s796 + $0xca] sm:$0xff]
      %v1521 = vld [vmem:[%s796 + $0xda] sm:$0xff]
      %v1522 = vld [vmem:[%s796 + $0xe2] sm:$0xff]
      %v1523 = vld [vmem:[%s796 + $0xf2] sm:$0xff]
      %v1524 = vld [vmem:[%s796 + $0xfa] sm:$0xff]
      %v1525 = vld [vmem:[%s796 + $0x10a] sm:$0xff]
      %v1526 = vld [vmem:[%s796 + $0x112] sm:$0xff]
      %v1527 = vld [vmem:[%s796 + $0x122] sm:$0xff]
      %v1528 = vld [vmem:[%s796 + $0x12a] sm:$0xff]
      %v1529 = vld [vmem:[%s796 + $0x13a] sm:$0xff]
      %v1530 = vld [vmem:[%s796 + $0x142] sm:$0xff]
      %v1531 = vld [vmem:[%s796 + $0x152] sm:$0xff]
      %v1532 = vld [vmem:[%s796 + $0x15a] sm:$0xff]
      %v1533 = vld [vmem:[%s796 + $0x16a] sm:$0xff]
      %v1534 = vld [vmem:[%s796 + $0x172] sm:$0xff]
      %v1535 = vlaneseq
      %v1536 = vshrl.u32 %v1535, 7
      %v1537 = vsub.s32 2, %v1536
      %v1538 = vrot.slane %v1032, %v1537
      %v1539 = vmul.f32 %v1503, %v1538
      %v1540 = vmul.f32 %v1504, %v1538
      %v1541 = vmul.f32 %v1505, %v1538
      %v1542 = vmul.f32 %v1506, %v1538
      %v1543 = vmul.f32 %v1507, %v1538
      %v1544 = vmul.f32 %v1508, %v1538
      %v1545 = vmul.f32 %v1509, %v1538
      %v1546 = vmul.f32 %v1510, %v1538
      %v1547 = vmul.f32 %v1511, %v1538
      %v1548 = vmul.f32 %v1512, %v1538
      %v1549 = vmul.f32 %v1513, %v1538
      %v1550 = vmul.f32 %v1514, %v1538
      %v1551 = vmul.f32 %v1515, %v1538
      %v1552 = vmul.f32 %v1516, %v1538
      %v1553 = vmul.f32 %v1517, %v1538
      %v1554 = vmul.f32 %v1518, %v1538
      %v1555 = vmul.f32 %v1519, %v1538
      %v1556 = vmul.f32 %v1520, %v1538
      %v1557 = vmul.f32 %v1521, %v1538
      %v1558 = vmul.f32 %v1522, %v1538
      %v1559 = vmul.f32 %v1523, %v1538
      %v1560 = vmul.f32 %v1524, %v1538
      %v1561 = vmul.f32 %v1525, %v1538
      %v1562 = vmul.f32 %v1526, %v1538
      %v1563 = vmul.f32 %v1527, %v1538
      %v1564 = vmul.f32 %v1528, %v1538
      %v1565 = vmul.f32 %v1529, %v1538
      %v1566 = vmul.f32 %v1530, %v1538
      %v1567 = vmul.f32 %v1531, %v1538
      %v1568 = vmul.f32 %v1532, %v1538
      %v1569 = vmul.f32 %v1533, %v1538
      %v1570 = vmul.f32 %v1534, %v1538
      %v1571 = vadd.f32 %v1471, %v1539
      %v1572 = vadd.f32 %v1472, %v1540
      %v1573 = vadd.f32 %v1473, %v1541
      %v1574 = vadd.f32 %v1474, %v1542
      %v1575 = vadd.f32 %v1475, %v1543
      %v1576 = vadd.f32 %v1476, %v1544
      %v1577 = vadd.f32 %v1477, %v1545
      %v1578 = vadd.f32 %v1478, %v1546
      %v1579 = vadd.f32 %v1479, %v1547
      %v1580 = vadd.f32 %v1480, %v1548
      %v1581 = vadd.f32 %v1481, %v1549
      %v1582 = vadd.f32 %v1482, %v1550
      %v1583 = vadd.f32 %v1483, %v1551
      %v1584 = vadd.f32 %v1484, %v1552
      %v1585 = vadd.f32 %v1485, %v1553
      %v1586 = vadd.f32 %v1486, %v1554
      %v1587 = vadd.f32 %v1487, %v1555
      %v1588 = vadd.f32 %v1488, %v1556
      %v1589 = vadd.f32 %v1489, %v1557
      %v1590 = vadd.f32 %v1490, %v1558
      %v1591 = vadd.f32 %v1491, %v1559
      %v1592 = vadd.f32 %v1492, %v1560
      %v1593 = vadd.f32 %v1493, %v1561
      %v1594 = vadd.f32 %v1494, %v1562
      %v1595 = vadd.f32 %v1495, %v1563
      %v1596 = vadd.f32 %v1496, %v1564
      %v1597 = vadd.f32 %v1497, %v1565
      %v1598 = vadd.f32 %v1498, %v1566
      %v1599 = vadd.f32 %v1499, %v1567
      %v1600 = vadd.f32 %v1500, %v1568
      %v1601 = vadd.f32 %v1501, %v1569
      %v1602 = vadd.f32 %v1502, %v1570
      %s1603 = scalar_lea.vmem [#allocation2], 48
      %v1604 = vld [vmem:[%s1603] sm:$0xff]
      %v1605 = vld [vmem:[%s1603 + $0x8] sm:$0xff]
      %v1606 = vld [vmem:[%s1603 + $0x18] sm:$0xff]
      %v1607 = vld [vmem:[%s1603 + $0x20] sm:$0xff]
      %v1608 = vld [vmem:[%s1603 + $0x30] sm:$0xff]
      %v1609 = vld [vmem:[%s1603 + $0x38] sm:$0xff]
      %v1610 = vld [vmem:[%s1603 + $0x48] sm:$0xff]
      %v1611 = vld [vmem:[%s1603 + $0x50] sm:$0xff]
      %v1612 = vld [vmem:[%s1603 + $0x60] sm:$0xff]
      %v1613 = vld [vmem:[%s1603 + $0x68] sm:$0xff]
      %v1614 = vld [vmem:[%s1603 + $0x78] sm:$0xff]
      %v1615 = vld [vmem:[%s1603 + $0x80] sm:$0xff]
      %v1616 = vld [vmem:[%s1603 + $0x90] sm:$0xff]
      %v1617 = vld [vmem:[%s1603 + $0x98] sm:$0xff]
      %v1618 = vld [vmem:[%s1603 + $0xa8] sm:$0xff]
      %v1619 = vld [vmem:[%s1603 + $0xb0] sm:$0xff]
      %v1620 = vld [vmem:[%s1603 + $0xc0] sm:$0xff]
      %v1621 = vld [vmem:[%s1603 + $0xc8] sm:$0xff]
      %v1622 = vld [vmem:[%s1603 + $0xd8] sm:$0xff]
      %v1623 = vld [vmem:[%s1603 + $0xe0] sm:$0xff]
      %v1624 = vld [vmem:[%s1603 + $0xf0] sm:$0xff]
      %v1625 = vld [vmem:[%s1603 + $0xf8] sm:$0xff]
      %v1626 = vld [vmem:[%s1603 + $0x108] sm:$0xff]
      %v1627 = vld [vmem:[%s1603 + $0x110] sm:$0xff]
      %v1628 = vld [vmem:[%s1603 + $0x120] sm:$0xff]
      %v1629 = vld [vmem:[%s1603 + $0x128] sm:$0xff]
      %v1630 = vld [vmem:[%s1603 + $0x138] sm:$0xff]
      %v1631 = vld [vmem:[%s1603 + $0x140] sm:$0xff]
      %v1632 = vld [vmem:[%s1603 + $0x150] sm:$0xff]
      %v1633 = vld [vmem:[%s1603 + $0x158] sm:$0xff]
      %v1634 = vld [vmem:[%s1603 + $0x168] sm:$0xff]
      %v1635 = vld [vmem:[%s1603 + $0x170] sm:$0xff]
      %v1636 = vlaneseq
      %v1637 = vshrl.u32 %v1636, 7
      %v1638 = vsub.s32 0, %v1637
      %v1639 = vrot.slane %v1033, %v1638
      %v1640 = vmul.f32 %v1604, %v1639
      %v1641 = vmul.f32 %v1605, %v1639
      %v1642 = vmul.f32 %v1606, %v1639
      %v1643 = vmul.f32 %v1607, %v1639
      %v1644 = vmul.f32 %v1608, %v1639
      %v1645 = vmul.f32 %v1609, %v1639
      %v1646 = vmul.f32 %v1610, %v1639
      %v1647 = vmul.f32 %v1611, %v1639
      %v1648 = vmul.f32 %v1612, %v1639
      %v1649 = vmul.f32 %v1613, %v1639
      %v1650 = vmul.f32 %v1614, %v1639
      %v1651 = vmul.f32 %v1615, %v1639
      %v1652 = vmul.f32 %v1616, %v1639
      %v1653 = vmul.f32 %v1617, %v1639
      %v1654 = vmul.f32 %v1618, %v1639
      %v1655 = vmul.f32 %v1619, %v1639
      %v1656 = vmul.f32 %v1620, %v1639
      %v1657 = vmul.f32 %v1621, %v1639
      %v1658 = vmul.f32 %v1622, %v1639
      %v1659 = vmul.f32 %v1623, %v1639
      %v1660 = vmul.f32 %v1624, %v1639
      %v1661 = vmul.f32 %v1625, %v1639
      %v1662 = vmul.f32 %v1626, %v1639
      %v1663 = vmul.f32 %v1627, %v1639
      %v1664 = vmul.f32 %v1628, %v1639
      %v1665 = vmul.f32 %v1629, %v1639
      %v1666 = vmul.f32 %v1630, %v1639
      %v1667 = vmul.f32 %v1631, %v1639
      %v1668 = vmul.f32 %v1632, %v1639
      %v1669 = vmul.f32 %v1633, %v1639
      %v1670 = vmul.f32 %v1634, %v1639
      %v1671 = vmul.f32 %v1635, %v1639
      %v1672 = vadd.f32 %v1571, %v1640
      %v1673 = vadd.f32 %v1572, %v1641
      %v1674 = vadd.f32 %v1573, %v1642
      %v1675 = vadd.f32 %v1574, %v1643
      %v1676 = vadd.f32 %v1575, %v1644
      %v1677 = vadd.f32 %v1576, %v1645
      %v1678 = vadd.f32 %v1577, %v1646
      %v1679 = vadd.f32 %v1578, %v1647
      %v1680 = vadd.f32 %v1579, %v1648
      %v1681 = vadd.f32 %v1580, %v1649
      %v1682 = vadd.f32 %v1581, %v1650
      %v1683 = vadd.f32 %v1582, %v1651
      %v1684 = vadd.f32 %v1583, %v1652
      %v1685 = vadd.f32 %v1584, %v1653
      %v1686 = vadd.f32 %v1585, %v1654
      %v1687 = vadd.f32 %v1586, %v1655
      %v1688 = vadd.f32 %v1587, %v1656
      %v1689 = vadd.f32 %v1588, %v1657
      %v1690 = vadd.f32 %v1589, %v1658
      %v1691 = vadd.f32 %v1590, %v1659
      %v1692 = vadd.f32 %v1591, %v1660
      %v1693 = vadd.f32 %v1592, %v1661
      %v1694 = vadd.f32 %v1593, %v1662
      %v1695 = vadd.f32 %v1594, %v1663
      %v1696 = vadd.f32 %v1595, %v1664
      %v1697 = vadd.f32 %v1596, %v1665
      %v1698 = vadd.f32 %v1597, %v1666
      %v1699 = vadd.f32 %v1598, %v1667
      %v1700 = vadd.f32 %v1599, %v1668
      %v1701 = vadd.f32 %v1600, %v1669
      %v1702 = vadd.f32 %v1601, %v1670
      %v1703 = vadd.f32 %v1602, %v1671
      %v1704 = vld [vmem:[%s1603 + $0x1] sm:$0xff]
      %v1705 = vld [vmem:[%s1603 + $0x9] sm:$0xff]
      %v1706 = vld [vmem:[%s1603 + $0x19] sm:$0xff]
      %v1707 = vld [vmem:[%s1603 + $0x21] sm:$0xff]
      %v1708 = vld [vmem:[%s1603 + $0x31] sm:$0xff]
      %v1709 = vld [vmem:[%s1603 + $0x39] sm:$0xff]
      %v1710 = vld [vmem:[%s1603 + $0x49] sm:$0xff]
      %v1711 = vld [vmem:[%s1603 + $0x51] sm:$0xff]
      %v1712 = vld [vmem:[%s1603 + $0x61] sm:$0xff]
      %v1713 = vld [vmem:[%s1603 + $0x69] sm:$0xff]
      %v1714 = vld [vmem:[%s1603 + $0x79] sm:$0xff]
      %v1715 = vld [vmem:[%s1603 + $0x81] sm:$0xff]
      %v1716 = vld [vmem:[%s1603 + $0x91] sm:$0xff]
      %v1717 = vld [vmem:[%s1603 + $0x99] sm:$0xff]
      %v1718 = vld [vmem:[%s1603 + $0xa9] sm:$0xff]
      %v1719 = vld [vmem:[%s1603 + $0xb1] sm:$0xff]
      %v1720 = vld [vmem:[%s1603 + $0xc1] sm:$0xff]
      %v1721 = vld [vmem:[%s1603 + $0xc9] sm:$0xff]
      %v1722 = vld [vmem:[%s1603 + $0xd9] sm:$0xff]
      %v1723 = vld [vmem:[%s1603 + $0xe1] sm:$0xff]
      %v1724 = vld [vmem:[%s1603 + $0xf1] sm:$0xff]
      %v1725 = vld [vmem:[%s1603 + $0xf9] sm:$0xff]
      %v1726 = vld [vmem:[%s1603 + $0x109] sm:$0xff]
      %v1727 = vld [vmem:[%s1603 + $0x111] sm:$0xff]
      %v1728 = vld [vmem:[%s1603 + $0x121] sm:$0xff]
      %v1729 = vld [vmem:[%s1603 + $0x129] sm:$0xff]
      %v1730 = vld [vmem:[%s1603 + $0x139] sm:$0xff]
      %v1731 = vld [vmem:[%s1603 + $0x141] sm:$0xff]
      %v1732 = vld [vmem:[%s1603 + $0x151] sm:$0xff]
      %v1733 = vld [vmem:[%s1603 + $0x159] sm:$0xff]
      %v1734 = vld [vmem:[%s1603 + $0x169] sm:$0xff]
      %v1735 = vld [vmem:[%s1603 + $0x171] sm:$0xff]
      %v1736 = vlaneseq
      %v1737 = vshrl.u32 %v1736, 7
      %v1738 = vsub.s32 1, %v1737
      %v1739 = vrot.slane %v1033, %v1738
      %v1740 = vmul.f32 %v1704, %v1739
      %v1741 = vmul.f32 %v1705, %v1739
      %v1742 = vmul.f32 %v1706, %v1739
      %v1743 = vmul.f32 %v1707, %v1739
      %v1744 = vmul.f32 %v1708, %v1739
      %v1745 = vmul.f32 %v1709, %v1739
      %v1746 = vmul.f32 %v1710, %v1739
      %v1747 = vmul.f32 %v1711, %v1739
      %v1748 = vmul.f32 %v1712, %v1739
      %v1749 = vmul.f32 %v1713, %v1739
      %v1750 = vmul.f32 %v1714, %v1739
      %v1751 = vmul.f32 %v1715, %v1739
      %v1752 = vmul.f32 %v1716, %v1739
      %v1753 = vmul.f32 %v1717, %v1739
      %v1754 = vmul.f32 %v1718, %v1739
      %v1755 = vmul.f32 %v1719, %v1739
      %v1756 = vmul.f32 %v1720, %v1739
      %v1757 = vmul.f32 %v1721, %v1739
      %v1758 = vmul.f32 %v1722, %v1739
      %v1759 = vmul.f32 %v1723, %v1739
      %v1760 = vmul.f32 %v1724, %v1739
      %v1761 = vmul.f32 %v1725, %v1739
      %v1762 = vmul.f32 %v1726, %v1739
      %v1763 = vmul.f32 %v1727, %v1739
      %v1764 = vmul.f32 %v1728, %v1739
      %v1765 = vmul.f32 %v1729, %v1739
      %v1766 = vmul.f32 %v1730, %v1739
      %v1767 = vmul.f32 %v1731, %v1739
      %v1768 = vmul.f32 %v1732, %v1739
      %v1769 = vmul.f32 %v1733, %v1739
      %v1770 = vmul.f32 %v1734, %v1739
      %v1771 = vmul.f32 %v1735, %v1739
      %v1772 = vadd.f32 %v1672, %v1740
      %v1773 = vadd.f32 %v1673, %v1741
      %v1774 = vadd.f32 %v1674, %v1742
      %v1775 = vadd.f32 %v1675, %v1743
      %v1776 = vadd.f32 %v1676, %v1744
      %v1777 = vadd.f32 %v1677, %v1745
      %v1778 = vadd.f32 %v1678, %v1746
      %v1779 = vadd.f32 %v1679, %v1747
      %v1780 = vadd.f32 %v1680, %v1748
      %v1781 = vadd.f32 %v1681, %v1749
      %v1782 = vadd.f32 %v1682, %v1750
      %v1783 = vadd.f32 %v1683, %v1751
      %v1784 = vadd.f32 %v1684, %v1752
      %v1785 = vadd.f32 %v1685, %v1753
      %v1786 = vadd.f32 %v1686, %v1754
      %v1787 = vadd.f32 %v1687, %v1755
      %v1788 = vadd.f32 %v1688, %v1756
      %v1789 = vadd.f32 %v1689, %v1757
      %v1790 = vadd.f32 %v1690, %v1758
      %v1791 = vadd.f32 %v1691, %v1759
      %v1792 = vadd.f32 %v1692, %v1760
      %v1793 = vadd.f32 %v1693, %v1761
      %v1794 = vadd.f32 %v1694, %v1762
      %v1795 = vadd.f32 %v1695, %v1763
      %v1796 = vadd.f32 %v1696, %v1764
      %v1797 = vadd.f32 %v1697, %v1765
      %v1798 = vadd.f32 %v1698, %v1766
      %v1799 = vadd.f32 %v1699, %v1767
      %v1800 = vadd.f32 %v1700, %v1768
      %v1801 = vadd.f32 %v1701, %v1769
      %v1802 = vadd.f32 %v1702, %v1770
      %v1803 = vadd.f32 %v1703, %v1771
      %v1804 = vld [vmem:[%s1603 + $0x2] sm:$0xff]
      %v1805 = vld [vmem:[%s1603 + $0xa] sm:$0xff]
      %v1806 = vld [vmem:[%s1603 + $0x1a] sm:$0xff]
      %v1807 = vld [vmem:[%s1603 + $0x22] sm:$0xff]
      %v1808 = vld [vmem:[%s1603 + $0x32] sm:$0xff]
      %v1809 = vld [vmem:[%s1603 + $0x3a] sm:$0xff]
      %v1810 = vld [vmem:[%s1603 + $0x4a] sm:$0xff]
      %v1811 = vld [vmem:[%s1603 + $0x52] sm:$0xff]
      %v1812 = vld [vmem:[%s1603 + $0x62] sm:$0xff]
      %v1813 = vld [vmem:[%s1603 + $0x6a] sm:$0xff]
      %v1814 = vld [vmem:[%s1603 + $0x7a] sm:$0xff]
      %v1815 = vld [vmem:[%s1603 + $0x82] sm:$0xff]
      %v1816 = vld [vmem:[%s1603 + $0x92] sm:$0xff]
      %v1817 = vld [vmem:[%s1603 + $0x9a] sm:$0xff]
      %v1818 = vld [vmem:[%s1603 + $0xaa] sm:$0xff]
      %v1819 = vld [vmem:[%s1603 + $0xb2] sm:$0xff]
      %v1820 = vld [vmem:[%s1603 + $0xc2] sm:$0xff]
      %v1821 = vld [vmem:[%s1603 + $0xca] sm:$0xff]
      %v1822 = vld [vmem:[%s1603 + $0xda] sm:$0xff]
      %v1823 = vld [vmem:[%s1603 + $0xe2] sm:$0xff]
      %v1824 = vld [vmem:[%s1603 + $0xf2] sm:$0xff]
      %v1825 = vld [vmem:[%s1603 + $0xfa] sm:$0xff]
      %v1826 = vld [vmem:[%s1603 + $0x10a] sm:$0xff]
      %v1827 = vld [vmem:[%s1603 + $0x112] sm:$0xff]
      %v1828 = vld [vmem:[%s1603 + $0x122] sm:$0xff]
      %v1829 = vld [vmem:[%s1603 + $0x12a] sm:$0xff]
      %v1830 = vld [vmem:[%s1603 + $0x13a] sm:$0xff]
      %v1831 = vld [vmem:[%s1603 + $0x142] sm:$0xff]
      %v1832 = vld [vmem:[%s1603 + $0x152] sm:$0xff]
      %v1833 = vld [vmem:[%s1603 + $0x15a] sm:$0xff]
      %v1834 = vld [vmem:[%s1603 + $0x16a] sm:$0xff]
      %v1835 = vld [vmem:[%s1603 + $0x172] sm:$0xff]
      %v1836 = vlaneseq
      %v1837 = vshrl.u32 %v1836, 7
      %v1838 = vsub.s32 2, %v1837
      %v1839 = vrot.slane %v1033, %v1838
      %v1840 = vmul.f32 %v1804, %v1839
      %v1841 = vmul.f32 %v1805, %v1839
      %v1842 = vmul.f32 %v1806, %v1839
      %v1843 = vmul.f32 %v1807, %v1839
      %v1844 = vmul.f32 %v1808, %v1839
      %v1845 = vmul.f32 %v1809, %v1839
      %v1846 = vmul.f32 %v1810, %v1839
      %v1847 = vmul.f32 %v1811, %v1839
      %v1848 = vmul.f32 %v1812, %v1839
      %v1849 = vmul.f32 %v1813, %v1839
      %v1850 = vmul.f32 %v1814, %v1839
      %v1851 = vmul.f32 %v1815, %v1839
      %v1852 = vmul.f32 %v1816, %v1839
      %v1853 = vmul.f32 %v1817, %v1839
      %v1854 = vmul.f32 %v1818, %v1839
      %v1855 = vmul.f32 %v1819, %v1839
      %v1856 = vmul.f32 %v1820, %v1839
      %v1857 = vmul.f32 %v1821, %v1839
      %v1858 = vmul.f32 %v1822, %v1839
      %v1859 = vmul.f32 %v1823, %v1839
      %v1860 = vmul.f32 %v1824, %v1839
      %v1861 = vmul.f32 %v1825, %v1839
      %v1862 = vmul.f32 %v1826, %v1839
      %v1863 = vmul.f32 %v1827, %v1839
      %v1864 = vmul.f32 %v1828, %v1839
      %v1865 = vmul.f32 %v1829, %v1839
      %v1866 = vmul.f32 %v1830, %v1839
      %v1867 = vmul.f32 %v1831, %v1839
      %v1868 = vmul.f32 %v1832, %v1839
      %v1869 = vmul.f32 %v1833, %v1839
      %v1870 = vmul.f32 %v1834, %v1839
      %v1871 = vmul.f32 %v1835, %v1839
      %v1872 = vadd.f32 %v1772, %v1840
      %v1873 = vadd.f32 %v1773, %v1841
      %v1874 = vadd.f32 %v1774, %v1842
      %v1875 = vadd.f32 %v1775, %v1843
      %v1876 = vadd.f32 %v1776, %v1844
      %v1877 = vadd.f32 %v1777, %v1845
      %v1878 = vadd.f32 %v1778, %v1846
      %v1879 = vadd.f32 %v1779, %v1847
      %v1880 = vadd.f32 %v1780, %v1848
      %v1881 = vadd.f32 %v1781, %v1849
      %v1882 = vadd.f32 %v1782, %v1850
      %v1883 = vadd.f32 %v1783, %v1851
      %v1884 = vadd.f32 %v1784, %v1852
      %v1885 = vadd.f32 %v1785, %v1853
      %v1886 = vadd.f32 %v1786, %v1854
      %v1887 = vadd.f32 %v1787, %v1855
      %v1888 = vadd.f32 %v1788, %v1856
      %v1889 = vadd.f32 %v1789, %v1857
      %v1890 = vadd.f32 %v1790, %v1858
      %v1891 = vadd.f32 %v1791, %v1859
      %v1892 = vadd.f32 %v1792, %v1860
      %v1893 = vadd.f32 %v1793, %v1861
      %v1894 = vadd.f32 %v1794, %v1862
      %v1895 = vadd.f32 %v1795, %v1863
      %v1896 = vadd.f32 %v1796, %v1864
      %v1897 = vadd.f32 %v1797, %v1865
      %v1898 = vadd.f32 %v1798, %v1866
      %v1899 = vadd.f32 %v1799, %v1867
      %v1900 = vadd.f32 %v1800, %v1868
      %v1901 = vadd.f32 %v1801, %v1869
      %v1902 = vadd.f32 %v1802, %v1870
      %v1903 = vadd.f32 %v1803, %v1871
      %v1905 = vlaneseq
      %v1906 = vshrl.u32 %v1905, 7
      %v1907 = vsub.s32 0, %v1906
      %v1908 = vrot.slane %v1034, %v1907
      %v1910 = vadd.f32 %v1872, %v1908
      %v1911 = vadd.f32 %v1873, %v1908
      %v1912 = vadd.f32 %v1874, %v1908
      %v1913 = vadd.f32 %v1875, %v1908
      %v1914 = vadd.f32 %v1876, %v1908
      %v1915 = vadd.f32 %v1877, %v1908
      %v1916 = vadd.f32 %v1878, %v1908
      %v1917 = vadd.f32 %v1879, %v1908
      %v1918 = vadd.f32 %v1880, %v1908
      %v1919 = vadd.f32 %v1881, %v1908
      %v1920 = vadd.f32 %v1882, %v1908
      %v1921 = vadd.f32 %v1883, %v1908
      %v1922 = vadd.f32 %v1884, %v1908
      %v1923 = vadd.f32 %v1885, %v1908
      %v1924 = vadd.f32 %v1886, %v1908
      %v1925 = vadd.f32 %v1887, %v1908
      %v1926 = vadd.f32 %v1888, %v1908
      %v1927 = vadd.f32 %v1889, %v1908
      %v1928 = vadd.f32 %v1890, %v1908
      %v1929 = vadd.f32 %v1891, %v1908
      %v1930 = vadd.f32 %v1892, %v1908
      %v1931 = vadd.f32 %v1893, %v1908
      %v1932 = vadd.f32 %v1894, %v1908
      %v1933 = vadd.f32 %v1895, %v1908
      %v1934 = vadd.f32 %v1896, %v1908
      %v1935 = vadd.f32 %v1897, %v1908
      %v1936 = vadd.f32 %v1898, %v1908
      %v1937 = vadd.f32 %v1899, %v1908
      %v1938 = vadd.f32 %v1900, %v1908
      %v1939 = vadd.f32 %v1901, %v1908
      %v1940 = vadd.f32 %v1902, %v1908
      %v1941 = vadd.f32 %v1903, %v1908
      %v1942 = vmax.f32 %v1910, 0.0
      %v1943 = vmax.f32 %v1911, 0.0
      %v1944 = vmax.f32 %v1912, 0.0
      %v1945 = vmax.f32 %v1913, 0.0
      %v1946 = vmax.f32 %v1914, 0.0
      %v1947 = vmax.f32 %v1915, 0.0
      %v1948 = vmax.f32 %v1916, 0.0
      %v1949 = vmax.f32 %v1917, 0.0
      %v1950 = vmax.f32 %v1918, 0.0
      %v1951 = vmax.f32 %v1919, 0.0
      %v1952 = vmax.f32 %v1920, 0.0
      %v1953 = vmax.f32 %v1921, 0.0
      %v1954 = vmax.f32 %v1922, 0.0
      %v1955 = vmax.f32 %v1923, 0.0
      %v1956 = vmax.f32 %v1924, 0.0
      %v1957 = vmax.f32 %v1925, 0.0
      %v1958 = vmax.f32 %v1926, 0.0
      %v1959 = vmax.f32 %v1927, 0.0
      %v1960 = vmax.f32 %v1928, 0.0
      %v1961 = vmax.f32 %v1929, 0.0
      %v1962 = vmax.f32 %v1930, 0.0
      %v1963 = vmax.f32 %v1931, 0.0
      %v1964 = vmax.f32 %v1932, 0.0
      %v1965 = vmax.f32 %v1933, 0.0
      %v1966 = vmax.f32 %v1934, 0.0
      %v1967 = vmax.f32 %v1935, 0.0
      %v1968 = vmax.f32 %v1936, 0.0
      %v1969 = vmax.f32 %v1937, 0.0
      %v1970 = vmax.f32 %v1938, 0.0
      %v1971 = vmax.f32 %v1939, 0.0
      %v1972 = vmax.f32 %v1940, 0.0
      %v1973 = vmax.f32 %v1941, 0.0
      %v1974 = vld [vmem:[%s5] sm:$0xff]
      %v1975 = vld [vmem:[%s5 + $0x8] sm:$0xff]
      %v1976 = vld [vmem:[%s5 + $0x10] sm:$0xff]
      %v1977 = vld [vmem:[%s5 + $0x18] sm:$0xff]
      %v1978 = vld [vmem:[%s5 + $0x20] sm:$0xff]
      %v1979 = vld [vmem:[%s5 + $0x28] sm:$0xff]
      %v1980 = vld [vmem:[%s5 + $0x30] sm:$0xff]
      %v1981 = vld [vmem:[%s5 + $0x38] sm:$0xff]
      %v1982 = vld [vmem:[%s5 + $0x40] sm:$0xff]
      %v1983 = vld [vmem:[%s5 + $0x48] sm:$0xff]
      %v1984 = vld [vmem:[%s5 + $0x50] sm:$0xff]
      %v1985 = vld [vmem:[%s5 + $0x58] sm:$0xff]
      %v1986 = vld [vmem:[%s5 + $0x60] sm:$0xff]
      %v1987 = vld [vmem:[%s5 + $0x68] sm:$0xff]
      %v1988 = vld [vmem:[%s5 + $0x70] sm:$0xff]
      %v1989 = vld [vmem:[%s5 + $0x78] sm:$0xff]
      %v1990 = vld [vmem:[%s6] sm:$0x1]
      %v1992 = vlaneseq
      %v1993 = vshrl.u32 %v1992, 7
      %v1994 = vsub.s32 0, %v1993
      %v1995 = vrot.slane %v1990, %v1994
      %1997 = vmatprep.subr.mxu0 0.0
      %1998 = vmatpush1.msra.mxu0 %v1974
      %1999 = vmatprep.subr.mxu0 0.0
      %2000 = vmatpush1.msra.mxu0 %v1975
      %2001 = vmatprep.subr.mxu0 0.0
      %2002 = vmatpush1.msra.mxu0 %v1976
      %2003 = vmatprep.subr.mxu0 0.0
      %2004 = vmatpush1.msra.mxu0 %v1977
      %2005 = vmatprep.subr.mxu0 0.0
      %2006 = vmatpush1.msra.mxu0 %v1978
      %2007 = vmatprep.subr.mxu0 0.0
      %2008 = vmatpush1.msra.mxu0 %v1979
      %2009 = vmatprep.subr.mxu0 0.0
      %2010 = vmatpush1.msra.mxu0 %v1980
      %2011 = vmatprep.subr.mxu0 0.0
      %2012 = vmatpush1.msra.mxu0 %v1981
      %2013 = vmatprep.subr.mxu0 0.0
      %2014 = vmatpush1.msra.mxu0 %v1982
      %2015 = vmatprep.subr.mxu0 0.0
      %2016 = vmatpush1.msra.mxu0 %v1983
      %2017 = vmatprep.subr.mxu0 0.0
      %2018 = vmatpush1.msra.mxu0 %v1984
      %2019 = vmatprep.subr.mxu0 0.0
      %2020 = vmatpush1.msra.mxu0 %v1985
      %2021 = vmatprep.subr.mxu0 0.0
      %2022 = vmatpush1.msra.mxu0 %v1986
      %2023 = vmatprep.subr.mxu0 0.0
      %2024 = vmatpush1.msra.mxu0 %v1987
      %2025 = vmatprep.subr.mxu0 0.0
      %2026 = vmatpush1.msra.mxu0 %v1988
      %2027 = vmatprep.subr.mxu0 0.0
      %2028 = vmatpush1.msra.mxu0 %v1989
      %2029 = vmatprep.subr.mxu0 0.0
      %2030 = vmatpush1.msra.mxu0 0.0
      %2031 = vmatprep.subr.mxu0 0.0
      %2032 = vmatpush1.msra.mxu0 0.0
      %2033 = vmatprep.subr.mxu0 0.0
      %2034 = vmatpush1.msra.mxu0 0.0
      %2035 = vmatprep.subr.mxu0 0.0
      %2036 = vmatpush1.msra.mxu0 0.0
      %2037 = vmatprep.subr.mxu0 0.0
      %2038 = vmatpush1.msra.mxu0 0.0
      %2039 = vmatprep.subr.mxu0 0.0
      %2040 = vmatpush1.msra.mxu0 0.0
      %2041 = vmatprep.subr.mxu0 0.0
      %2042 = vmatpush1.msra.mxu0 0.0
      %2043 = vmatprep.subr.mxu0 0.0
      %2044 = vmatpush1.msra.mxu0 0.0
      %2045 = vmatprep.subr.mxu0 0.0
      %2046 = vmatpush1.msra.mxu0 0.0
      %2047 = vmatprep.subr.mxu0 0.0
      %2048 = vmatpush1.msra.mxu0 0.0
      %2049 = vmatprep.subr.mxu0 0.0
      %2050 = vmatpush1.msra.mxu0 0.0
      %2051 = vmatprep.subr.mxu0 0.0
      %2052 = vmatpush1.msra.mxu0 0.0
      %2053 = vmatprep.subr.mxu0 0.0
      %2054 = vmatpush1.msra.mxu0 0.0
      %2055 = vmatprep.subr.mxu0 0.0
      %2056 = vmatpush1.msra.mxu0 0.0
      %2057 = vmatprep.subr.mxu0 0.0
      %2058 = vmatpush1.msra.mxu0 0.0
      %2059 = vmatprep.subr.mxu0 0.0
      %2060 = vmatpush1.msra.mxu0 0.0
      %2061 = vmatprep.mubr.f32.mxu0 0.0
      %2062 = vmatmul.mubr.f32.gmra.mrb[0].mxu0 %v1942
      %v2063 = vpop.f32.mrb[0].mxu0
      %v2064 = vadd.f32 %v1995, %v2063
      %v2065 = vpop.f32.mrb[0].mxu0
      %2066 = vmatprep.mubr.f32.mxu0 0.0
      %2067 = vmatmul.mubr.f32.gmra.mrb[0].mxu0 %v1943
      %v2068 = vpop.f32.mrb[0].mxu0
      %v2069 = vadd.f32 %v1995, %v2068
      %v2070 = vpop.f32.mrb[0].mxu0
      %2071 = vmatprep.mubr.f32.mxu0 0.0
      %2072 = vmatmul.mubr.f32.gmra.mrb[0].mxu0 %v1944
      %v2073 = vpop.f32.mrb[0].mxu0
      %v2074 = vadd.f32 %v1995, %v2073
      %v2075 = vpop.f32.mrb[0].mxu0
      %2076 = vmatprep.mubr.f32.mxu0 0.0
      %2077 = vmatmul.mubr.f32.gmra.mrb[0].mxu0 %v1945
      %v2078 = vpop.f32.mrb[0].mxu0
      %v2079 = vadd.f32 %v1995, %v2078
      %v2080 = vpop.f32.mrb[0].mxu0
      %2081 = vmatprep.mubr.f32.mxu0 0.0
      %2082 = vmatmul.mubr.f32.gmra.mrb[0].mxu0 %v1946
      %v2083 = vpop.f32.mrb[0].mxu0
      %v2084 = vadd.f32 %v1995, %v2083
      %v2085 = vpop.f32.mrb[0].mxu0
      %2086 = vmatprep.mubr.f32.mxu0 0.0
      %2087 = vmatmul.mubr.f32.gmra.mrb[0].mxu0 %v1947
      %v2088 = vpop.f32.mrb[0].mxu0
      %v2089 = vadd.f32 %v1995, %v2088
      %v2090 = vpop.f32.mrb[0].mxu0
      %2091 = vmatprep.mubr.f32.mxu0 0.0
      %2092 = vmatmul.mubr.f32.gmra.mrb[0].mxu0 %v1948
      %v2093 = vpop.f32.mrb[0].mxu0
      %v2094 = vadd.f32 %v1995, %v2093
      %v2095 = vpop.f32.mrb[0].mxu0
      %2096 = vmatprep.mubr.f32.mxu0 0.0
      %2097 = vmatmul.mubr.f32.gmra.mrb[0].mxu0 %v1949
      %v2098 = vpop.f32.mrb[0].mxu0
      %v2099 = vadd.f32 %v1995, %v2098
      %v2100 = vpop.f32.mrb[0].mxu0
      %2101 = vmatprep.mubr.f32.mxu0 0.0
      %2102 = vmatmul.mubr.f32.gmra.mrb[0].mxu0 %v1950
      %v2103 = vpop.f32.mrb[0].mxu0
      %v2104 = vadd.f32 %v1995, %v2103
      %v2105 = vpop.f32.mrb[0].mxu0
      %2106 = vmatprep.mubr.f32.mxu0 0.0
      %2107 = vmatmul.mubr.f32.gmra.mrb[0].mxu0 %v1951
      %v2108 = vpop.f32.mrb[0].mxu0
      %v2109 = vadd.f32 %v1995, %v2108
      %v2110 = vpop.f32.mrb[0].mxu0
      %2111 = vmatprep.mubr.f32.mxu0 0.0
      %2112 = vmatmul.mubr.f32.gmra.mrb[0].mxu0 %v1952
      %v2113 = vpop.f32.mrb[0].mxu0
      %v2114 = vadd.f32 %v1995, %v2113
      %v2115 = vpop.f32.mrb[0].mxu0
      %2116 = vmatprep.mubr.f32.mxu0 0.0
      %2117 = vmatmul.mubr.f32.gmra.mrb[0].mxu0 %v1953
      %v2118 = vpop.f32.mrb[0].mxu0
      %v2119 = vadd.f32 %v1995, %v2118
      %v2120 = vpop.f32.mrb[0].mxu0
      %2121 = vmatprep.mubr.f32.mxu0 0.0
      %2122 = vmatmul.mubr.f32.gmra.mrb[0].mxu0 %v1954
      %v2123 = vpop.f32.mrb[0].mxu0
      %v2124 = vadd.f32 %v1995, %v2123
      %v2125 = vpop.f32.mrb[0].mxu0
      %2126 = vmatprep.mubr.f32.mxu0 0.0
      %2127 = vmatmul.mubr.f32.gmra.mrb[0].mxu0 %v1955
      %v2128 = vpop.f32.mrb[0].mxu0
      %v2129 = vadd.f32 %v1995, %v2128
      %v2130 = vpop.f32.mrb[0].mxu0
      %2131 = vmatprep.mubr.f32.mxu0 0.0
      %2132 = vmatmul.mubr.f32.gmra.mrb[0].mxu0 %v1956
      %v2133 = vpop.f32.mrb[0].mxu0
      %v2134 = vadd.f32 %v1995, %v2133
      %v2135 = vpop.f32.mrb[0].mxu0
      %2136 = vmatprep.mubr.f32.mxu0 0.0
      %2137 = vmatmul.mubr.f32.gmra.mrb[0].mxu0 %v1957
      %v2138 = vpop.f32.mrb[0].mxu0
      %v2139 = vadd.f32 %v1995, %v2138
      %v2140 = vpop.f32.mrb[0].mxu0
      %2141 = vmatprep.mubr.f32.mxu0 0.0
      %2142 = vmatmul.mubr.f32.gmra.mrb[0].mxu0 %v1958
      %v2143 = vpop.f32.mrb[0].mxu0
      %v2144 = vadd.f32 %v1995, %v2143
      %v2145 = vpop.f32.mrb[0].mxu0
      %2146 = vmatprep.mubr.f32.mxu0 0.0
      %2147 = vmatmul.mubr.f32.gmra.mrb[0].mxu0 %v1959
      %v2148 = vpop.f32.mrb[0].mxu0
      %v2149 = vadd.f32 %v1995, %v2148
      %v2150 = vpop.f32.mrb[0].mxu0
      %2151 = vmatprep.mubr.f32.mxu0 0.0
      %2152 = vmatmul.mubr.f32.gmra.mrb[0].mxu0 %v1960
      %v2153 = vpop.f32.mrb[0].mxu0
      %v2154 = vadd.f32 %v1995, %v2153
      %v2155 = vpop.f32.mrb[0].mxu0
      %2156 = vmatprep.mubr.f32.mxu0 0.0
      %2157 = vmatmul.mubr.f32.gmra.mrb[0].mxu0 %v1961
      %v2158 = vpop.f32.mrb[0].mxu0
      %v2159 = vadd.f32 %v1995, %v2158
      %v2160 = vpop.f32.mrb[0].mxu0
      %2161 = vmatprep.mubr.f32.mxu0 0.0
      %2162 = vmatmul.mubr.f32.gmra.mrb[0].mxu0 %v1962
      %v2163 = vpop.f32.mrb[0].mxu0
      %v2164 = vadd.f32 %v1995, %v2163
      %v2165 = vpop.f32.mrb[0].mxu0
      %2166 = vmatprep.mubr.f32.mxu0 0.0
      %2167 = vmatmul.mubr.f32.gmra.mrb[0].mxu0 %v1963
      %v2168 = vpop.f32.mrb[0].mxu0
      %v2169 = vadd.f32 %v1995, %v2168
      %v2170 = vpop.f32.mrb[0].mxu0
      %2171 = vmatprep.mubr.f32.mxu0 0.0
      %2172 = vmatmul.mubr.f32.gmra.mrb[0].mxu0 %v1964
      %v2173 = vpop.f32.mrb[0].mxu0
      %v2174 = vadd.f32 %v1995, %v2173
      %v2175 = vpop.f32.mrb[0].mxu0
      %2176 = vmatprep.mubr.f32.mxu0 0.0
      %2177 = vmatmul.mubr.f32.gmra.mrb[0].mxu0 %v1965
      %v2178 = vpop.f32.mrb[0].mxu0
      %v2179 = vadd.f32 %v1995, %v2178
      %v2180 = vpop.f32.mrb[0].mxu0
      %2181 = vmatprep.mubr.f32.mxu0 0.0
      %2182 = vmatmul.mubr.f32.gmra.mrb[0].mxu0 %v1966
      %v2183 = vpop.f32.mrb[0].mxu0
      %v2184 = vadd.f32 %v1995, %v2183
      %v2185 = vpop.f32.mrb[0].mxu0
      %2186 = vmatprep.mubr.f32.mxu0 0.0
      %2187 = vmatmul.mubr.f32.gmra.mrb[0].mxu0 %v1967
      %v2188 = vpop.f32.mrb[0].mxu0
      %v2189 = vadd.f32 %v1995, %v2188
      %v2190 = vpop.f32.mrb[0].mxu0
      %2191 = vmatprep.mubr.f32.mxu0 0.0
      %2192 = vmatmul.mubr.f32.gmra.mrb[0].mxu0 %v1968
      %v2193 = vpop.f32.mrb[0].mxu0
      %v2194 = vadd.f32 %v1995, %v2193
      %v2195 = vpop.f32.mrb[0].mxu0
      %2196 = vmatprep.mubr.f32.mxu0 0.0
      %2197 = vmatmul.mubr.f32.gmra.mrb[0].mxu0 %v1969
      %v2198 = vpop.f32.mrb[0].mxu0
      %v2199 = vadd.f32 %v1995, %v2198
      %v2200 = vpop.f32.mrb[0].mxu0
      %2201 = vmatprep.mubr.f32.mxu0 0.0
      %2202 = vmatmul.mubr.f32.gmra.mrb[0].mxu0 %v1970
      %v2203 = vpop.f32.mrb[0].mxu0
      %v2204 = vadd.f32 %v1995, %v2203
      %v2205 = vpop.f32.mrb[0].mxu0
      %2206 = vmatprep.mubr.f32.mxu0 0.0
      %2207 = vmatmul.mubr.f32.gmra.mrb[0].mxu0 %v1971
      %v2208 = vpop.f32.mrb[0].mxu0
      %v2209 = vadd.f32 %v1995, %v2208
      %v2210 = vpop.f32.mrb[0].mxu0
      %2211 = vmatprep.mubr.f32.mxu0 0.0
      %2212 = vmatmul.mubr.f32.gmra.mrb[0].mxu0 %v1972
      %v2213 = vpop.f32.mrb[0].mxu0
      %v2214 = vadd.f32 %v1995, %v2213
      %v2215 = vpop.f32.mrb[0].mxu0
      %2216 = vmatprep.mubr.f32.mxu0 0.0
      %2217 = vmatmul.mubr.f32.gmra.mrb[0].mxu0 %v1973
      %v2218 = vpop.f32.mrb[0].mxu0
      %v2219 = vadd.f32 %v1995, %v2218
      %v2220 = vpop.f32.mrb[0].mxu0
      %2221 = vdwg.mxu0
      %v2222 = vld [vmem:[%s7] sm:$0xf]
      %v2223 = vld [vmem:[%s8] sm:$0x1]
      %v2224 = vld [vmem:[%s399] sm:$0xff]
      %v2225 = vld [vmem:[%s399 + $0x8] sm:$0xff]
      %v2226 = vld [vmem:[%s399 + $0x10] sm:$0xff]
      %v2227 = vld [vmem:[%s399 + $0x18] sm:$0xff]
      %v2228 = vld [vmem:[%s399 + $0x20] sm:$0xff]
      %v2229 = vld [vmem:[%s399 + $0x28] sm:$0xff]
      %v2230 = vld [vmem:[%s399 + $0x30] sm:$0xff]
      %v2231 = vld [vmem:[%s399 + $0x38] sm:$0xff]
      %v2232 = vld [vmem:[%s399 + $0x40] sm:$0xff]
      %v2233 = vld [vmem:[%s399 + $0x48] sm:$0xff]
      %v2234 = vld [vmem:[%s399 + $0x50] sm:$0xff]
      %v2235 = vld [vmem:[%s399 + $0x58] sm:$0xff]
      %v2236 = vld [vmem:[%s399 + $0x60] sm:$0xff]
      %v2237 = vld [vmem:[%s399 + $0x68] sm:$0xff]
      %v2238 = vld [vmem:[%s399 + $0x70] sm:$0xff]
      %v2239 = vld [vmem:[%s399 + $0x78] sm:$0xff]
      %v2240 = vld [vmem:[%s399 + $0x80] sm:$0xff]
      %v2241 = vld [vmem:[%s399 + $0x88] sm:$0xff]
      %v2242 = vld [vmem:[%s399 + $0x90] sm:$0xff]
      %v2243 = vld [vmem:[%s399 + $0x98] sm:$0xff]
      %v2244 = vld [vmem:[%s399 + $0xa0] sm:$0xff]
      %v2245 = vld [vmem:[%s399 + $0xa8] sm:$0xff]
      %v2246 = vld [vmem:[%s399 + $0xb0] sm:$0xff]
      %v2247 = vld [vmem:[%s399 + $0xb8] sm:$0xff]
      %v2248 = vld [vmem:[%s399 + $0xc0] sm:$0xff]
      %v2249 = vld [vmem:[%s399 + $0xc8] sm:$0xff]
      %v2250 = vld [vmem:[%s399 + $0xd0] sm:$0xff]
      %v2251 = vld [vmem:[%s399 + $0xd8] sm:$0xff]
      %v2252 = vld [vmem:[%s399 + $0xe0] sm:$0xff]
      %v2253 = vld [vmem:[%s399 + $0xe8] sm:$0xff]
      %v2254 = vld [vmem:[%s399 + $0xf0] sm:$0xff]
      %v2255 = vld [vmem:[%s399 + $0xf8] sm:$0xff]
      %v2257 = vsel %vm438, %v2224, 0
      %v2260 = vsel %vm438, %v2225, 0
      %v2263 = vsel %vm438, %v2226, 0
      %v2266 = vsel %vm438, %v2227, 0
      %v2269 = vsel %vm438, %v2228, 0
      %v2272 = vsel %vm438, %v2229, 0
      %v2275 = vsel %vm438, %v2230, 0
      %v2278 = vsel %vm438, %v2231, 0
      %v2281 = vsel %vm438, %v2232, 0
      %v2284 = vsel %vm438, %v2233, 0
      %v2287 = vsel %vm438, %v2234, 0
      %v2290 = vsel %vm438, %v2235, 0
      %v2293 = vsel %vm438, %v2236, 0
      %v2296 = vsel %vm438, %v2237, 0
      %v2299 = vsel %vm438, %v2238, 0
      %v2302 = vsel %vm438, %v2239, 0
      %v2305 = vsel %vm438, %v2240, 0
      %v2308 = vsel %vm438, %v2241, 0
      %v2311 = vsel %vm438, %v2242, 0
      %v2314 = vsel %vm438, %v2243, 0
      %v2317 = vsel %vm438, %v2244, 0
      %v2320 = vsel %vm438, %v2245, 0
      %v2323 = vsel %vm438, %v2246, 0
      %v2326 = vsel %vm438, %v2247, 0
      %v2329 = vsel %vm438, %v2248, 0
      %v2332 = vsel %vm438, %v2249, 0
      %v2335 = vsel %vm438, %v2250, 0
      %v2338 = vsel %vm438, %v2251, 0
      %v2341 = vsel %vm438, %v2252, 0
      %v2344 = vsel %vm438, %v2253, 0
      %v2347 = vsel %vm438, %v2254, 0
      %v2350 = vsel %vm438, %v2255, 0
      %v2353 = vsel %vm535, %v2222, 0
      %2355 = vmatprep.subr.mxu0 0.0
      %2356 = vmatpush1.msra.mxu0 %v2353
      %2357 = vmatprep.subr.mxu0 0.0
      %2358 = vmatpush1.msra.mxu0 0.0
      %2359 = vmatprep.subr.mxu0 0.0
      %2360 = vmatpush1.msra.mxu0 0.0
      %2361 = vmatprep.subr.mxu0 0.0
      %2362 = vmatpush1.msra.mxu0 0.0
      %2363 = vmatprep.subr.mxu0 0.0
      %2364 = vmatpush1.msra.mxu0 0.0
      %2365 = vmatprep.subr.mxu0 0.0
      %2366 = vmatpush1.msra.mxu0 0.0
      %2367 = vmatprep.subr.mxu0 0.0
      %2368 = vmatpush1.msra.mxu0 0.0
      %2369 = vmatprep.subr.mxu0 0.0
      %2370 = vmatpush1.msra.mxu0 0.0
      %2371 = vmatprep.subr.mxu0 0.0
      %2372 = vmatpush1.msra.mxu0 0.0
      %2373 = vmatprep.subr.mxu0 0.0
      %2374 = vmatpush1.msra.mxu0 0.0
      %2375 = vmatprep.subr.mxu0 0.0
      %2376 = vmatpush1.msra.mxu0 0.0
      %2377 = vmatprep.subr.mxu0 0.0
      %2378 = vmatpush1.msra.mxu0 0.0
      %2379 = vmatprep.subr.mxu0 0.0
      %2380 = vmatpush1.msra.mxu0 0.0
      %2381 = vmatprep.subr.mxu0 0.0
      %2382 = vmatpush1.msra.mxu0 0.0
      %2383 = vmatprep.subr.mxu0 0.0
      %2384 = vmatpush1.msra.mxu0 0.0
      %2385 = vmatprep.subr.mxu0 0.0
      %2386 = vmatpush1.msra.mxu0 0.0
      %2387 = vmatprep.subr.mxu0 0.0
      %2388 = vmatpush1.msra.mxu0 0.0
      %2389 = vmatprep.subr.mxu0 0.0
      %2390 = vmatpush1.msra.mxu0 0.0
      %2391 = vmatprep.subr.mxu0 0.0
      %2392 = vmatpush1.msra.mxu0 0.0
      %2393 = vmatprep.subr.mxu0 0.0
      %2394 = vmatpush1.msra.mxu0 0.0
      %2395 = vmatprep.subr.mxu0 0.0
      %2396 = vmatpush1.msra.mxu0 0.0
      %2397 = vmatprep.subr.mxu0 0.0
      %2398 = vmatpush1.msra.mxu0 0.0
      %2399 = vmatprep.subr.mxu0 0.0
      %2400 = vmatpush1.msra.mxu0 0.0
      %2401 = vmatprep.subr.mxu0 0.0
      %2402 = vmatpush1.msra.mxu0 0.0
      %2403 = vmatprep.subr.mxu0 0.0
      %2404 = vmatpush1.msra.mxu0 0.0
      %2405 = vmatprep.subr.mxu0 0.0
      %2406 = vmatpush1.msra.mxu0 0.0
      %2407 = vmatprep.subr.mxu0 0.0
      %2408 = vmatpush1.msra.mxu0 0.0
      %2409 = vmatprep.subr.mxu0 0.0
      %2410 = vmatpush1.msra.mxu0 0.0
      %2411 = vmatprep.subr.mxu0 0.0
      %2412 = vmatpush1.msra.mxu0 0.0
      %2413 = vmatprep.subr.mxu0 0.0
      %2414 = vmatpush1.msra.mxu0 0.0
      %2415 = vmatprep.subr.mxu0 0.0
      %2416 = vmatpush1.msra.mxu0 0.0
      %2417 = vmatprep.subr.mxu0 0.0
      %2418 = vmatpush1.msra.mxu0 0.0
      %2419 = vmatprep.mubr.f32.mxu0 0.0
      %2420 = vmatmul.mubr.f32.gmra.mrb[0].mxu0 %v2257
      %v2421 = vpop.f32.mrb[0].mxu0
      %v2422 = vadd.f32 0.0, %v2421
      %v2423 = vpop.f32.mrb[0].mxu0
      %2424 = vmatprep.mubr.f32.mxu0 0.0
      %2425 = vmatmul.mubr.f32.gmra.mrb[0].mxu0 %v2260
      %v2426 = vpop.f32.mrb[0].mxu0
      %v2427 = vadd.f32 0.0, %v2426
      %v2428 = vpop.f32.mrb[0].mxu0
      %2429 = vmatprep.mubr.f32.mxu0 0.0
      %2430 = vmatmul.mubr.f32.gmra.mrb[0].mxu0 %v2263
      %v2431 = vpop.f32.mrb[0].mxu0
      %v2432 = vadd.f32 0.0, %v2431
      %v2433 = vpop.f32.mrb[0].mxu0
      %2434 = vmatprep.mubr.f32.mxu0 0.0
      %2435 = vmatmul.mubr.f32.gmra.mrb[0].mxu0 %v2266
      %v2436 = vpop.f32.mrb[0].mxu0
      %v2437 = vadd.f32 0.0, %v2436
      %v2438 = vpop.f32.mrb[0].mxu0
      %2439 = vmatprep.mubr.f32.mxu0 0.0
      %2440 = vmatmul.mubr.f32.gmra.mrb[0].mxu0 %v2269
      %v2441 = vpop.f32.mrb[0].mxu0
      %v2442 = vadd.f32 0.0, %v2441
      %v2443 = vpop.f32.mrb[0].mxu0
      %2444 = vmatprep.mubr.f32.mxu0 0.0
      %2445 = vmatmul.mubr.f32.gmra.mrb[0].mxu0 %v2272
      %v2446 = vpop.f32.mrb[0].mxu0
      %v2447 = vadd.f32 0.0, %v2446
      %v2448 = vpop.f32.mrb[0].mxu0
      %2449 = vmatprep.mubr.f32.mxu0 0.0
      %2450 = vmatmul.mubr.f32.gmra.mrb[0].mxu0 %v2275
      %v2451 = vpop.f32.mrb[0].mxu0
      %v2452 = vadd.f32 0.0, %v2451
      %v2453 = vpop.f32.mrb[0].mxu0
      %2454 = vmatprep.mubr.f32.mxu0 0.0
      %2455 = vmatmul.mubr.f32.gmra.mrb[0].mxu0 %v2278
      %v2456 = vpop.f32.mrb[0].mxu0
      %v2457 = vadd.f32 0.0, %v2456
      %v2458 = vpop.f32.mrb[0].mxu0
      %2459 = vmatprep.mubr.f32.mxu0 0.0
      %2460 = vmatmul.mubr.f32.gmra.mrb[0].mxu0 %v2281
      %v2461 = vpop.f32.mrb[0].mxu0
      %v2462 = vadd.f32 0.0, %v2461
      %v2463 = vpop.f32.mrb[0].mxu0
      %2464 = vmatprep.mubr.f32.mxu0 0.0
      %2465 = vmatmul.mubr.f32.gmra.mrb[0].mxu0 %v2284
      %v2466 = vpop.f32.mrb[0].mxu0
      %v2467 = vadd.f32 0.0, %v2466
      %v2468 = vpop.f32.mrb[0].mxu0
      %2469 = vmatprep.mubr.f32.mxu0 0.0
      %2470 = vmatmul.mubr.f32.gmra.mrb[0].mxu0 %v2287
      %v2471 = vpop.f32.mrb[0].mxu0
      %v2472 = vadd.f32 0.0, %v2471
      %v2473 = vpop.f32.mrb[0].mxu0
      %2474 = vmatprep.mubr.f32.mxu0 0.0
      %2475 = vmatmul.mubr.f32.gmra.mrb[0].mxu0 %v2290
      %v2476 = vpop.f32.mrb[0].mxu0
      %v2477 = vadd.f32 0.0, %v2476
      %v2478 = vpop.f32.mrb[0].mxu0
      %2479 = vmatprep.mubr.f32.mxu0 0.0
      %2480 = vmatmul.mubr.f32.gmra.mrb[0].mxu0 %v2293
      %v2481 = vpop.f32.mrb[0].mxu0
      %v2482 = vadd.f32 0.0, %v2481
      %v2483 = vpop.f32.mrb[0].mxu0
      %2484 = vmatprep.mubr.f32.mxu0 0.0
      %2485 = vmatmul.mubr.f32.gmra.mrb[0].mxu0 %v2296
      %v2486 = vpop.f32.mrb[0].mxu0
      %v2487 = vadd.f32 0.0, %v2486
      %v2488 = vpop.f32.mrb[0].mxu0
      %2489 = vmatprep.mubr.f32.mxu0 0.0
      %2490 = vmatmul.mubr.f32.gmra.mrb[0].mxu0 %v2299
      %v2491 = vpop.f32.mrb[0].mxu0
      %v2492 = vadd.f32 0.0, %v2491
      %v2493 = vpop.f32.mrb[0].mxu0
      %2494 = vmatprep.mubr.f32.mxu0 0.0
      %2495 = vmatmul.mubr.f32.gmra.mrb[0].mxu0 %v2302
      %v2496 = vpop.f32.mrb[0].mxu0
      %v2497 = vadd.f32 0.0, %v2496
      %v2498 = vpop.f32.mrb[0].mxu0
      %2499 = vmatprep.mubr.f32.mxu0 0.0
      %2500 = vmatmul.mubr.f32.gmra.mrb[0].mxu0 %v2305
      %v2501 = vpop.f32.mrb[0].mxu0
      %v2502 = vadd.f32 0.0, %v2501
      %v2503 = vpop.f32.mrb[0].mxu0
      %2504 = vmatprep.mubr.f32.mxu0 0.0
      %2505 = vmatmul.mubr.f32.gmra.mrb[0].mxu0 %v2308
      %v2506 = vpop.f32.mrb[0].mxu0
      %v2507 = vadd.f32 0.0, %v2506
      %v2508 = vpop.f32.mrb[0].mxu0
      %2509 = vmatprep.mubr.f32.mxu0 0.0
      %2510 = vmatmul.mubr.f32.gmra.mrb[0].mxu0 %v2311
      %v2511 = vpop.f32.mrb[0].mxu0
      %v2512 = vadd.f32 0.0, %v2511
      %v2513 = vpop.f32.mrb[0].mxu0
      %2514 = vmatprep.mubr.f32.mxu0 0.0
      %2515 = vmatmul.mubr.f32.gmra.mrb[0].mxu0 %v2314
      %v2516 = vpop.f32.mrb[0].mxu0
      %v2517 = vadd.f32 0.0, %v2516
      %v2518 = vpop.f32.mrb[0].mxu0
      %2519 = vmatprep.mubr.f32.mxu0 0.0
      %2520 = vmatmul.mubr.f32.gmra.mrb[0].mxu0 %v2317
      %v2521 = vpop.f32.mrb[0].mxu0
      %v2522 = vadd.f32 0.0, %v2521
      %v2523 = vpop.f32.mrb[0].mxu0
      %2524 = vmatprep.mubr.f32.mxu0 0.0
      %2525 = vmatmul.mubr.f32.gmra.mrb[0].mxu0 %v2320
      %v2526 = vpop.f32.mrb[0].mxu0
      %v2527 = vadd.f32 0.0, %v2526
      %v2528 = vpop.f32.mrb[0].mxu0
      %2529 = vmatprep.mubr.f32.mxu0 0.0
      %2530 = vmatmul.mubr.f32.gmra.mrb[0].mxu0 %v2323
      %v2531 = vpop.f32.mrb[0].mxu0
      %v2532 = vadd.f32 0.0, %v2531
      %v2533 = vpop.f32.mrb[0].mxu0
      %2534 = vmatprep.mubr.f32.mxu0 0.0
      %2535 = vmatmul.mubr.f32.gmra.mrb[0].mxu0 %v2326
      %v2536 = vpop.f32.mrb[0].mxu0
      %v2537 = vadd.f32 0.0, %v2536
      %v2538 = vpop.f32.mrb[0].mxu0
      %2539 = vmatprep.mubr.f32.mxu0 0.0
      %2540 = vmatmul.mubr.f32.gmra.mrb[0].mxu0 %v2329
      %v2541 = vpop.f32.mrb[0].mxu0
      %v2542 = vadd.f32 0.0, %v2541
      %v2543 = vpop.f32.mrb[0].mxu0
      %2544 = vmatprep.mubr.f32.mxu0 0.0
      %2545 = vmatmul.mubr.f32.gmra.mrb[0].mxu0 %v2332
      %v2546 = vpop.f32.mrb[0].mxu0
      %v2547 = vadd.f32 0.0, %v2546
      %v2548 = vpop.f32.mrb[0].mxu0
      %2549 = vmatprep.mubr.f32.mxu0 0.0
      %2550 = vmatmul.mubr.f32.gmra.mrb[0].mxu0 %v2335
      %v2551 = vpop.f32.mrb[0].mxu0
      %v2552 = vadd.f32 0.0, %v2551
      %v2553 = vpop.f32.mrb[0].mxu0
      %2554 = vmatprep.mubr.f32.mxu0 0.0
      %2555 = vmatmul.mubr.f32.gmra.mrb[0].mxu0 %v2338
      %v2556 = vpop.f32.mrb[0].mxu0
      %v2557 = vadd.f32 0.0, %v2556
      %v2558 = vpop.f32.mrb[0].mxu0
      %2559 = vmatprep.mubr.f32.mxu0 0.0
      %2560 = vmatmul.mubr.f32.gmra.mrb[0].mxu0 %v2341
      %v2561 = vpop.f32.mrb[0].mxu0
      %v2562 = vadd.f32 0.0, %v2561
      %v2563 = vpop.f32.mrb[0].mxu0
      %2564 = vmatprep.mubr.f32.mxu0 0.0
      %2565 = vmatmul.mubr.f32.gmra.mrb[0].mxu0 %v2344
      %v2566 = vpop.f32.mrb[0].mxu0
      %v2567 = vadd.f32 0.0, %v2566
      %v2568 = vpop.f32.mrb[0].mxu0
      %2569 = vmatprep.mubr.f32.mxu0 0.0
      %2570 = vmatmul.mubr.f32.gmra.mrb[0].mxu0 %v2347
      %v2571 = vpop.f32.mrb[0].mxu0
      %v2572 = vadd.f32 0.0, %v2571
      %v2573 = vpop.f32.mrb[0].mxu0
      %2574 = vmatprep.mubr.f32.mxu0 0.0
      %2575 = vmatmul.mubr.f32.gmra.mrb[0].mxu0 %v2350
      %v2576 = vpop.f32.mrb[0].mxu0
      %v2577 = vadd.f32 0.0, %v2576
      %v2578 = vpop.f32.mrb[0].mxu0
      %2579 = vdwg.mxu0
      %v2580 = vadd.f32 %v2064, %v2422
      %v2581 = vadd.f32 %v2069, %v2427
      %v2582 = vadd.f32 %v2074, %v2432
      %v2583 = vadd.f32 %v2079, %v2437
      %v2584 = vadd.f32 %v2084, %v2442
      %v2585 = vadd.f32 %v2089, %v2447
      %v2586 = vadd.f32 %v2094, %v2452
      %v2587 = vadd.f32 %v2099, %v2457
      %v2588 = vadd.f32 %v2104, %v2462
      %v2589 = vadd.f32 %v2109, %v2467
      %v2590 = vadd.f32 %v2114, %v2472
      %v2591 = vadd.f32 %v2119, %v2477
      %v2592 = vadd.f32 %v2124, %v2482
      %v2593 = vadd.f32 %v2129, %v2487
      %v2594 = vadd.f32 %v2134, %v2492
      %v2595 = vadd.f32 %v2139, %v2497
      %v2596 = vadd.f32 %v2144, %v2502
      %v2597 = vadd.f32 %v2149, %v2507
      %v2598 = vadd.f32 %v2154, %v2512
      %v2599 = vadd.f32 %v2159, %v2517
      %v2600 = vadd.f32 %v2164, %v2522
      %v2601 = vadd.f32 %v2169, %v2527
      %v2602 = vadd.f32 %v2174, %v2532
      %v2603 = vadd.f32 %v2179, %v2537
      %v2604 = vadd.f32 %v2184, %v2542
      %v2605 = vadd.f32 %v2189, %v2547
      %v2606 = vadd.f32 %v2194, %v2552
      %v2607 = vadd.f32 %v2199, %v2557
      %v2608 = vadd.f32 %v2204, %v2562
      %v2609 = vadd.f32 %v2209, %v2567
      %v2610 = vadd.f32 %v2214, %v2572
      %v2611 = vadd.f32 %v2219, %v2577
      %v2613 = vlaneseq
      %v2614 = vshrl.u32 %v2613, 7
      %v2615 = vsub.s32 0, %v2614
      %v2616 = vrot.slane %v2223, %v2615
      %v2618 = vadd.f32 %v2580, %v2616
      %v2619 = vadd.f32 %v2581, %v2616
      %v2620 = vadd.f32 %v2582, %v2616
      %v2621 = vadd.f32 %v2583, %v2616
      %v2622 = vadd.f32 %v2584, %v2616
      %v2623 = vadd.f32 %v2585, %v2616
      %v2624 = vadd.f32 %v2586, %v2616
      %v2625 = vadd.f32 %v2587, %v2616
      %v2626 = vadd.f32 %v2588, %v2616
      %v2627 = vadd.f32 %v2589, %v2616
      %v2628 = vadd.f32 %v2590, %v2616
      %v2629 = vadd.f32 %v2591, %v2616
      %v2630 = vadd.f32 %v2592, %v2616
      %v2631 = vadd.f32 %v2593, %v2616
      %v2632 = vadd.f32 %v2594, %v2616
      %v2633 = vadd.f32 %v2595, %v2616
      %v2634 = vadd.f32 %v2596, %v2616
      %v2635 = vadd.f32 %v2597, %v2616
      %v2636 = vadd.f32 %v2598, %v2616
      %v2637 = vadd.f32 %v2599, %v2616
      %v2638 = vadd.f32 %v2600, %v2616
      %v2639 = vadd.f32 %v2601, %v2616
      %v2640 = vadd.f32 %v2602, %v2616
      %v2641 = vadd.f32 %v2603, %v2616
      %v2642 = vadd.f32 %v2604, %v2616
      %v2643 = vadd.f32 %v2605, %v2616
      %v2644 = vadd.f32 %v2606, %v2616
      %v2645 = vadd.f32 %v2607, %v2616
      %v2646 = vadd.f32 %v2608, %v2616
      %v2647 = vadd.f32 %v2609, %v2616
      %v2648 = vadd.f32 %v2610, %v2616
      %v2649 = vadd.f32 %v2611, %v2616
      %2650 = vst [vmem:[%s356] sm:$0xff] %v2618
      %2651 = vst [vmem:[%s356 + $0x8] sm:$0xff] %v2619
      %2652 = vst [vmem:[%s356 + $0x10] sm:$0xff] %v2620
      %2653 = vst [vmem:[%s356 + $0x18] sm:$0xff] %v2621
      %2654 = vst [vmem:[%s356 + $0x20] sm:$0xff] %v2622
      %2655 = vst [vmem:[%s356 + $0x28] sm:$0xff] %v2623
      %2656 = vst [vmem:[%s356 + $0x30] sm:$0xff] %v2624
      %2657 = vst [vmem:[%s356 + $0x38] sm:$0xff] %v2625
      %2658 = vst [vmem:[%s356 + $0x40] sm:$0xff] %v2626
      %2659 = vst [vmem:[%s356 + $0x48] sm:$0xff] %v2627
      %2660 = vst [vmem:[%s356 + $0x50] sm:$0xff] %v2628
      %2661 = vst [vmem:[%s356 + $0x58] sm:$0xff] %v2629
      %2662 = vst [vmem:[%s356 + $0x60] sm:$0xff] %v2630
      %2663 = vst [vmem:[%s356 + $0x68] sm:$0xff] %v2631
      %2664 = vst [vmem:[%s356 + $0x70] sm:$0xff] %v2632
      %2665 = vst [vmem:[%s356 + $0x78] sm:$0xff] %v2633
      %2666 = vst [vmem:[%s356 + $0x80] sm:$0xff] %v2634
      %2667 = vst [vmem:[%s356 + $0x88] sm:$0xff] %v2635
      %2668 = vst [vmem:[%s356 + $0x90] sm:$0xff] %v2636
      %2669 = vst [vmem:[%s356 + $0x98] sm:$0xff] %v2637
      %2670 = vst [vmem:[%s356 + $0xa0] sm:$0xff] %v2638
      %2671 = vst [vmem:[%s356 + $0xa8] sm:$0xff] %v2639
      %2672 = vst [vmem:[%s356 + $0xb0] sm:$0xff] %v2640
      %2673 = vst [vmem:[%s356 + $0xb8] sm:$0xff] %v2641
      %2674 = vst [vmem:[%s356 + $0xc0] sm:$0xff] %v2642
      %2675 = vst [vmem:[%s356 + $0xc8] sm:$0xff] %v2643
      %2676 = vst [vmem:[%s356 + $0xd0] sm:$0xff] %v2644
      %2677 = vst [vmem:[%s356 + $0xd8] sm:$0xff] %v2645
      %2678 = vst [vmem:[%s356 + $0xe0] sm:$0xff] %v2646
      %2679 = vst [vmem:[%s356 + $0xe8] sm:$0xff] %v2647
      %2680 = vst [vmem:[%s356 + $0xf0] sm:$0xff] %v2648
      %2681 = vst [vmem:[%s356 + $0xf8] sm:$0xff] %v2649
      %s2682 = smul.u32 16, %s25
      %p2683 = scmp.lt.s32.totalorder %s24, 1
      %s2684 = scalar_select %p2683, %s24, 1
      %p2685 = scmp.lt.s32.totalorder %s2682, 15
      %s2686 = scalar_select %p2685, %s2682, 15
      %s2687 = smul.addr %s2686, 2
      %s2688 = smul.addr %s2684, 32
      %s2689 = sadd.s32 %s2687, %s2688
      %s2690 = smul.addr %s2689, 8
      %s2691 = scalar_lea.vmem %s9, %s2690
      // Predicated region
      $region73: #{block_forward.1} parent=55 // pred_check
        %p2692 = pneg %p246
      $region74: #{block_forward.1} parent=55 // pred_check_branch
        %2694 = sbr.rel (%p2692) target = $region76
      $region75: #{block_forward.1} parent=55 // pred_region
        %s2695 = smul.u32 16, %s25
      $region76: #{block_forward.1} parent=55 // pred_fallthru
        _
    $region56: #{block_forward.1} parent=5 // pred_fallthru
      _
    %p2696 = scmp.le.s32.totalorder 2, %s15
    // Predicated region
    $region77: #{block_forward.1} parent=5 // pred_check
      %p2697 = pneg %p2696
    $region78: #{block_forward.1} parent=5 // pred_check_branch
      %2699 = sbr.rel (%p2697) target = $region80
    $region79: #{block_forward.1} parent=5 // pred_region
      %s2700 = ssub.s32 %s15, 2
      // Predicated region
      $region81: #{block_forward.1} parent=79 // pred_check
        %p2701 = pneg %p252
      $region82: #{block_forward.1} parent=79 // pred_check_branch
        %2703 = sbr.rel (%p2701) target = $region84
      $region83: #{block_forward.1} parent=79 // pred_region
        %s2704 = smul.u32 16, %s27
        %p2705 = scmp.lt.s32.totalorder %s26, 1
        %s2706 = scalar_select %p2705, %s26, 1
        %p2707 = scmp.lt.s32.totalorder %s2704, 15
        %s2708 = scalar_select %p2707, %s2704, 15
        %s2709 = smul.addr %s2708, 2
        %s2710 = smul.addr %s2706, 32
        %s2711 = sadd.s32 %s2709, %s2710
        %s2712 = smul.addr %s2711, 8
        %s2713 = scalar_lea.vmem %s9, %s2712
      $region84: #{block_forward.1} parent=79 // pred_fallthru
        _
    $region80: #{block_forward.1} parent=5 // pred_fallthru
      _
  $region6: #{block_forward.1} parent=0 // loop_footer
    %s19 = sadd.s32 1, %s15
  $region7: #{block_forward.1} parent=0 // loop_footer_branch
    %14 = sbr.rel target = $region3
  $region8: #{block_forward.1} parent=0 // loop_exit
    _

</llo_original>
